<compile_context>
chip_gen: v6e
topology: v6e:2x2x1
jax: 0.10.0
libtpu: 0.0.40
codegen_flags: <defaults>
</compile_context>

<pallas_src>
import jax
import jax.numpy as jnp
from jax.experimental import pallas as pl
from jax.experimental.pallas import tpu as pltpu


# ---------------------------------------------------------------------------
# Pallas kernels
# ---------------------------------------------------------------------------
def conv3x3_stats_kernel(x_ref, w_ref, y_ref, psum_ref, psq_ref):
    """Fused 3x3 conv (9 accumulated matmuls) + per-tile BN partial statistics.

    x_ref:    (3, th, W+2, Cin)  bf16  row-shifted (kh) planes, W-padded
    w_ref:    (9, Cin, Coutp)    bf16  per-tap weight matrices
    y_ref:    (th*W, Coutp)      f32   conv output rows for this tile
    psum_ref: (8, Coutp)         f32   per-tile partial channel sum (broadcast rows)
    psq_ref:  (8, Coutp)         f32   per-tile partial channel sum of squares
    """
    th = x_ref.shape[1]
    Wp = x_ref.shape[2]
    Cin = x_ref.shape[3]
    W = Wp - 2
    R = th * W
    Coutp = w_ref.shape[2]

    # Accumulate the 9 taps in f32 (vregs / compiler-managed scratch), store once.
    acc = jnp.zeros((R, Coutp), dtype=jnp.float32)
    for kh in range(3):
        xk = x_ref[kh]                                   # (th, Wp, Cin) bf16
        for kw in range(3):
            a = xk[:, kw:kw + W, :].reshape(R, Cin)      # (R, Cin) bf16
            acc = acc + jnp.dot(a, w_ref[kh * 3 + kw],
                                preferred_element_type=jnp.float32)

    y_ref[...] = acc
    s = jnp.sum(acc, axis=0, keepdims=True)              # (1, Coutp)
    sq = jnp.sum(acc * acc, axis=0, keepdims=True)       # (1, Coutp)
    psum_ref[...] = jnp.broadcast_to(s, psum_ref.shape)
    psq_ref[...] = jnp.broadcast_to(sq, psq_ref.shape)


def bn_relu_kernel(y_ref, scale_ref, shift_ref, o_ref):
    # y_ref: (R, Coutp)  scale/shift: (1, Coutp) broadcast over rows
    o_ref[...] = jnp.maximum(y_ref[...] * scale_ref[...] + shift_ref[...], 0.0)


# ---------------------------------------------------------------------------
# Wrapper
# ---------------------------------------------------------------------------
def _pick_row_tile(H, W, target_rows=1024):
    """Largest divisor th of H with th*W <= target_rows and (th*W) % 8 == 0."""
    th = 1
    for cand in range(1, H + 1):
        if H % cand == 0 and cand * W <= target_rows and (cand * W) % 8 == 0:
            th = cand
    return th


def basic_block_forward(x_nchw, weight, bias, gamma, beta, eps=1e-5):
    """BasicBlock forward. x_nchw: (N, Cin, H, W). weight: (Cout, Cin, 3, 3)."""
    N, Cin, H, W = x_nchw.shape
    Cout, Cin_w, KH, KW = weight.shape
    assert (KH, KW) == (3, 3) and Cin_w == Cin, \
        "specialized to the module defaults: kernel_size=3, stride=1, padding=1"

    Coutp = ((Cout + 127) // 128) * 128          # lane-dense (multiple of 128) outputs
    th = _pick_row_tile(H, W)
    R = th * W                                   # output rows per grid step
    assert H % th == 0 and R % 8 == 0, "demo assumes tileable spatial shape"
    num_tiles = (N * H) // th
    M = N * H * W
    Wp = W + 2

    # --- glue: NHWC, pad, bf16, 3 row-shifted planes (the kh taps) ---
    x = jnp.transpose(x_nchw, (0, 2, 3, 1)).astype(jnp.float32)            # NHWC
    xp = jnp.pad(x, ((0, 0), (1, 1), (1, 1), (0, 0))).astype(jnp.bfloat16)  # (N,H+2,Wp,Cin)
    xstack = jnp.stack([xp[:, kh:kh + H, :, :] for kh in range(3)], axis=0)  # (3,N,H,Wp,Cin)
    xstack = xstack.reshape(3, N * H, Wp, Cin)

    # per-tap weight matrices: weight[co,ci,kh,kw] -> (9, Cin, Coutp), zero-padded, bf16
    w_taps = jnp.transpose(weight, (2, 3, 1, 0)).reshape(9, Cin, Cout).astype(jnp.float32)
    w_pad = jnp.zeros((9, Cin, Coutp), jnp.float32).at[:, :, :Cout].set(w_taps)
    w_pad = w_pad.astype(jnp.bfloat16)

    # NOTE: `bias` is intentionally unused: training-mode BatchNorm subtracts the
    # batch mean, which absorbs a per-channel conv bias exactly (variance is
    # unchanged), so the final output is identical without it.

    # --- Kernel 1: fused conv (9 taps) + per-tile BN partial stats ---
    # TODO(synk): for very large Cin/Cout (real ResNet layers) add a tap/K grid
    #             axis with a VMEM f32 accumulator to fit v7x's 64 MiB VMEM.
    cost = pl.CostEstimate(
        flops=2 * M * (9 * Cin) * Coutp,
        transcendentals=0,
        bytes_accessed=(xstack.size * 2 + w_pad.size * 2
                        + M * Coutp * 4 + 2 * num_tiles * 8 * Coutp * 4),
    )
    conv_y, psum, psq = pl.pallas_call(
        conv3x3_stats_kernel,
        out_shape=(
            jax.ShapeDtypeStruct((M, Coutp), jnp.float32),
            jax.ShapeDtypeStruct((num_tiles * 8, Coutp), jnp.float32),
            jax.ShapeDtypeStruct((num_tiles * 8, Coutp), jnp.float32),
        ),
        grid=(num_tiles,),
        in_specs=[
            pl.BlockSpec((3, th, Wp, Cin), lambda i: (0, i, 0, 0)),
            pl.BlockSpec((9, Cin, Coutp), lambda i: (0, 0, 0)),
        ],
        out_specs=(
            pl.BlockSpec((R, Coutp), lambda i: (i, 0)),
            pl.BlockSpec((8, Coutp), lambda i: (i, 0)),
            pl.BlockSpec((8, Coutp), lambda i: (i, 0)),
        ),
        compiler_params=pltpu.CompilerParams(
            dimension_semantics=("parallel",),
            vmem_limit_bytes=48 * 1024 * 1024,
        ),
        cost_estimate=cost,
    )(xstack, w_pad)

    # --- BatchNorm2d training-mode batch stats (biased variance), scalar math ---
    sums = psum.reshape(num_tiles, 8, Coutp)[:, 0, :].sum(axis=0)   # (Coutp,)
    sqs = psq.reshape(num_tiles, 8, Coutp)[:, 0, :].sum(axis=0)     # (Coutp,)
    mean = sums / M
    var = jnp.maximum(sqs / M - mean * mean, 0.0)   # clamp guards f32 cancellation
    gpad = jnp.zeros((Coutp,), jnp.float32).at[:Cout].set(gamma.astype(jnp.float32))
    bpad = jnp.zeros((Coutp,), jnp.float32).at[:Cout].set(beta.astype(jnp.float32))
    scale = gpad / jnp.sqrt(var + eps)
    shift = bpad - mean * scale
    scale2 = scale.reshape(1, Coutp)
    shift2 = shift.reshape(1, Coutp)

    # --- Kernel 2: fused affine normalize + ReLU (output aliases conv_y) ---
    out_flat = pl.pallas_call(
        bn_relu_kernel,
        out_shape=jax.ShapeDtypeStruct((M, Coutp), jnp.float32),
        grid=(num_tiles,),
        in_specs=[
            pl.BlockSpec((R, Coutp), lambda i: (i, 0)),
            pl.BlockSpec((1, Coutp), lambda i: (0, 0)),
            pl.BlockSpec((1, Coutp), lambda i: (0, 0)),
        ],
        out_specs=pl.BlockSpec((R, Coutp), lambda i: (i, 0)),
        input_output_aliases={0: 0},   # reuse conv_y's HBM buffer
        compiler_params=pltpu.CompilerParams(dimension_semantics=("parallel",)),
    )(conv_y, scale2, shift2)

    out = out_flat[:, :Cout].reshape(N, H, W, Cout)
    return jnp.transpose(out, (0, 3, 1, 2))      # back to NCHW


# ---------------------------------------------------------------------------
# Pure-JAX f32 reference for correctness checking
# ---------------------------------------------------------------------------
def basic_block_reference(x, weight, bias, gamma, beta, eps=1e-5):
    out = jax.lax.conv_general_dilated(
        x, weight, window_strides=(1, 1), padding=((1, 1), (1, 1)),
        dimension_numbers=("NCHW", "OIHW", "NCHW"))
    out = out + bias.reshape(1, -1, 1, 1)
    mean = out.mean(axis=(0, 2, 3), keepdims=True)
    var = out.var(axis=(0, 2, 3), keepdims=True)   # biased, like BN training mode
    out = (out - mean) / jnp.sqrt(var + eps)
    out = out * gamma.reshape(1, -1, 1, 1) + beta.reshape(1, -1, 1, 1)
    return jnp.maximum(out, 0.0)


if __name__ == "__main__":
    key = jax.random.PRNGKey(0)
    k_x, k_w, k_b, k_g, k_bt = jax.random.split(key, 5)

    N, Cin, H, W = 2, 4, 16, 16
    Cout, KH, KW = 8, 3, 3

    x = jax.random.normal(k_x, (N, Cin, H, W), dtype=jnp.float32)
    fan_in = Cin * KH * KW
    weight = jax.random.uniform(k_w, (Cout, Cin, KH, KW), jnp.float32,
                                minval=-1.0, maxval=1.0) / jnp.sqrt(fan_in)
    bias = jax.random.uniform(k_b, (Cout,), jnp.float32, minval=-0.1, maxval=0.1)
    gamma = 1.0 + 0.1 * jax.random.normal(k_g, (Cout,), jnp.float32)
    beta = 0.1 * jax.random.normal(k_bt, (Cout,), jnp.float32)

    fwd = jax.jit(basic_block_forward)
    out = jax.block_until_ready(fwd(x, weight, bias, gamma, beta))

    ref = basic_block_reference(x, weight, bias, gamma, beta)
    assert out.shape == (N, Cout, H, W)
    max_diff = float(jnp.max(jnp.abs(out - ref)))
    # tolerance sized for bfloat16 MXU operands (accumulation is f32)
    assert jnp.allclose(out, ref, atol=5e-2, rtol=5e-2), f"max abs diff {max_diff}"

    print("KERNEL_OK")
</pallas_src>

<mosaic_0001>
module attributes {stable_mosaic.version = 11 : i64} {
  func.func @conv3x3_stats_kernel(%arg0: i32, %arg1: memref<3x16x18x4xbf16, #tpu.memory_space<vmem>>, %arg2: memref<9x4x128xbf16, #tpu.memory_space<vmem>>, %arg3: memref<256x128xf32, #tpu.memory_space<vmem>>, %arg4: memref<8x128xf32, #tpu.memory_space<vmem>>, %arg5: memref<8x128xf32, #tpu.memory_space<vmem>>) attributes {dimension_semantics = [#tpu.dimension_semantics<parallel>], iteration_bounds = array<i64: 2>, scalar_prefetch = 0 : i64, scratch_operands = 0 : i64, tpu.core_type = #tpu.core_type<tc>, window_params = [{transform_indices = @transform_0, window_bounds = array<i64: 3, 16, 18, 4>}, {pipeline_mode = #tpu.pipeline_mode<synchronous>, transform_indices = @transform_1, window_bounds = array<i64: 9, 4, 128>}, {transform_indices = @transform_2, window_bounds = array<i64: 256, 128>}, {transform_indices = @transform_3, window_bounds = array<i64: 8, 128>}, {transform_indices = @transform_4, window_bounds = array<i64: 8, 128>}]} {
    %cst = arith.constant 0.000000e+00 : f32
    %0 = vector.broadcast %cst : f32 to vector<256x128xf32>
    %c0 = arith.constant 0 : index
    %c0_0 = arith.constant 0 : index
    %c0_1 = arith.constant 0 : index
    %c0_2 = arith.constant 0 : index
    %1 = vector.load %arg1[%c0, %c0_0, %c0_1, %c0_2] : memref<3x16x18x4xbf16, #tpu.memory_space<vmem>>, vector<1x16x18x4xbf16>
    %2 = vector.shape_cast %1 : vector<1x16x18x4xbf16> to vector<16x18x4xbf16>
    %3 = vector.extract_strided_slice %2 {offsets = [0, 0, 0], sizes = [16, 16, 4], strides = [1, 1, 1]} : vector<16x18x4xbf16> to vector<16x16x4xbf16>
    %4 = vector.shape_cast %3 : vector<16x16x4xbf16> to vector<256x4xbf16>
    %c0_3 = arith.constant 0 : index
    %c0_4 = arith.constant 0 : index
    %c0_5 = arith.constant 0 : index
    %5 = vector.load %arg2[%c0_3, %c0_4, %c0_5] : memref<9x4x128xbf16, #tpu.memory_space<vmem>>, vector<1x4x128xbf16>
    %6 = vector.shape_cast %5 : vector<1x4x128xbf16> to vector<4x128xbf16>
    %cst_6 = arith.constant dense<0.000000e+00> : vector<256x128xf32>
    %7 = tpu.matmul %4, %6, %cst_6 {dimension_numbers = #tpu.dot_dimension_numbers<[1], [0], [0], [1], [0, 0, 1, 1], [], []>} : vector<256x4xbf16>, vector<4x128xbf16>, vector<256x128xf32> -> vector<256x128xf32>
    %8 = arith.addf %0, %7 : vector<256x128xf32>
    %9 = vector.extract_strided_slice %2 {offsets = [0, 1, 0], sizes = [16, 16, 4], strides = [1, 1, 1]} : vector<16x18x4xbf16> to vector<16x16x4xbf16>
    %10 = vector.shape_cast %9 : vector<16x16x4xbf16> to vector<256x4xbf16>
    %c1 = arith.constant 1 : index
    %c0_7 = arith.constant 0 : index
    %c0_8 = arith.constant 0 : index
    %11 = vector.load %arg2[%c1, %c0_7, %c0_8] : memref<9x4x128xbf16, #tpu.memory_space<vmem>>, vector<1x4x128xbf16>
    %12 = vector.shape_cast %11 : vector<1x4x128xbf16> to vector<4x128xbf16>
    %cst_9 = arith.constant dense<0.000000e+00> : vector<256x128xf32>
    %13 = tpu.matmul %10, %12, %cst_9 {dimension_numbers = #tpu.dot_dimension_numbers<[1], [0], [0], [1], [0, 0, 1, 1], [], []>} : vector<256x4xbf16>, vector<4x128xbf16>, vector<256x128xf32> -> vector<256x128xf32>
    %14 = arith.addf %8, %13 : vector<256x128xf32>
    %15 = vector.extract_strided_slice %2 {offsets = [0, 2, 0], sizes = [16, 16, 4], strides = [1, 1, 1]} : vector<16x18x4xbf16> to vector<16x16x4xbf16>
    %16 = vector.shape_cast %15 : vector<16x16x4xbf16> to vector<256x4xbf16>
    %c2 = arith.constant 2 : index
    %c0_10 = arith.constant 0 : index
    %c0_11 = arith.constant 0 : index
    %17 = vector.load %arg2[%c2, %c0_10, %c0_11] : memref<9x4x128xbf16, #tpu.memory_space<vmem>>, vector<1x4x128xbf16>
    %18 = vector.shape_cast %17 : vector<1x4x128xbf16> to vector<4x128xbf16>
    %cst_12 = arith.constant dense<0.000000e+00> : vector<256x128xf32>
    %19 = tpu.matmul %16, %18, %cst_12 {dimension_numbers = #tpu.dot_dimension_numbers<[1], [0], [0], [1], [0, 0, 1, 1], [], []>} : vector<256x4xbf16>, vector<4x128xbf16>, vector<256x128xf32> -> vector<256x128xf32>
    %20 = arith.addf %14, %19 : vector<256x128xf32>
    %c1_13 = arith.constant 1 : index
    %c0_14 = arith.constant 0 : index
    %c0_15 = arith.constant 0 : index
    %c0_16 = arith.constant 0 : index
    %21 = vector.load %arg1[%c1_13, %c0_14, %c0_15, %c0_16] : memref<3x16x18x4xbf16, #tpu.memory_space<vmem>>, vector<1x16x18x4xbf16>
    %22 = vector.shape_cast %21 : vector<1x16x18x4xbf16> to vector<16x18x4xbf16>
    %23 = vector.extract_strided_slice %22 {offsets = [0, 0, 0], sizes = [16, 16, 4], strides = [1, 1, 1]} : vector<16x18x4xbf16> to vector<16x16x4xbf16>
    %24 = vector.shape_cast %23 : vector<16x16x4xbf16> to vector<256x4xbf16>
    %c3 = arith.constant 3 : index
    %c0_17 = arith.constant 0 : index
    %c0_18 = arith.constant 0 : index
    %25 = vector.load %arg2[%c3, %c0_17, %c0_18] : memref<9x4x128xbf16, #tpu.memory_space<vmem>>, vector<1x4x128xbf16>
    %26 = vector.shape_cast %25 : vector<1x4x128xbf16> to vector<4x128xbf16>
    %cst_19 = arith.constant dense<0.000000e+00> : vector<256x128xf32>
    %27 = tpu.matmul %24, %26, %cst_19 {dimension_numbers = #tpu.dot_dimension_numbers<[1], [0], [0], [1], [0, 0, 1, 1], [], []>} : vector<256x4xbf16>, vector<4x128xbf16>, vector<256x128xf32> -> vector<256x128xf32>
    %28 = arith.addf %20, %27 : vector<256x128xf32>
    %29 = vector.extract_strided_slice %22 {offsets = [0, 1, 0], sizes = [16, 16, 4], strides = [1, 1, 1]} : vector<16x18x4xbf16> to vector<16x16x4xbf16>
    %30 = vector.shape_cast %29 : vector<16x16x4xbf16> to vector<256x4xbf16>
    %c4 = arith.constant 4 : index
    %c0_20 = arith.constant 0 : index
    %c0_21 = arith.constant 0 : index
    %31 = vector.load %arg2[%c4, %c0_20, %c0_21] : memref<9x4x128xbf16, #tpu.memory_space<vmem>>, vector<1x4x128xbf16>
    %32 = vector.shape_cast %31 : vector<1x4x128xbf16> to vector<4x128xbf16>
    %cst_22 = arith.constant dense<0.000000e+00> : vector<256x128xf32>
    %33 = tpu.matmul %30, %32, %cst_22 {dimension_numbers = #tpu.dot_dimension_numbers<[1], [0], [0], [1], [0, 0, 1, 1], [], []>} : vector<256x4xbf16>, vector<4x128xbf16>, vector<256x128xf32> -> vector<256x128xf32>
    %34 = arith.addf %28, %33 : vector<256x128xf32>
    %35 = vector.extract_strided_slice %22 {offsets = [0, 2, 0], sizes = [16, 16, 4], strides = [1, 1, 1]} : vector<16x18x4xbf16> to vector<16x16x4xbf16>
    %36 = vector.shape_cast %35 : vector<16x16x4xbf16> to vector<256x4xbf16>
    %c5 = arith.constant 5 : index
    %c0_23 = arith.constant 0 : index
    %c0_24 = arith.constant 0 : index
    %37 = vector.load %arg2[%c5, %c0_23, %c0_24] : memref<9x4x128xbf16, #tpu.memory_space<vmem>>, vector<1x4x128xbf16>
    %38 = vector.shape_cast %37 : vector<1x4x128xbf16> to vector<4x128xbf16>
    %cst_25 = arith.constant dense<0.000000e+00> : vector<256x128xf32>
    %39 = tpu.matmul %36, %38, %cst_25 {dimension_numbers = #tpu.dot_dimension_numbers<[1], [0], [0], [1], [0, 0, 1, 1], [], []>} : vector<256x4xbf16>, vector<4x128xbf16>, vector<256x128xf32> -> vector<256x128xf32>
    %40 = arith.addf %34, %39 : vector<256x128xf32>
    %c2_26 = arith.constant 2 : index
    %c0_27 = arith.constant 0 : index
    %c0_28 = arith.constant 0 : index
    %c0_29 = arith.constant 0 : index
    %41 = vector.load %arg1[%c2_26, %c0_27, %c0_28, %c0_29] : memref<3x16x18x4xbf16, #tpu.memory_space<vmem>>, vector<1x16x18x4xbf16>
    %42 = vector.shape_cast %41 : vector<1x16x18x4xbf16> to vector<16x18x4xbf16>
    %43 = vector.extract_strided_slice %42 {offsets = [0, 0, 0], sizes = [16, 16, 4], strides = [1, 1, 1]} : vector<16x18x4xbf16> to vector<16x16x4xbf16>
    %44 = vector.shape_cast %43 : vector<16x16x4xbf16> to vector<256x4xbf16>
    %c6 = arith.constant 6 : index
    %c0_30 = arith.constant 0 : index
    %c0_31 = arith.constant 0 : index
    %45 = vector.load %arg2[%c6, %c0_30, %c0_31] : memref<9x4x128xbf16, #tpu.memory_space<vmem>>, vector<1x4x128xbf16>
    %46 = vector.shape_cast %45 : vector<1x4x128xbf16> to vector<4x128xbf16>
    %cst_32 = arith.constant dense<0.000000e+00> : vector<256x128xf32>
    %47 = tpu.matmul %44, %46, %cst_32 {dimension_numbers = #tpu.dot_dimension_numbers<[1], [0], [0], [1], [0, 0, 1, 1], [], []>} : vector<256x4xbf16>, vector<4x128xbf16>, vector<256x128xf32> -> vector<256x128xf32>
    %48 = arith.addf %40, %47 : vector<256x128xf32>
    %49 = vector.extract_strided_slice %42 {offsets = [0, 1, 0], sizes = [16, 16, 4], strides = [1, 1, 1]} : vector<16x18x4xbf16> to vector<16x16x4xbf16>
    %50 = vector.shape_cast %49 : vector<16x16x4xbf16> to vector<256x4xbf16>
    %c7 = arith.constant 7 : index
    %c0_33 = arith.constant 0 : index
    %c0_34 = arith.constant 0 : index
    %51 = vector.load %arg2[%c7, %c0_33, %c0_34] : memref<9x4x128xbf16, #tpu.memory_space<vmem>>, vector<1x4x128xbf16>
    %52 = vector.shape_cast %51 : vector<1x4x128xbf16> to vector<4x128xbf16>
    %cst_35 = arith.constant dense<0.000000e+00> : vector<256x128xf32>
    %53 = tpu.matmul %50, %52, %cst_35 {dimension_numbers = #tpu.dot_dimension_numbers<[1], [0], [0], [1], [0, 0, 1, 1], [], []>} : vector<256x4xbf16>, vector<4x128xbf16>, vector<256x128xf32> -> vector<256x128xf32>
    %54 = arith.addf %48, %53 : vector<256x128xf32>
    %55 = vector.extract_strided_slice %42 {offsets = [0, 2, 0], sizes = [16, 16, 4], strides = [1, 1, 1]} : vector<16x18x4xbf16> to vector<16x16x4xbf16>
    %56 = vector.shape_cast %55 : vector<16x16x4xbf16> to vector<256x4xbf16>
    %c8 = arith.constant 8 : index
    %c0_36 = arith.constant 0 : index
    %c0_37 = arith.constant 0 : index
    %57 = vector.load %arg2[%c8, %c0_36, %c0_37] : memref<9x4x128xbf16, #tpu.memory_space<vmem>>, vector<1x4x128xbf16>
    %58 = vector.shape_cast %57 : vector<1x4x128xbf16> to vector<4x128xbf16>
    %cst_38 = arith.constant dense<0.000000e+00> : vector<256x128xf32>
    %59 = tpu.matmul %56, %58, %cst_38 {dimension_numbers = #tpu.dot_dimension_numbers<[1], [0], [0], [1], [0, 0, 1, 1], [], []>} : vector<256x4xbf16>, vector<4x128xbf16>, vector<256x128xf32> -> vector<256x128xf32>
    %60 = arith.addf %54, %59 : vector<256x128xf32>
    %c0_39 = arith.constant 0 : index
    %c0_40 = arith.constant 0 : index
    %61 = vector.load %arg3[%c0_39, %c0_40] : memref<256x128xf32, #tpu.memory_space<vmem>>, vector<256x128xf32>
    tpu.vector_store %arg3[%c0_39, %c0_40], %60 {strides = array<i32>} : memref<256x128xf32, #tpu.memory_space<vmem>>, vector<256x128xf32>,
    %cst_41 = arith.constant dense<0.000000e+00> : vector<128xf32>
    %62 = vector.multi_reduction <add>, %60, %cst_41 [0] : vector<256x128xf32> to vector<128xf32>
    %63 = vector.shape_cast %62 : vector<128xf32> to vector<1x128xf32>
    %64 = arith.mulf %60, %60 : vector<256x128xf32>
    %cst_42 = arith.constant dense<0.000000e+00> : vector<128xf32>
    %65 = vector.multi_reduction <add>, %64, %cst_42 [0] : vector<256x128xf32> to vector<128xf32>
    %66 = vector.shape_cast %65 : vector<128xf32> to vector<1x128xf32>
    %67 = vector.shape_cast %63 : vector<1x128xf32> to vector<1x128xf32>
    %68 = vector.broadcast %67 : vector<1x128xf32> to vector<8x128xf32>
    %c0_43 = arith.constant 0 : index
    %c0_44 = arith.constant 0 : index
    %69 = vector.load %arg4[%c0_43, %c0_44] : memref<8x128xf32, #tpu.memory_space<vmem>>, vector<8x128xf32>
    tpu.vector_store %arg4[%c0_43, %c0_44], %68 {strides = array<i32>} : memref<8x128xf32, #tpu.memory_space<vmem>>, vector<8x128xf32>,
    %70 = vector.shape_cast %66 : vector<1x128xf32> to vector<1x128xf32>
    %71 = vector.broadcast %70 : vector<1x128xf32> to vector<8x128xf32>
    %c0_45 = arith.constant 0 : index
    %c0_46 = arith.constant 0 : index
    %72 = vector.load %arg5[%c0_45, %c0_46] : memref<8x128xf32, #tpu.memory_space<vmem>>, vector<8x128xf32>
    tpu.vector_store %arg5[%c0_45, %c0_46], %71 {strides = array<i32>} : memref<8x128xf32, #tpu.memory_space<vmem>>, vector<8x128xf32>,
    return
  }
  func.func @transform_0(%arg0: i32) -> (i32, i32, i32, i32) {
    %c0_i32 = arith.constant 0 : i32
    %c0_i32_0 = arith.constant 0 : i32
    %c0_i32_1 = arith.constant 0 : i32
    %c0_i32_2 = arith.constant 0 : i32
    return %c0_i32, %arg0, %c0_i32_0, %c0_i32_1 : i32, i32, i32, i32
  }
  func.func @transform_1(%arg0: i32) -> (i32, i32, i32) {
    %c0_i32 = arith.constant 0 : i32
    %c0_i32_0 = arith.constant 0 : i32
    %c0_i32_1 = arith.constant 0 : i32
    %c0_i32_2 = arith.constant 0 : i32
    return %c0_i32, %c0_i32_0, %c0_i32_1 : i32, i32, i32
  }
  func.func @transform_2(%arg0: i32) -> (i32, i32) {
    %c0_i32 = arith.constant 0 : i32
    %c0_i32_0 = arith.constant 0 : i32
    return %arg0, %c0_i32 : i32, i32
  }
  func.func @transform_3(%arg0: i32) -> (i32, i32) {
    %c0_i32 = arith.constant 0 : i32
    %c0_i32_0 = arith.constant 0 : i32
    return %arg0, %c0_i32 : i32, i32
  }
  func.func @transform_4(%arg0: i32) -> (i32, i32) {
    %c0_i32 = arith.constant 0 : i32
    %c0_i32_0 = arith.constant 0 : i32
    return %arg0, %c0_i32 : i32, i32
  }
}

module attributes {stable_mosaic.version = 11 : i64} {
  func.func @bn_relu_kernel(%arg0: i32, %arg1: memref<256x128xf32, #tpu.memory_space<vmem>>, %arg2: memref<1x128xf32, #tpu.memory_space<vmem>>, %arg3: memref<1x128xf32, #tpu.memory_space<vmem>>, %arg4: memref<256x128xf32, #tpu.memory_space<vmem>>) attributes {dimension_semantics = [#tpu.dimension_semantics<parallel>], iteration_bounds = array<i64: 2>, scalar_prefetch = 0 : i64, scratch_operands = 0 : i64, tpu.core_type = #tpu.core_type<tc>, window_params = [{transform_indices = @transform_0, window_bounds = array<i64: 256, 128>}, {pipeline_mode = #tpu.pipeline_mode<synchronous>, transform_indices = @transform_1, window_bounds = array<i64: 1, 128>}, {pipeline_mode = #tpu.pipeline_mode<synchronous>, transform_indices = @transform_2, window_bounds = array<i64: 1, 128>}, {transform_indices = @transform_3, window_bounds = array<i64: 256, 128>}]} {
    %c0 = arith.constant 0 : index
    %c0_0 = arith.constant 0 : index
    %0 = vector.load %arg1[%c0, %c0_0] : memref<256x128xf32, #tpu.memory_space<vmem>>, vector<256x128xf32>
    %c0_1 = arith.constant 0 : index
    %c0_2 = arith.constant 0 : index
    %1 = vector.load %arg2[%c0_1, %c0_2] : memref<1x128xf32, #tpu.memory_space<vmem>>, vector<1x128xf32>
    %2 = vector.broadcast %1 : vector<1x128xf32> to vector<256x128xf32>
    %3 = arith.mulf %0, %2 : vector<256x128xf32>
    %c0_3 = arith.constant 0 : index
    %c0_4 = arith.constant 0 : index
    %4 = vector.load %arg3[%c0_3, %c0_4] : memref<1x128xf32, #tpu.memory_space<vmem>>, vector<1x128xf32>
    %5 = vector.broadcast %4 : vector<1x128xf32> to vector<256x128xf32>
    %6 = arith.addf %3, %5 : vector<256x128xf32>
    %cst = arith.constant 0.000000e+00 : f32
    %7 = vector.broadcast %cst : f32 to vector<256x128xf32>
    %8 = arith.maximumf %6, %7 : vector<256x128xf32>
    %c0_5 = arith.constant 0 : index
    %c0_6 = arith.constant 0 : index
    %9 = vector.load %arg4[%c0_5, %c0_6] : memref<256x128xf32, #tpu.memory_space<vmem>>, vector<256x128xf32>
    tpu.vector_store %arg4[%c0_5, %c0_6], %8 {strides = array<i32>} : memref<256x128xf32, #tpu.memory_space<vmem>>, vector<256x128xf32>,
    return
  }
  func.func @transform_0(%arg0: i32) -> (i32, i32) {
    %c0_i32 = arith.constant 0 : i32
    %c0_i32_0 = arith.constant 0 : i32
    return %arg0, %c0_i32 : i32, i32
  }
  func.func @transform_1(%arg0: i32) -> (i32, i32) {
    %c0_i32 = arith.constant 0 : i32
    %c0_i32_0 = arith.constant 0 : i32
    %c0_i32_1 = arith.constant 0 : i32
    return %c0_i32, %c0_i32_0 : i32, i32
  }
  func.func @transform_2(%arg0: i32) -> (i32, i32) {
    %c0_i32 = arith.constant 0 : i32
    %c0_i32_0 = arith.constant 0 : i32
    %c0_i32_1 = arith.constant 0 : i32
    return %c0_i32, %c0_i32_0 : i32, i32
  }
  func.func @transform_3(%arg0: i32) -> (i32, i32) {
    %c0_i32 = arith.constant 0 : i32
    %c0_i32_0 = arith.constant 0 : i32
    return %arg0, %c0_i32 : i32, i32
  }
}

</mosaic_0001>

<llo_original>
// kernel: basic_block_forward.3
$region0: #{basic_block_forward.3}
  #allocation0 [shape = 'u32[]', space=smem, size = 0x4, offset = 0x4, fixed_abs, tag = 'smem constant byte address 0x4 - core index']
  #allocation1 [shape = 'u32[144,128]{1,0:T(1,128)}', space=vmem, size = 0x12000, scoped, tag = 'internal scratch']
  %s0 = inlined_call_operand.vmem [shape: f32[512,128], index: 0, kind: input, shape index: {}, may-alias: {0,3}]
  %s1 = inlined_call_operand.vmem [shape: f32[1,128], index: 1, kind: input, shape index: {}]
  %s2 = inlined_call_operand.vmem [shape: f32[1,128], index: 2, kind: input, shape index: {}]
  %s3 = inlined_call_operand.vmem [shape: f32[512,128], index: 3, kind: output, shape index: {}, may-alias: {0,3}]
  %s4 = sld [smem:[#allocation0]]
  $region45: #{basic_block_forward.3} parent=0
    _
  %s6 = ssub.s32 1, %s4
  %s7 = scalar_select 0, %s6, %s4
  loop: start=0, step=1, limit=4
  $region2: #{basic_block_forward.3} parent=0 // loop_pre_header
    _
  $region3: #{basic_block_forward.3} parent=0 // loop_header
    %s9 = sphi 0, %s13
    %p10 = scmp.ge.s32.totalorder %s9, 4
    %s19 = sphi 0, %s21
    %s22 = sphi 0, %s19
    %s23 = sphi 0, %s22
    %s39 = sphi 0, %s23
    %s43 = sphi 0, %s43
    %s45 = sphi 0, %s43
    %s46 = sphi 0, %s45
    %s60 = sphi 0, %s46
    %s64 = sphi 0, %s64
    %s66 = sphi 0, %s64
    %s67 = sphi 0, %s66
    %s81 = sphi 0, %s67
    %s87 = sphi 0, %s89
    %s90 = sphi 0, %s87
    %s91 = sphi 0, %s90
    %s107 = sphi 0, %s91
  $region4: #{basic_block_forward.3} parent=0 // loop_header_branch
    %12 = sbr.rel (%p10) target = $region8
  $region5: #{basic_block_forward.3} parent=0 // loop_body
    %s14 = ssub.s32 %s9, 1
    %s15 = ssub.s32 %s9, 2
    %s16 = sadd.s32 %s9, 1
    %s17 = ssub.s32 %s9, %s16
    %p18 = scmp.eq.s32.totalorder %s17, 0
    %s20 = sadd.s32 %s19, 1
    %s21 = scalar_select %p18, %s19, %s20
    %p24 = pneg %p18
    %p25 = scmp.eq.s32.totalorder %s9, 1
    %p26 = por %p24, %p25
    %p27 = scmp.ne.s32.totalorder %s19, %s22
    %p28 = scmp.eq.s32.totalorder %s9, 0
    %p29 = por %p27, %p28
    %p30 = scmp.ne.s32.totalorder %s19, %s22
    %p31 = scmp.eq.s32.totalorder %s14, 1
    %p32 = por %p30, %p31
    %p33 = scmp.ne.s32.totalorder %s22, %s23
    %p34 = scmp.eq.s32.totalorder %s14, 0
    %p35 = por %p33, %p34
    %p36 = scmp.ne.s32.totalorder %s22, %s23
    %p37 = scmp.eq.s32.totalorder %s15, 1
    %p38 = por %p36, %p37
    %p40 = scmp.ne.s32.totalorder %s23, %s39
    %p41 = scmp.eq.s32.totalorder %s15, 0
    %p42 = por %p40, %p41
    %s44 = sadd.s32 %s43, 1
    %p47 = scmp.eq.s32.totalorder %s9, 1
    %p48 = scmp.ne.s32.totalorder %s43, %s45
    %p49 = scmp.eq.s32.totalorder %s9, 0
    %p50 = por %p48, %p49
    %p51 = scmp.ne.s32.totalorder %s43, %s45
    %p52 = scmp.eq.s32.totalorder %s14, 1
    %p53 = por %p51, %p52
    %p54 = scmp.ne.s32.totalorder %s45, %s46
    %p55 = scmp.eq.s32.totalorder %s14, 0
    %p56 = por %p54, %p55
    %p57 = scmp.ne.s32.totalorder %s45, %s46
    %p58 = scmp.eq.s32.totalorder %s15, 1
    %p59 = por %p57, %p58
    %p61 = scmp.ne.s32.totalorder %s46, %s60
    %p62 = scmp.eq.s32.totalorder %s15, 0
    %p63 = por %p61, %p62
    %s65 = sadd.s32 %s64, 1
    %p68 = scmp.eq.s32.totalorder %s9, 1
    %p69 = scmp.ne.s32.totalorder %s64, %s66
    %p70 = scmp.eq.s32.totalorder %s9, 0
    %p71 = por %p69, %p70
    %p72 = scmp.ne.s32.totalorder %s64, %s66
    %p73 = scmp.eq.s32.totalorder %s14, 1
    %p74 = por %p72, %p73
    %p75 = scmp.ne.s32.totalorder %s66, %s67
    %p76 = scmp.eq.s32.totalorder %s14, 0
    %p77 = por %p75, %p76
    %p78 = scmp.ne.s32.totalorder %s66, %s67
    %p79 = scmp.eq.s32.totalorder %s15, 1
    %p80 = por %p78, %p79
    %p82 = scmp.ne.s32.totalorder %s67, %s81
    %p83 = scmp.eq.s32.totalorder %s15, 0
    %p84 = por %p82, %p83
    %s85 = ssub.s32 %s9, %s16
    %p86 = scmp.eq.s32.totalorder %s85, 0
    %s88 = sadd.s32 %s87, 1
    %s89 = scalar_select %p86, %s87, %s88
    %p92 = pneg %p86
    %p93 = scmp.eq.s32.totalorder %s9, 1
    %p94 = por %p92, %p93
    %p95 = scmp.ne.s32.totalorder %s87, %s90
    %p96 = scmp.eq.s32.totalorder %s9, 0
    %p97 = por %p95, %p96
    %p98 = scmp.ne.s32.totalorder %s87, %s90
    %p99 = scmp.eq.s32.totalorder %s14, 1
    %p100 = por %p98, %p99
    %p101 = scmp.ne.s32.totalorder %s90, %s91
    %p102 = scmp.eq.s32.totalorder %s14, 0
    %p103 = por %p101, %p102
    %p104 = scmp.ne.s32.totalorder %s90, %s91
    %p105 = scmp.eq.s32.totalorder %s15, 1
    %p106 = por %p104, %p105
    %p108 = scmp.ne.s32.totalorder %s91, %s107
    %p109 = scmp.eq.s32.totalorder %s15, 0
    %p110 = por %p108, %p109
    %p111 = scmp.le.s32.totalorder 1, %s9
    %p112 = scmp.lt.s32.totalorder %s9, 3
    %p113 = pnand %p111, %p112
    %p114 = pneg %p113
    // Predicated region
    $region9: #{basic_block_forward.3} parent=5 // pred_check
      _
    $region10: #{basic_block_forward.3} parent=5 // pred_check_branch
      %116 = sbr.rel (%p113) target = $region12
    $region11: #{basic_block_forward.3} parent=5 // pred_region
      %s117 = ssub.s32 %s9, 1
      // Predicated region
      $region13: #{basic_block_forward.3} parent=11 // pred_check
        %p118 = pneg %p56
      $region14: #{basic_block_forward.3} parent=11 // pred_check_branch
        %120 = sbr.rel (%p118) target = $region16
      $region15: #{basic_block_forward.3} parent=11 // pred_region
        _
      $region16: #{basic_block_forward.3} parent=11 // pred_fallthru
        _
      // Predicated region
      $region17: #{basic_block_forward.3} parent=11 // pred_check
        %p121 = pneg %p77
      $region18: #{basic_block_forward.3} parent=11 // pred_check_branch
        %123 = sbr.rel (%p121) target = $region20
      $region19: #{basic_block_forward.3} parent=11 // pred_region
        _
      $region20: #{basic_block_forward.3} parent=11 // pred_fallthru
        _
    $region12: #{basic_block_forward.3} parent=5 // pred_fallthru
      _
    %p124 = scmp.lt.s32.totalorder %s9, 2
    // Predicated region
    $region21: #{basic_block_forward.3} parent=5 // pred_check
      %p125 = pneg %p124
    $region22: #{basic_block_forward.3} parent=5 // pred_check_branch
      %127 = sbr.rel (%p125) target = $region24
    $region23: #{basic_block_forward.3} parent=5 // pred_region
      // Predicated region
      $region25: #{basic_block_forward.3} parent=23 // pred_check
        %p128 = pneg %p29
      $region26: #{basic_block_forward.3} parent=23 // pred_check_branch
        %130 = sbr.rel (%p128) target = $region28
      $region27: #{basic_block_forward.3} parent=23 // pred_region
        %s131 = smul.u32 32, %s9
        %p132 = scmp.lt.s32.totalorder %s131, 63
        %s133 = scalar_select %p132, %s131, 63
        %s134 = smul.addr %s133, 8
        %s135 = scalar_lea.vmem %s0, %s134
        %s136 = smul.u32 32, %s9
      $region28: #{basic_block_forward.3} parent=23 // pred_fallthru
        _
    $region24: #{basic_block_forward.3} parent=5 // pred_fallthru
      _
    %p137 = scmp.le.s32.totalorder 1, %s9
    %p138 = scmp.lt.s32.totalorder %s9, 3
    %p139 = pnand %p137, %p138
    %p140 = pneg %p139
    // Predicated region
    $region29: #{basic_block_forward.3} parent=5 // pred_check
      _
    $region30: #{basic_block_forward.3} parent=5 // pred_check_branch
      %142 = sbr.rel (%p139) target = $region32
    $region31: #{basic_block_forward.3} parent=5 // pred_region
      %s143 = ssub.s32 %s9, 1
      %s144 = smul.u32 32, %s14
      %p145 = scmp.lt.s32.totalorder %s144, 63
      %s146 = scalar_select %p145, %s144, 63
      %s147 = smul.addr %s146, 8
      %s148 = scalar_lea.vmem %s0, %s147
      %p149 = pneg %p35
      %p150 = pneg %p32
      %p151 = pneg %p56
      %p152 = pneg %p53
      %p153 = pneg %p77
      %p154 = pneg %p74
      %p155 = pneg %p103
      %p156 = pneg %p100
      %s157 = smul.u32 32, %s14
      %p158 = scmp.lt.s32.totalorder %s157, 63
      %s159 = scalar_select %p158, %s157, 63
      %s160 = smul.addr %s159, 8
      %s161 = scalar_lea.vmem %s3, %s160
      %s162 = smul.u32 32, %s14
      %p163 = scmp.lt.s32.totalorder %s162, 63
      %s164 = scalar_select %p163, %s162, 63
      %s165 = smul.addr %s164, 8
      %s166 = scalar_lea.vmem %s0, %s165
      %s167 = smul.u32 32, %s14
      %s168 = smul.u32 32, %s14
      %p169 = scmp.lt.s32.totalorder %s168, 63
      %s170 = scalar_select %p169, %s168, 63
      %s171 = smul.addr %s170, 8
      %s172 = scalar_lea.vmem %s3, %s171
      %s173 = smul.u32 32, %s14
      %v174 = vld [vmem:[%s166] sm:$0xff]
      %v175 = vld [vmem:[%s166 + $0x8] sm:$0xff]
      %v176 = vld [vmem:[%s166 + $0x10] sm:$0xff]
      %v177 = vld [vmem:[%s166 + $0x18] sm:$0xff]
      %v178 = vld [vmem:[%s166 + $0x20] sm:$0xff]
      %v179 = vld [vmem:[%s166 + $0x28] sm:$0xff]
      %v180 = vld [vmem:[%s166 + $0x30] sm:$0xff]
      %v181 = vld [vmem:[%s166 + $0x38] sm:$0xff]
      %v182 = vld [vmem:[%s166 + $0x40] sm:$0xff]
      %v183 = vld [vmem:[%s166 + $0x48] sm:$0xff]
      %v184 = vld [vmem:[%s166 + $0x50] sm:$0xff]
      %v185 = vld [vmem:[%s166 + $0x58] sm:$0xff]
      %v186 = vld [vmem:[%s166 + $0x60] sm:$0xff]
      %v187 = vld [vmem:[%s166 + $0x68] sm:$0xff]
      %v188 = vld [vmem:[%s166 + $0x70] sm:$0xff]
      %v189 = vld [vmem:[%s166 + $0x78] sm:$0xff]
      %v190 = vld [vmem:[%s166 + $0x80] sm:$0xff]
      %v191 = vld [vmem:[%s166 + $0x88] sm:$0xff]
      %v192 = vld [vmem:[%s166 + $0x90] sm:$0xff]
      %v193 = vld [vmem:[%s166 + $0x98] sm:$0xff]
      %v194 = vld [vmem:[%s166 + $0xa0] sm:$0xff]
      %v195 = vld [vmem:[%s166 + $0xa8] sm:$0xff]
      %v196 = vld [vmem:[%s166 + $0xb0] sm:$0xff]
      %v197 = vld [vmem:[%s166 + $0xb8] sm:$0xff]
      %v198 = vld [vmem:[%s166 + $0xc0] sm:$0xff]
      %v199 = vld [vmem:[%s166 + $0xc8] sm:$0xff]
      %v200 = vld [vmem:[%s166 + $0xd0] sm:$0xff]
      %v201 = vld [vmem:[%s166 + $0xd8] sm:$0xff]
      %v202 = vld [vmem:[%s166 + $0xe0] sm:$0xff]
      %v203 = vld [vmem:[%s166 + $0xe8] sm:$0xff]
      %v204 = vld [vmem:[%s166 + $0xf0] sm:$0xff]
      %v205 = vld [vmem:[%s166 + $0xf8] sm:$0xff]
      %v206 = vld [vmem:[%s1] sm:$0x1]
      %v208 = vlaneseq
      %v209 = vshrl.u32 %v208, 7
      %v210 = vsub.s32 0, %v209
      %v211 = vrot.slane %v206, %v210
      %v213 = vmul.f32 %v174, %v211
      %v214 = vmul.f32 %v175, %v211
      %v215 = vmul.f32 %v176, %v211
      %v216 = vmul.f32 %v177, %v211
      %v217 = vmul.f32 %v178, %v211
      %v218 = vmul.f32 %v179, %v211
      %v219 = vmul.f32 %v180, %v211
      %v220 = vmul.f32 %v181, %v211
      %v221 = vmul.f32 %v182, %v211
      %v222 = vmul.f32 %v183, %v211
      %v223 = vmul.f32 %v184, %v211
      %v224 = vmul.f32 %v185, %v211
      %v225 = vmul.f32 %v186, %v211
      %v226 = vmul.f32 %v187, %v211
      %v227 = vmul.f32 %v188, %v211
      %v228 = vmul.f32 %v189, %v211
      %v229 = vmul.f32 %v190, %v211
      %v230 = vmul.f32 %v191, %v211
      %v231 = vmul.f32 %v192, %v211
      %v232 = vmul.f32 %v193, %v211
      %v233 = vmul.f32 %v194, %v211
      %v234 = vmul.f32 %v195, %v211
      %v235 = vmul.f32 %v196, %v211
      %v236 = vmul.f32 %v197, %v211
      %v237 = vmul.f32 %v198, %v211
      %v238 = vmul.f32 %v199, %v211
      %v239 = vmul.f32 %v200, %v211
      %v240 = vmul.f32 %v201, %v211
      %v241 = vmul.f32 %v202, %v211
      %v242 = vmul.f32 %v203, %v211
      %v243 = vmul.f32 %v204, %v211
      %v244 = vmul.f32 %v205, %v211
      %v245 = vld [vmem:[%s2] sm:$0x1]
      %v247 = vlaneseq
      %v248 = vshrl.u32 %v247, 7
      %v249 = vsub.s32 0, %v248
      %v250 = vrot.slane %v245, %v249
      %v252 = vadd.f32 %v213, %v250
      %v253 = vadd.f32 %v214, %v250
      %v254 = vadd.f32 %v215, %v250
      %v255 = vadd.f32 %v216, %v250
      %v256 = vadd.f32 %v217, %v250
      %v257 = vadd.f32 %v218, %v250
      %v258 = vadd.f32 %v219, %v250
      %v259 = vadd.f32 %v220, %v250
      %v260 = vadd.f32 %v221, %v250
      %v261 = vadd.f32 %v222, %v250
      %v262 = vadd.f32 %v223, %v250
      %v263 = vadd.f32 %v224, %v250
      %v264 = vadd.f32 %v225, %v250
      %v265 = vadd.f32 %v226, %v250
      %v266 = vadd.f32 %v227, %v250
      %v267 = vadd.f32 %v228, %v250
      %v268 = vadd.f32 %v229, %v250
      %v269 = vadd.f32 %v230, %v250
      %v270 = vadd.f32 %v231, %v250
      %v271 = vadd.f32 %v232, %v250
      %v272 = vadd.f32 %v233, %v250
      %v273 = vadd.f32 %v234, %v250
      %v274 = vadd.f32 %v235, %v250
      %v275 = vadd.f32 %v236, %v250
      %v276 = vadd.f32 %v237, %v250
      %v277 = vadd.f32 %v238, %v250
      %v278 = vadd.f32 %v239, %v250
      %v279 = vadd.f32 %v240, %v250
      %v280 = vadd.f32 %v241, %v250
      %v281 = vadd.f32 %v242, %v250
      %v282 = vadd.f32 %v243, %v250
      %v283 = vadd.f32 %v244, %v250
      %v284 = vmax.f32 %v252, 0.0
      %v285 = vmax.f32 %v253, 0.0
      %v286 = vmax.f32 %v254, 0.0
      %v287 = vmax.f32 %v255, 0.0
      %v288 = vmax.f32 %v256, 0.0
      %v289 = vmax.f32 %v257, 0.0
      %v290 = vmax.f32 %v258, 0.0
      %v291 = vmax.f32 %v259, 0.0
      %v292 = vmax.f32 %v260, 0.0
      %v293 = vmax.f32 %v261, 0.0
      %v294 = vmax.f32 %v262, 0.0
      %v295 = vmax.f32 %v263, 0.0
      %v296 = vmax.f32 %v264, 0.0
      %v297 = vmax.f32 %v265, 0.0
      %v298 = vmax.f32 %v266, 0.0
      %v299 = vmax.f32 %v267, 0.0
      %v300 = vmax.f32 %v268, 0.0
      %v301 = vmax.f32 %v269, 0.0
      %v302 = vmax.f32 %v270, 0.0
      %v303 = vmax.f32 %v271, 0.0
      %v304 = vmax.f32 %v272, 0.0
      %v305 = vmax.f32 %v273, 0.0
      %v306 = vmax.f32 %v274, 0.0
      %v307 = vmax.f32 %v275, 0.0
      %v308 = vmax.f32 %v276, 0.0
      %v309 = vmax.f32 %v277, 0.0
      %v310 = vmax.f32 %v278, 0.0
      %v311 = vmax.f32 %v279, 0.0
      %v312 = vmax.f32 %v280, 0.0
      %v313 = vmax.f32 %v281, 0.0
      %v314 = vmax.f32 %v282, 0.0
      %v315 = vmax.f32 %v283, 0.0
      %316 = vst [vmem:[%s172] sm:$0xff] %v284
      %317 = vst [vmem:[%s172 + $0x8] sm:$0xff] %v285
      %318 = vst [vmem:[%s172 + $0x10] sm:$0xff] %v286
      %319 = vst [vmem:[%s172 + $0x18] sm:$0xff] %v287
      %320 = vst [vmem:[%s172 + $0x20] sm:$0xff] %v288
      %321 = vst [vmem:[%s172 + $0x28] sm:$0xff] %v289
      %322 = vst [vmem:[%s172 + $0x30] sm:$0xff] %v290
      %323 = vst [vmem:[%s172 + $0x38] sm:$0xff] %v291
      %324 = vst [vmem:[%s172 + $0x40] sm:$0xff] %v292
      %325 = vst [vmem:[%s172 + $0x48] sm:$0xff] %v293
      %326 = vst [vmem:[%s172 + $0x50] sm:$0xff] %v294
      %327 = vst [vmem:[%s172 + $0x58] sm:$0xff] %v295
      %328 = vst [vmem:[%s172 + $0x60] sm:$0xff] %v296
      %329 = vst [vmem:[%s172 + $0x68] sm:$0xff] %v297
      %330 = vst [vmem:[%s172 + $0x70] sm:$0xff] %v298
      %331 = vst [vmem:[%s172 + $0x78] sm:$0xff] %v299
      %332 = vst [vmem:[%s172 + $0x80] sm:$0xff] %v300
      %333 = vst [vmem:[%s172 + $0x88] sm:$0xff] %v301
      %334 = vst [vmem:[%s172 + $0x90] sm:$0xff] %v302
      %335 = vst [vmem:[%s172 + $0x98] sm:$0xff] %v303
      %336 = vst [vmem:[%s172 + $0xa0] sm:$0xff] %v304
      %337 = vst [vmem:[%s172 + $0xa8] sm:$0xff] %v305
      %338 = vst [vmem:[%s172 + $0xb0] sm:$0xff] %v306
      %339 = vst [vmem:[%s172 + $0xb8] sm:$0xff] %v307
      %340 = vst [vmem:[%s172 + $0xc0] sm:$0xff] %v308
      %341 = vst [vmem:[%s172 + $0xc8] sm:$0xff] %v309
      %342 = vst [vmem:[%s172 + $0xd0] sm:$0xff] %v310
      %343 = vst [vmem:[%s172 + $0xd8] sm:$0xff] %v311
      %344 = vst [vmem:[%s172 + $0xe0] sm:$0xff] %v312
      %345 = vst [vmem:[%s172 + $0xe8] sm:$0xff] %v313
      %346 = vst [vmem:[%s172 + $0xf0] sm:$0xff] %v314
      %347 = vst [vmem:[%s172 + $0xf8] sm:$0xff] %v315
      %s348 = smul.u32 32, %s14
      %p349 = scmp.lt.s32.totalorder %s348, 63
      %s350 = scalar_select %p349, %s348, 63
      %s351 = smul.addr %s350, 8
      %s352 = scalar_lea.vmem %s3, %s351
      // Predicated region
      $region33: #{basic_block_forward.3} parent=31 // pred_check
        %p353 = pneg %p100
      $region34: #{basic_block_forward.3} parent=31 // pred_check_branch
        %355 = sbr.rel (%p353) target = $region36
      $region35: #{basic_block_forward.3} parent=31 // pred_region
        %s356 = smul.u32 32, %s14
      $region36: #{basic_block_forward.3} parent=31 // pred_fallthru
        _
    $region32: #{basic_block_forward.3} parent=5 // pred_fallthru
      _
    %p357 = scmp.le.s32.totalorder 2, %s9
    // Predicated region
    $region37: #{basic_block_forward.3} parent=5 // pred_check
      %p358 = pneg %p357
    $region38: #{basic_block_forward.3} parent=5 // pred_check_branch
      %360 = sbr.rel (%p358) target = $region40
    $region39: #{basic_block_forward.3} parent=5 // pred_region
      %s361 = ssub.s32 %s9, 2
      // Predicated region
      $region41: #{basic_block_forward.3} parent=39 // pred_check
        %p362 = pneg %p106
      $region42: #{basic_block_forward.3} parent=39 // pred_check_branch
        %364 = sbr.rel (%p362) target = $region44
      $region43: #{basic_block_forward.3} parent=39 // pred_region
        %s365 = smul.u32 32, %s15
        %p366 = scmp.lt.s32.totalorder %s365, 63
        %s367 = scalar_select %p366, %s365, 63
        %s368 = smul.addr %s367, 8
        %s369 = scalar_lea.vmem %s3, %s368
      $region44: #{basic_block_forward.3} parent=39 // pred_fallthru
        _
    $region40: #{basic_block_forward.3} parent=5 // pred_fallthru
      _
  $region6: #{basic_block_forward.3} parent=0 // loop_footer
    %s13 = sadd.s32 1, %s9
  $region7: #{basic_block_forward.3} parent=0 // loop_footer_branch
    %8 = sbr.rel target = $region3
  $region8: #{basic_block_forward.3} parent=0 // loop_exit
    _

// kernel: basic_block_forward.2
$region0: #{basic_block_forward.2}
  #allocation0 [shape = 'u32[]', space=smem, size = 0x4, offset = 0x4, fixed_abs, tag = 'smem constant byte address 0x4 - core index']
  #allocation1 [shape = 'u32[144,128]{1,0:T(1,128)}', space=vmem, size = 0x12000, scoped, tag = 'internal scratch']
  %s0 = inlined_call_operand.vmem [shape: bf16[3,32,18,4], index: 0, kind: input, shape index: {}]
  %s1 = inlined_call_operand.vmem [shape: bf16[9,4,128], index: 1, kind: input, shape index: {}]
  %s2 = inlined_call_operand.vmem [shape: f32[512,128], index: 2, kind: output, shape index: {0}]
  %s3 = inlined_call_operand.vmem [shape: f32[16,128], index: 3, kind: output, shape index: {1}]
  %s4 = inlined_call_operand.vmem [shape: f32[16,128], index: 4, kind: output, shape index: {2}]
  %5 = xla_tuple %s2, %s3, %s4
  %s6 = sld [smem:[#allocation0]]
  $region98: #{basic_block_forward.2} parent=0
    _
  %s8 = ssub.s32 1, %s6
  %s9 = scalar_select 0, %s8, %s6
  $region1: #{basic_block_forward.2} parent=0
    #allocation2 [shape = 'u8[589824]{0}', space=vmem, size = 0x90000, scoped, tag = 'input window, operand 0']
    loop: start=0, step=1, limit=4
    $region2: #{basic_block_forward.2} parent=1 // loop_pre_header
      _
    $region3: #{basic_block_forward.2} parent=1 // loop_header
      %s11 = sphi 0, %s15
      %p12 = scmp.ge.s32.totalorder %s11, 4
      %s21 = sphi 0, %s23
      %s24 = sphi 0, %s21
      %s25 = sphi 0, %s24
      %s41 = sphi 0, %s25
      %s45 = sphi 0, %s45
      %s47 = sphi 0, %s45
      %s48 = sphi 0, %s47
      %s62 = sphi 0, %s48
      %s68 = sphi 0, %s70
      %s71 = sphi 0, %s68
      %s72 = sphi 0, %s71
      %s88 = sphi 0, %s72
      %s94 = sphi 0, %s96
      %s97 = sphi 0, %s94
      %s98 = sphi 0, %s97
      %s114 = sphi 0, %s98
      %s120 = sphi 0, %s122
      %s123 = sphi 0, %s120
      %s124 = sphi 0, %s123
      %s140 = sphi 0, %s124
    $region4: #{basic_block_forward.2} parent=1 // loop_header_branch
      %14 = sbr.rel (%p12) target = $region8
    $region5: #{basic_block_forward.2} parent=1 // loop_body
      %s16 = ssub.s32 %s11, 1
      %s17 = ssub.s32 %s11, 2
      %s18 = sadd.s32 %s11, 1
      %s19 = ssub.s32 %s11, %s18
      %p20 = scmp.eq.s32.totalorder %s19, 0
      %s22 = sadd.s32 %s21, 1
      %s23 = scalar_select %p20, %s21, %s22
      %p26 = pneg %p20
      %p27 = scmp.eq.s32.totalorder %s11, 1
      %p28 = por %p26, %p27
      %p29 = scmp.ne.s32.totalorder %s21, %s24
      %p30 = scmp.eq.s32.totalorder %s11, 0
      %p31 = por %p29, %p30
      %p32 = scmp.ne.s32.totalorder %s21, %s24
      %p33 = scmp.eq.s32.totalorder %s16, 1
      %p34 = por %p32, %p33
      %p35 = scmp.ne.s32.totalorder %s24, %s25
      %p36 = scmp.eq.s32.totalorder %s16, 0
      %p37 = por %p35, %p36
      %p38 = scmp.ne.s32.totalorder %s24, %s25
      %p39 = scmp.eq.s32.totalorder %s17, 1
      %p40 = por %p38, %p39
      %p42 = scmp.ne.s32.totalorder %s25, %s41
      %p43 = scmp.eq.s32.totalorder %s17, 0
      %p44 = por %p42, %p43
      %s46 = sadd.s32 %s45, 1
      %p49 = scmp.eq.s32.totalorder %s11, 1
      %p50 = scmp.ne.s32.totalorder %s45, %s47
      %p51 = scmp.eq.s32.totalorder %s11, 0
      %p52 = por %p50, %p51
      %p53 = scmp.ne.s32.totalorder %s45, %s47
      %p54 = scmp.eq.s32.totalorder %s16, 1
      %p55 = por %p53, %p54
      %p56 = scmp.ne.s32.totalorder %s47, %s48
      %p57 = scmp.eq.s32.totalorder %s16, 0
      %p58 = por %p56, %p57
      %p59 = scmp.ne.s32.totalorder %s47, %s48
      %p60 = scmp.eq.s32.totalorder %s17, 1
      %p61 = por %p59, %p60
      %p63 = scmp.ne.s32.totalorder %s48, %s62
      %p64 = scmp.eq.s32.totalorder %s17, 0
      %p65 = por %p63, %p64
      %s66 = ssub.s32 %s11, %s18
      %p67 = scmp.eq.s32.totalorder %s66, 0
      %s69 = sadd.s32 %s68, 1
      %s70 = scalar_select %p67, %s68, %s69
      %p73 = pneg %p67
      %p74 = scmp.eq.s32.totalorder %s11, 1
      %p75 = por %p73, %p74
      %p76 = scmp.ne.s32.totalorder %s68, %s71
      %p77 = scmp.eq.s32.totalorder %s11, 0
      %p78 = por %p76, %p77
      %p79 = scmp.ne.s32.totalorder %s68, %s71
      %p80 = scmp.eq.s32.totalorder %s16, 1
      %p81 = por %p79, %p80
      %p82 = scmp.ne.s32.totalorder %s71, %s72
      %p83 = scmp.eq.s32.totalorder %s16, 0
      %p84 = por %p82, %p83
      %p85 = scmp.ne.s32.totalorder %s71, %s72
      %p86 = scmp.eq.s32.totalorder %s17, 1
      %p87 = por %p85, %p86
      %p89 = scmp.ne.s32.totalorder %s72, %s88
      %p90 = scmp.eq.s32.totalorder %s17, 0
      %p91 = por %p89, %p90
      %s92 = ssub.s32 %s11, %s18
      %p93 = scmp.eq.s32.totalorder %s92, 0
      %s95 = sadd.s32 %s94, 1
      %s96 = scalar_select %p93, %s94, %s95
      %p99 = pneg %p93
      %p100 = scmp.eq.s32.totalorder %s11, 1
      %p101 = por %p99, %p100
      %p102 = scmp.ne.s32.totalorder %s94, %s97
      %p103 = scmp.eq.s32.totalorder %s11, 0
      %p104 = por %p102, %p103
      %p105 = scmp.ne.s32.totalorder %s94, %s97
      %p106 = scmp.eq.s32.totalorder %s16, 1
      %p107 = por %p105, %p106
      %p108 = scmp.ne.s32.totalorder %s97, %s98
      %p109 = scmp.eq.s32.totalorder %s16, 0
      %p110 = por %p108, %p109
      %p111 = scmp.ne.s32.totalorder %s97, %s98
      %p112 = scmp.eq.s32.totalorder %s17, 1
      %p113 = por %p111, %p112
      %p115 = scmp.ne.s32.totalorder %s98, %s114
      %p116 = scmp.eq.s32.totalorder %s17, 0
      %p117 = por %p115, %p116
      %s118 = ssub.s32 %s11, %s18
      %p119 = scmp.eq.s32.totalorder %s118, 0
      %s121 = sadd.s32 %s120, 1
      %s122 = scalar_select %p119, %s120, %s121
      %p125 = pneg %p119
      %p126 = scmp.eq.s32.totalorder %s11, 1
      %p127 = por %p125, %p126
      %p128 = scmp.ne.s32.totalorder %s120, %s123
      %p129 = scmp.eq.s32.totalorder %s11, 0
      %p130 = por %p128, %p129
      %p131 = scmp.ne.s32.totalorder %s120, %s123
      %p132 = scmp.eq.s32.totalorder %s16, 1
      %p133 = por %p131, %p132
      %p134 = scmp.ne.s32.totalorder %s123, %s124
      %p135 = scmp.eq.s32.totalorder %s16, 0
      %p136 = por %p134, %p135
      %p137 = scmp.ne.s32.totalorder %s123, %s124
      %p138 = scmp.eq.s32.totalorder %s17, 1
      %p139 = por %p137, %p138
      %p141 = scmp.ne.s32.totalorder %s124, %s140
      %p142 = scmp.eq.s32.totalorder %s17, 0
      %p143 = por %p141, %p142
      %p144 = scmp.le.s32.totalorder 1, %s11
      %p145 = scmp.lt.s32.totalorder %s11, 3
      %p146 = pnand %p144, %p145
      %p147 = pneg %p146
      // Predicated region
      $region9: #{basic_block_forward.2} parent=5 // pred_check
        _
      $region10: #{basic_block_forward.2} parent=5 // pred_check_branch
        %149 = sbr.rel (%p146) target = $region12
      $region11: #{basic_block_forward.2} parent=5 // pred_region
        %s150 = ssub.s32 %s11, 1
        // Predicated region
        $region13: #{basic_block_forward.2} parent=11 // pred_check
          %p151 = pneg %p58
        $region14: #{basic_block_forward.2} parent=11 // pred_check_branch
          %153 = sbr.rel (%p151) target = $region16
        $region15: #{basic_block_forward.2} parent=11 // pred_region
          _
        $region16: #{basic_block_forward.2} parent=11 // pred_fallthru
          _
      $region12: #{basic_block_forward.2} parent=5 // pred_fallthru
        _
      %p154 = scmp.lt.s32.totalorder %s11, 2
      // Predicated region
      $region17: #{basic_block_forward.2} parent=5 // pred_check
        %p155 = pneg %p154
      $region18: #{basic_block_forward.2} parent=5 // pred_check_branch
        %157 = sbr.rel (%p155) target = $region20
      $region19: #{basic_block_forward.2} parent=5 // pred_region
        // Predicated region
        $region21: #{basic_block_forward.2} parent=19 // pred_check
          %p158 = pneg %p31
        $region22: #{basic_block_forward.2} parent=19 // pred_check_branch
          %160 = sbr.rel (%p158) target = $region24
        $region23: #{basic_block_forward.2} parent=19 // pred_region
          %s161 = sand.u32 %s21, 1
          %s162 = sand.u32 %s21, 1
          %s163 = smul.addr %s162, 576
          %s164 = scalar_lea.vmem [#allocation2], %s163
          %s165 = smul.u32 16, %s11
          %s166 = smul.addr %s165, 3
          %s167 = smul.addr %s166, 4
          %s168 = scalar_lea.vmem %s0, %s167
          // Predicated region
          $region25: #{basic_block_forward.2} parent=23 // pred_check
            _
          $region26: #{basic_block_forward.2} parent=23 // pred_check_branch
            %170 = sbr.rel (0) target = $region28
          $region27: #{basic_block_forward.2} parent=23 // pred_region
            // Predicated region
            $region29: #{basic_block_forward.2} parent=27 // pred_check
              _
            $region30: #{basic_block_forward.2} parent=27 // pred_check_branch
              %172 = sbr.rel target = $region32
            $region31: #{basic_block_forward.2} parent=27 // pred_region
              // Predicated region
              $region44: #{basic_block_forward.2} parent=31 // pred_check
                _
              $region45: #{basic_block_forward.2} parent=31 // pred_check_branch
                %474 = sbr.rel (0) target = $region47
              $region46: #{basic_block_forward.2} parent=31 // pred_region
                loop: start=0, step=1, limit=1
                $region48: #{basic_block_forward.2} parent=46 // loop_pre_header
                  _
                $region49: #{basic_block_forward.2} parent=46 // loop_header
                  %s476 = sphi 0, %s480
                  %p477 = scmp.ge.s32.totalorder %s476, 1
                  %s481 = sphi %s168, %s168
                  %s482 = sphi %s164, %s164
                $region50: #{basic_block_forward.2} parent=46 // loop_header_branch
                  %479 = sbr.rel (%p477) target = $region54
                $region51: #{basic_block_forward.2} parent=46 // loop_body
                  _
                $region52: #{basic_block_forward.2} parent=46 // loop_footer
                  %s480 = sadd.s32 1, %s476
                $region53: #{basic_block_forward.2} parent=46 // loop_footer_branch
                  %475 = sbr.rel target = $region49
                $region54: #{basic_block_forward.2} parent=46 // loop_exit
                  _
                %s484 = ssub.s32 16, 1
                loop: start=0, step=1, limit=1
                $region55: #{basic_block_forward.2} parent=46 // loop_pre_header
                  _
                $region56: #{basic_block_forward.2} parent=46 // loop_header
                  %s486 = sphi 0, %s490
                  %p487 = scmp.ge.s32.totalorder %s486, 1
                  %s491 = sphi %s168, %s168
                  %s492 = sphi %s164, %s164
                $region57: #{basic_block_forward.2} parent=46 // loop_header_branch
                  %489 = sbr.rel (%p487) target = $region61
                $region58: #{basic_block_forward.2} parent=46 // loop_body
                  %v493 = vld [vmem:[%s491] sm:%s484]
                  %494 = vst [vmem:[%s492] sm:%s484] %v493
                  %v495 = vld [vmem:[%s491 + $0x4] sm:%s484]
                  %496 = vst [vmem:[%s492 + $0x4] sm:%s484] %v495
                  %v497 = vld [vmem:[%s491 + $0x8] sm:%s484]
                  %498 = vst [vmem:[%s492 + $0x8] sm:%s484] %v497
                  %v499 = vld [vmem:[%s491 + $0xc] sm:%s484]
                  %500 = vst [vmem:[%s492 + $0xc] sm:%s484] %v499
                  %v501 = vld [vmem:[%s491 + $0x10] sm:%s484]
                  %502 = vst [vmem:[%s492 + $0x10] sm:%s484] %v501
                  %v503 = vld [vmem:[%s491 + $0x14] sm:%s484]
                  %504 = vst [vmem:[%s492 + $0x14] sm:%s484] %v503
                  %v505 = vld [vmem:[%s491 + $0x18] sm:%s484]
                  %506 = vst [vmem:[%s492 + $0x18] sm:%s484] %v505
                  %v507 = vld [vmem:[%s491 + $0x1c] sm:%s484]
                  %508 = vst [vmem:[%s492 + $0x1c] sm:%s484] %v507
                  %v509 = vld [vmem:[%s491 + $0x20] sm:%s484]
                  %510 = vst [vmem:[%s492 + $0x20] sm:%s484] %v509
                  %v511 = vld [vmem:[%s491 + $0x24] sm:%s484]
                  %512 = vst [vmem:[%s492 + $0x24] sm:%s484] %v511
                  %v513 = vld [vmem:[%s491 + $0x28] sm:%s484]
                  %514 = vst [vmem:[%s492 + $0x28] sm:%s484] %v513
                  %v515 = vld [vmem:[%s491 + $0x2c] sm:%s484]
                  %516 = vst [vmem:[%s492 + $0x2c] sm:%s484] %v515
                  %v517 = vld [vmem:[%s491 + $0x30] sm:%s484]
                  %518 = vst [vmem:[%s492 + $0x30] sm:%s484] %v517
                  %v519 = vld [vmem:[%s491 + $0x34] sm:%s484]
                  %520 = vst [vmem:[%s492 + $0x34] sm:%s484] %v519
                  %v521 = vld [vmem:[%s491 + $0x38] sm:%s484]
                  %522 = vst [vmem:[%s492 + $0x38] sm:%s484] %v521
                  %v523 = vld [vmem:[%s491 + $0x3c] sm:%s484]
                  %524 = vst [vmem:[%s492 + $0x3c] sm:%s484] %v523
                  %v525 = vld [vmem:[%s491 + $0x40] sm:%s484]
                  %526 = vst [vmem:[%s492 + $0x40] sm:%s484] %v525
                  %v527 = vld [vmem:[%s491 + $0x44] sm:%s484]
                  %528 = vst [vmem:[%s492 + $0x44] sm:%s484] %v527
                  %v529 = vld [vmem:[%s491 + $0x48] sm:%s484]
                  %530 = vst [vmem:[%s492 + $0x48] sm:%s484] %v529
                  %v531 = vld [vmem:[%s491 + $0x4c] sm:%s484]
                  %532 = vst [vmem:[%s492 + $0x4c] sm:%s484] %v531
                  %v533 = vld [vmem:[%s491 + $0x50] sm:%s484]
                  %534 = vst [vmem:[%s492 + $0x50] sm:%s484] %v533
                  %v535 = vld [vmem:[%s491 + $0x54] sm:%s484]
                  %536 = vst [vmem:[%s492 + $0x54] sm:%s484] %v535
                  %v537 = vld [vmem:[%s491 + $0x58] sm:%s484]
                  %538 = vst [vmem:[%s492 + $0x58] sm:%s484] %v537
                  %v539 = vld [vmem:[%s491 + $0x5c] sm:%s484]
                  %540 = vst [vmem:[%s492 + $0x5c] sm:%s484] %v539
                  %v541 = vld [vmem:[%s491 + $0x60] sm:%s484]
                  %542 = vst [vmem:[%s492 + $0x60] sm:%s484] %v541
                  %v543 = vld [vmem:[%s491 + $0x64] sm:%s484]
                  %544 = vst [vmem:[%s492 + $0x64] sm:%s484] %v543
                  %v545 = vld [vmem:[%s491 + $0x68] sm:%s484]
                  %546 = vst [vmem:[%s492 + $0x68] sm:%s484] %v545
                  %v547 = vld [vmem:[%s491 + $0x6c] sm:%s484]
                  %548 = vst [vmem:[%s492 + $0x6c] sm:%s484] %v547
                  %v549 = vld [vmem:[%s491 + $0x70] sm:%s484]
                  %550 = vst [vmem:[%s492 + $0x70] sm:%s484] %v549
                  %v551 = vld [vmem:[%s491 + $0x74] sm:%s484]
                  %552 = vst [vmem:[%s492 + $0x74] sm:%s484] %v551
                  %v553 = vld [vmem:[%s491 + $0x78] sm:%s484]
                  %554 = vst [vmem:[%s492 + $0x78] sm:%s484] %v553
                  %v555 = vld [vmem:[%s491 + $0x7c] sm:%s484]
                  %556 = vst [vmem:[%s492 + $0x7c] sm:%s484] %v555
                  %v557 = vld [vmem:[%s491 + $0x80] sm:%s484]
                  %558 = vst [vmem:[%s492 + $0x80] sm:%s484] %v557
                  %v559 = vld [vmem:[%s491 + $0x84] sm:%s484]
                  %560 = vst [vmem:[%s492 + $0x84] sm:%s484] %v559
                  %v561 = vld [vmem:[%s491 + $0x88] sm:%s484]
                  %562 = vst [vmem:[%s492 + $0x88] sm:%s484] %v561
                  %v563 = vld [vmem:[%s491 + $0x8c] sm:%s484]
                  %564 = vst [vmem:[%s492 + $0x8c] sm:%s484] %v563
                  %v565 = vld [vmem:[%s491 + $0x90] sm:%s484]
                  %566 = vst [vmem:[%s492 + $0x90] sm:%s484] %v565
                  %v567 = vld [vmem:[%s491 + $0x94] sm:%s484]
                  %568 = vst [vmem:[%s492 + $0x94] sm:%s484] %v567
                  %v569 = vld [vmem:[%s491 + $0x98] sm:%s484]
                  %570 = vst [vmem:[%s492 + $0x98] sm:%s484] %v569
                  %v571 = vld [vmem:[%s491 + $0x9c] sm:%s484]
                  %572 = vst [vmem:[%s492 + $0x9c] sm:%s484] %v571
                  %v573 = vld [vmem:[%s491 + $0xa0] sm:%s484]
                  %574 = vst [vmem:[%s492 + $0xa0] sm:%s484] %v573
                  %v575 = vld [vmem:[%s491 + $0xa4] sm:%s484]
                  %576 = vst [vmem:[%s492 + $0xa4] sm:%s484] %v575
                  %v577 = vld [vmem:[%s491 + $0xa8] sm:%s484]
                  %578 = vst [vmem:[%s492 + $0xa8] sm:%s484] %v577
                  %v579 = vld [vmem:[%s491 + $0xac] sm:%s484]
                  %580 = vst [vmem:[%s492 + $0xac] sm:%s484] %v579
                  %v581 = vld [vmem:[%s491 + $0xb0] sm:%s484]
                  %582 = vst [vmem:[%s492 + $0xb0] sm:%s484] %v581
                  %v583 = vld [vmem:[%s491 + $0xb4] sm:%s484]
                  %584 = vst [vmem:[%s492 + $0xb4] sm:%s484] %v583
                  %v585 = vld [vmem:[%s491 + $0xb8] sm:%s484]
                  %586 = vst [vmem:[%s492 + $0xb8] sm:%s484] %v585
                  %v587 = vld [vmem:[%s491 + $0xbc] sm:%s484]
                  %588 = vst [vmem:[%s492 + $0xbc] sm:%s484] %v587
                  %v589 = vld [vmem:[%s491 + $0x180] sm:%s484]
                  %590 = vst [vmem:[%s492 + $0xc0] sm:%s484] %v589
                  %v591 = vld [vmem:[%s491 + $0x184] sm:%s484]
                  %592 = vst [vmem:[%s492 + $0xc4] sm:%s484] %v591
                  %v593 = vld [vmem:[%s491 + $0x188] sm:%s484]
                  %594 = vst [vmem:[%s492 + $0xc8] sm:%s484] %v593
                  %v595 = vld [vmem:[%s491 + $0x18c] sm:%s484]
                  %596 = vst [vmem:[%s492 + $0xcc] sm:%s484] %v595
                  %v597 = vld [vmem:[%s491 + $0x190] sm:%s484]
                  %598 = vst [vmem:[%s492 + $0xd0] sm:%s484] %v597
                  %v599 = vld [vmem:[%s491 + $0x194] sm:%s484]
                  %600 = vst [vmem:[%s492 + $0xd4] sm:%s484] %v599
                  %v601 = vld [vmem:[%s491 + $0x198] sm:%s484]
                  %602 = vst [vmem:[%s492 + $0xd8] sm:%s484] %v601
                  %v603 = vld [vmem:[%s491 + $0x19c] sm:%s484]
                  %604 = vst [vmem:[%s492 + $0xdc] sm:%s484] %v603
                  %v605 = vld [vmem:[%s491 + $0x1a0] sm:%s484]
                  %606 = vst [vmem:[%s492 + $0xe0] sm:%s484] %v605
                  %v607 = vld [vmem:[%s491 + $0x1a4] sm:%s484]
                  %608 = vst [vmem:[%s492 + $0xe4] sm:%s484] %v607
                  %v609 = vld [vmem:[%s491 + $0x1a8] sm:%s484]
                  %610 = vst [vmem:[%s492 + $0xe8] sm:%s484] %v609
                  %v611 = vld [vmem:[%s491 + $0x1ac] sm:%s484]
                  %612 = vst [vmem:[%s492 + $0xec] sm:%s484] %v611
                  %v613 = vld [vmem:[%s491 + $0x1b0] sm:%s484]
                  %614 = vst [vmem:[%s492 + $0xf0] sm:%s484] %v613
                  %v615 = vld [vmem:[%s491 + $0x1b4] sm:%s484]
                  %616 = vst [vmem:[%s492 + $0xf4] sm:%s484] %v615
                  %v617 = vld [vmem:[%s491 + $0x1b8] sm:%s484]
                  %618 = vst [vmem:[%s492 + $0xf8] sm:%s484] %v617
                  %v619 = vld [vmem:[%s491 + $0x1bc] sm:%s484]
                  %620 = vst [vmem:[%s492 + $0xfc] sm:%s484] %v619
                  %v621 = vld [vmem:[%s491 + $0x1c0] sm:%s484]
                  %622 = vst [vmem:[%s492 + $0x100] sm:%s484] %v621
                  %v623 = vld [vmem:[%s491 + $0x1c4] sm:%s484]
                  %624 = vst [vmem:[%s492 + $0x104] sm:%s484] %v623
                  %v625 = vld [vmem:[%s491 + $0x1c8] sm:%s484]
                  %626 = vst [vmem:[%s492 + $0x108] sm:%s484] %v625
                  %v627 = vld [vmem:[%s491 + $0x1cc] sm:%s484]
                  %628 = vst [vmem:[%s492 + $0x10c] sm:%s484] %v627
                  %v629 = vld [vmem:[%s491 + $0x1d0] sm:%s484]
                  %630 = vst [vmem:[%s492 + $0x110] sm:%s484] %v629
                  %v631 = vld [vmem:[%s491 + $0x1d4] sm:%s484]
                  %632 = vst [vmem:[%s492 + $0x114] sm:%s484] %v631
                  %v633 = vld [vmem:[%s491 + $0x1d8] sm:%s484]
                  %634 = vst [vmem:[%s492 + $0x118] sm:%s484] %v633
                  %v635 = vld [vmem:[%s491 + $0x1dc] sm:%s484]
                  %636 = vst [vmem:[%s492 + $0x11c] sm:%s484] %v635
                  %v637 = vld [vmem:[%s491 + $0x1e0] sm:%s484]
                  %638 = vst [vmem:[%s492 + $0x120] sm:%s484] %v637
                  %v639 = vld [vmem:[%s491 + $0x1e4] sm:%s484]
                  %640 = vst [vmem:[%s492 + $0x124] sm:%s484] %v639
                  %v641 = vld [vmem:[%s491 + $0x1e8] sm:%s484]
                  %642 = vst [vmem:[%s492 + $0x128] sm:%s484] %v641
                  %v643 = vld [vmem:[%s491 + $0x1ec] sm:%s484]
                  %644 = vst [vmem:[%s492 + $0x12c] sm:%s484] %v643
                  %v645 = vld [vmem:[%s491 + $0x1f0] sm:%s484]
                  %646 = vst [vmem:[%s492 + $0x130] sm:%s484] %v645
                  %v647 = vld [vmem:[%s491 + $0x1f4] sm:%s484]
                  %648 = vst [vmem:[%s492 + $0x134] sm:%s484] %v647
                  %v649 = vld [vmem:[%s491 + $0x1f8] sm:%s484]
                  %650 = vst [vmem:[%s492 + $0x138] sm:%s484] %v649
                  %v651 = vld [vmem:[%s491 + $0x1fc] sm:%s484]
                  %652 = vst [vmem:[%s492 + $0x13c] sm:%s484] %v651
                  %v653 = vld [vmem:[%s491 + $0x200] sm:%s484]
                  %654 = vst [vmem:[%s492 + $0x140] sm:%s484] %v653
                  %v655 = vld [vmem:[%s491 + $0x204] sm:%s484]
                  %656 = vst [vmem:[%s492 + $0x144] sm:%s484] %v655
                  %v657 = vld [vmem:[%s491 + $0x208] sm:%s484]
                  %658 = vst [vmem:[%s492 + $0x148] sm:%s484] %v657
                  %v659 = vld [vmem:[%s491 + $0x20c] sm:%s484]
                  %660 = vst [vmem:[%s492 + $0x14c] sm:%s484] %v659
                  %v661 = vld [vmem:[%s491 + $0x210] sm:%s484]
                  %662 = vst [vmem:[%s492 + $0x150] sm:%s484] %v661
                  %v663 = vld [vmem:[%s491 + $0x214] sm:%s484]
                  %664 = vst [vmem:[%s492 + $0x154] sm:%s484] %v663
                  %v665 = vld [vmem:[%s491 + $0x218] sm:%s484]
                  %666 = vst [vmem:[%s492 + $0x158] sm:%s484] %v665
                  %v667 = vld [vmem:[%s491 + $0x21c] sm:%s484]
                  %668 = vst [vmem:[%s492 + $0x15c] sm:%s484] %v667
                  %v669 = vld [vmem:[%s491 + $0x220] sm:%s484]
                  %670 = vst [vmem:[%s492 + $0x160] sm:%s484] %v669
                  %v671 = vld [vmem:[%s491 + $0x224] sm:%s484]
                  %672 = vst [vmem:[%s492 + $0x164] sm:%s484] %v671
                  %v673 = vld [vmem:[%s491 + $0x228] sm:%s484]
                  %674 = vst [vmem:[%s492 + $0x168] sm:%s484] %v673
                  %v675 = vld [vmem:[%s491 + $0x22c] sm:%s484]
                  %676 = vst [vmem:[%s492 + $0x16c] sm:%s484] %v675
                  %v677 = vld [vmem:[%s491 + $0x230] sm:%s484]
                  %678 = vst [vmem:[%s492 + $0x170] sm:%s484] %v677
                  %v679 = vld [vmem:[%s491 + $0x234] sm:%s484]
                  %680 = vst [vmem:[%s492 + $0x174] sm:%s484] %v679
                  %v681 = vld [vmem:[%s491 + $0x238] sm:%s484]
                  %682 = vst [vmem:[%s492 + $0x178] sm:%s484] %v681
                  %v683 = vld [vmem:[%s491 + $0x23c] sm:%s484]
                  %684 = vst [vmem:[%s492 + $0x17c] sm:%s484] %v683
                  %v685 = vld [vmem:[%s491 + $0x300] sm:%s484]
                  %686 = vst [vmem:[%s492 + $0x180] sm:%s484] %v685
                  %v687 = vld [vmem:[%s491 + $0x304] sm:%s484]
                  %688 = vst [vmem:[%s492 + $0x184] sm:%s484] %v687
                  %v689 = vld [vmem:[%s491 + $0x308] sm:%s484]
                  %690 = vst [vmem:[%s492 + $0x188] sm:%s484] %v689
                  %v691 = vld [vmem:[%s491 + $0x30c] sm:%s484]
                  %692 = vst [vmem:[%s492 + $0x18c] sm:%s484] %v691
                  %v693 = vld [vmem:[%s491 + $0x310] sm:%s484]
                  %694 = vst [vmem:[%s492 + $0x190] sm:%s484] %v693
                  %v695 = vld [vmem:[%s491 + $0x314] sm:%s484]
                  %696 = vst [vmem:[%s492 + $0x194] sm:%s484] %v695
                  %v697 = vld [vmem:[%s491 + $0x318] sm:%s484]
                  %698 = vst [vmem:[%s492 + $0x198] sm:%s484] %v697
                  %v699 = vld [vmem:[%s491 + $0x31c] sm:%s484]
                  %700 = vst [vmem:[%s492 + $0x19c] sm:%s484] %v699
                  %v701 = vld [vmem:[%s491 + $0x320] sm:%s484]
                  %702 = vst [vmem:[%s492 + $0x1a0] sm:%s484] %v701
                  %v703 = vld [vmem:[%s491 + $0x324] sm:%s484]
                  %704 = vst [vmem:[%s492 + $0x1a4] sm:%s484] %v703
                  %v705 = vld [vmem:[%s491 + $0x328] sm:%s484]
                  %706 = vst [vmem:[%s492 + $0x1a8] sm:%s484] %v705
                  %v707 = vld [vmem:[%s491 + $0x32c] sm:%s484]
                  %708 = vst [vmem:[%s492 + $0x1ac] sm:%s484] %v707
                  %v709 = vld [vmem:[%s491 + $0x330] sm:%s484]
                  %710 = vst [vmem:[%s492 + $0x1b0] sm:%s484] %v709
                  %v711 = vld [vmem:[%s491 + $0x334] sm:%s484]
                  %712 = vst [vmem:[%s492 + $0x1b4] sm:%s484] %v711
                  %v713 = vld [vmem:[%s491 + $0x338] sm:%s484]
                  %714 = vst [vmem:[%s492 + $0x1b8] sm:%s484] %v713
                  %v715 = vld [vmem:[%s491 + $0x33c] sm:%s484]
                  %716 = vst [vmem:[%s492 + $0x1bc] sm:%s484] %v715
                  %v717 = vld [vmem:[%s491 + $0x340] sm:%s484]
                  %718 = vst [vmem:[%s492 + $0x1c0] sm:%s484] %v717
                  %v719 = vld [vmem:[%s491 + $0x344] sm:%s484]
                  %720 = vst [vmem:[%s492 + $0x1c4] sm:%s484] %v719
                  %v721 = vld [vmem:[%s491 + $0x348] sm:%s484]
                  %722 = vst [vmem:[%s492 + $0x1c8] sm:%s484] %v721
                  %v723 = vld [vmem:[%s491 + $0x34c] sm:%s484]
                  %724 = vst [vmem:[%s492 + $0x1cc] sm:%s484] %v723
                  %v725 = vld [vmem:[%s491 + $0x350] sm:%s484]
                  %726 = vst [vmem:[%s492 + $0x1d0] sm:%s484] %v725
                  %v727 = vld [vmem:[%s491 + $0x354] sm:%s484]
                  %728 = vst [vmem:[%s492 + $0x1d4] sm:%s484] %v727
                  %v729 = vld [vmem:[%s491 + $0x358] sm:%s484]
                  %730 = vst [vmem:[%s492 + $0x1d8] sm:%s484] %v729
                  %v731 = vld [vmem:[%s491 + $0x35c] sm:%s484]
                  %732 = vst [vmem:[%s492 + $0x1dc] sm:%s484] %v731
                  %v733 = vld [vmem:[%s491 + $0x360] sm:%s484]
                  %734 = vst [vmem:[%s492 + $0x1e0] sm:%s484] %v733
                  %v735 = vld [vmem:[%s491 + $0x364] sm:%s484]
                  %736 = vst [vmem:[%s492 + $0x1e4] sm:%s484] %v735
                  %v737 = vld [vmem:[%s491 + $0x368] sm:%s484]
                  %738 = vst [vmem:[%s492 + $0x1e8] sm:%s484] %v737
                  %v739 = vld [vmem:[%s491 + $0x36c] sm:%s484]
                  %740 = vst [vmem:[%s492 + $0x1ec] sm:%s484] %v739
                  %v741 = vld [vmem:[%s491 + $0x370] sm:%s484]
                  %742 = vst [vmem:[%s492 + $0x1f0] sm:%s484] %v741
                  %v743 = vld [vmem:[%s491 + $0x374] sm:%s484]
                  %744 = vst [vmem:[%s492 + $0x1f4] sm:%s484] %v743
                  %v745 = vld [vmem:[%s491 + $0x378] sm:%s484]
                  %746 = vst [vmem:[%s492 + $0x1f8] sm:%s484] %v745
                  %v747 = vld [vmem:[%s491 + $0x37c] sm:%s484]
                  %748 = vst [vmem:[%s492 + $0x1fc] sm:%s484] %v747
                  %v749 = vld [vmem:[%s491 + $0x380] sm:%s484]
                  %750 = vst [vmem:[%s492 + $0x200] sm:%s484] %v749
                  %v751 = vld [vmem:[%s491 + $0x384] sm:%s484]
                  %752 = vst [vmem:[%s492 + $0x204] sm:%s484] %v751
                  %v753 = vld [vmem:[%s491 + $0x388] sm:%s484]
                  %754 = vst [vmem:[%s492 + $0x208] sm:%s484] %v753
                  %v755 = vld [vmem:[%s491 + $0x38c] sm:%s484]
                  %756 = vst [vmem:[%s492 + $0x20c] sm:%s484] %v755
                  %v757 = vld [vmem:[%s491 + $0x390] sm:%s484]
                  %758 = vst [vmem:[%s492 + $0x210] sm:%s484] %v757
                  %v759 = vld [vmem:[%s491 + $0x394] sm:%s484]
                  %760 = vst [vmem:[%s492 + $0x214] sm:%s484] %v759
                  %v761 = vld [vmem:[%s491 + $0x398] sm:%s484]
                  %762 = vst [vmem:[%s492 + $0x218] sm:%s484] %v761
                  %v763 = vld [vmem:[%s491 + $0x39c] sm:%s484]
                  %764 = vst [vmem:[%s492 + $0x21c] sm:%s484] %v763
                  %v765 = vld [vmem:[%s491 + $0x3a0] sm:%s484]
                  %766 = vst [vmem:[%s492 + $0x220] sm:%s484] %v765
                  %v767 = vld [vmem:[%s491 + $0x3a4] sm:%s484]
                  %768 = vst [vmem:[%s492 + $0x224] sm:%s484] %v767
                  %v769 = vld [vmem:[%s491 + $0x3a8] sm:%s484]
                  %770 = vst [vmem:[%s492 + $0x228] sm:%s484] %v769
                  %v771 = vld [vmem:[%s491 + $0x3ac] sm:%s484]
                  %772 = vst [vmem:[%s492 + $0x22c] sm:%s484] %v771
                  %v773 = vld [vmem:[%s491 + $0x3b0] sm:%s484]
                  %774 = vst [vmem:[%s492 + $0x230] sm:%s484] %v773
                  %v775 = vld [vmem:[%s491 + $0x3b4] sm:%s484]
                  %776 = vst [vmem:[%s492 + $0x234] sm:%s484] %v775
                  %v777 = vld [vmem:[%s491 + $0x3b8] sm:%s484]
                  %778 = vst [vmem:[%s492 + $0x238] sm:%s484] %v777
                  %v779 = vld [vmem:[%s491 + $0x3bc] sm:%s484]
                  %780 = vst [vmem:[%s492 + $0x23c] sm:%s484] %v779
                $region59: #{basic_block_forward.2} parent=46 // loop_footer
                  %s490 = sadd.s32 1, %s486
                $region60: #{basic_block_forward.2} parent=46 // loop_footer_branch
                  %485 = sbr.rel target = $region56
                $region61: #{basic_block_forward.2} parent=46 // loop_exit
                  _
              $region47: #{basic_block_forward.2} parent=31 // pred_fallthru
                _
            $region32: #{basic_block_forward.2} parent=27 // pred_fallthru
              _
            // Predicated region
            $region33: #{basic_block_forward.2} parent=27 // pred_check
              _
            $region34: #{basic_block_forward.2} parent=27 // pred_check_branch
              %174 = sbr.rel (0) target = $region36
            $region35: #{basic_block_forward.2} parent=27 // pred_region
              %s176 = ssub.s32 16, 1
              loop: start=0, step=1, limit=1
              $region37: #{basic_block_forward.2} parent=35 // loop_pre_header
                _
              $region38: #{basic_block_forward.2} parent=35 // loop_header
                %s178 = sphi 0, %s182
                %p179 = scmp.ge.s32.totalorder %s178, 1
                %s183 = sphi %s168, %s168
                %s184 = sphi %s164, %s164
              $region39: #{basic_block_forward.2} parent=35 // loop_header_branch
                %181 = sbr.rel (%p179) target = $region43
              $region40: #{basic_block_forward.2} parent=35 // loop_body
                %v185 = vld [vmem:[%s183] sm:%s176]
                %186 = vst [vmem:[%s184] sm:%s176] %v185
                %v187 = vld [vmem:[%s183 + $0x4] sm:%s176]
                %188 = vst [vmem:[%s184 + $0x4] sm:%s176] %v187
                %v189 = vld [vmem:[%s183 + $0x8] sm:%s176]
                %190 = vst [vmem:[%s184 + $0x8] sm:%s176] %v189
                %v191 = vld [vmem:[%s183 + $0xc] sm:%s176]
                %192 = vst [vmem:[%s184 + $0xc] sm:%s176] %v191
                %v193 = vld [vmem:[%s183 + $0x10] sm:%s176]
                %194 = vst [vmem:[%s184 + $0x10] sm:%s176] %v193
                %v195 = vld [vmem:[%s183 + $0x14] sm:%s176]
                %196 = vst [vmem:[%s184 + $0x14] sm:%s176] %v195
                %v197 = vld [vmem:[%s183 + $0x18] sm:%s176]
                %198 = vst [vmem:[%s184 + $0x18] sm:%s176] %v197
                %v199 = vld [vmem:[%s183 + $0x1c] sm:%s176]
                %200 = vst [vmem:[%s184 + $0x1c] sm:%s176] %v199
                %v201 = vld [vmem:[%s183 + $0x20] sm:%s176]
                %202 = vst [vmem:[%s184 + $0x20] sm:%s176] %v201
                %v203 = vld [vmem:[%s183 + $0x24] sm:%s176]
                %204 = vst [vmem:[%s184 + $0x24] sm:%s176] %v203
                %v205 = vld [vmem:[%s183 + $0x28] sm:%s176]
                %206 = vst [vmem:[%s184 + $0x28] sm:%s176] %v205
                %v207 = vld [vmem:[%s183 + $0x2c] sm:%s176]
                %208 = vst [vmem:[%s184 + $0x2c] sm:%s176] %v207
                %v209 = vld [vmem:[%s183 + $0x30] sm:%s176]
                %210 = vst [vmem:[%s184 + $0x30] sm:%s176] %v209
                %v211 = vld [vmem:[%s183 + $0x34] sm:%s176]
                %212 = vst [vmem:[%s184 + $0x34] sm:%s176] %v211
                %v213 = vld [vmem:[%s183 + $0x38] sm:%s176]
                %214 = vst [vmem:[%s184 + $0x38] sm:%s176] %v213
                %v215 = vld [vmem:[%s183 + $0x3c] sm:%s176]
                %216 = vst [vmem:[%s184 + $0x3c] sm:%s176] %v215
                %v217 = vld [vmem:[%s183 + $0x40] sm:%s176]
                %218 = vst [vmem:[%s184 + $0x40] sm:%s176] %v217
                %v219 = vld [vmem:[%s183 + $0x44] sm:%s176]
                %220 = vst [vmem:[%s184 + $0x44] sm:%s176] %v219
                %v221 = vld [vmem:[%s183 + $0x48] sm:%s176]
                %222 = vst [vmem:[%s184 + $0x48] sm:%s176] %v221
                %v223 = vld [vmem:[%s183 + $0x4c] sm:%s176]
                %224 = vst [vmem:[%s184 + $0x4c] sm:%s176] %v223
                %v225 = vld [vmem:[%s183 + $0x50] sm:%s176]
                %226 = vst [vmem:[%s184 + $0x50] sm:%s176] %v225
                %v227 = vld [vmem:[%s183 + $0x54] sm:%s176]
                %228 = vst [vmem:[%s184 + $0x54] sm:%s176] %v227
                %v229 = vld [vmem:[%s183 + $0x58] sm:%s176]
                %230 = vst [vmem:[%s184 + $0x58] sm:%s176] %v229
                %v231 = vld [vmem:[%s183 + $0x5c] sm:%s176]
                %232 = vst [vmem:[%s184 + $0x5c] sm:%s176] %v231
                %v233 = vld [vmem:[%s183 + $0x60] sm:%s176]
                %234 = vst [vmem:[%s184 + $0x60] sm:%s176] %v233
                %v235 = vld [vmem:[%s183 + $0x64] sm:%s176]
                %236 = vst [vmem:[%s184 + $0x64] sm:%s176] %v235
                %v237 = vld [vmem:[%s183 + $0x68] sm:%s176]
                %238 = vst [vmem:[%s184 + $0x68] sm:%s176] %v237
                %v239 = vld [vmem:[%s183 + $0x6c] sm:%s176]
                %240 = vst [vmem:[%s184 + $0x6c] sm:%s176] %v239
                %v241 = vld [vmem:[%s183 + $0x70] sm:%s176]
                %242 = vst [vmem:[%s184 + $0x70] sm:%s176] %v241
                %v243 = vld [vmem:[%s183 + $0x74] sm:%s176]
                %244 = vst [vmem:[%s184 + $0x74] sm:%s176] %v243
                %v245 = vld [vmem:[%s183 + $0x78] sm:%s176]
                %246 = vst [vmem:[%s184 + $0x78] sm:%s176] %v245
                %v247 = vld [vmem:[%s183 + $0x7c] sm:%s176]
                %248 = vst [vmem:[%s184 + $0x7c] sm:%s176] %v247
                %v249 = vld [vmem:[%s183 + $0x80] sm:%s176]
                %250 = vst [vmem:[%s184 + $0x80] sm:%s176] %v249
                %v251 = vld [vmem:[%s183 + $0x84] sm:%s176]
                %252 = vst [vmem:[%s184 + $0x84] sm:%s176] %v251
                %v253 = vld [vmem:[%s183 + $0x88] sm:%s176]
                %254 = vst [vmem:[%s184 + $0x88] sm:%s176] %v253
                %v255 = vld [vmem:[%s183 + $0x8c] sm:%s176]
                %256 = vst [vmem:[%s184 + $0x8c] sm:%s176] %v255
                %v257 = vld [vmem:[%s183 + $0x90] sm:%s176]
                %258 = vst [vmem:[%s184 + $0x90] sm:%s176] %v257
                %v259 = vld [vmem:[%s183 + $0x94] sm:%s176]
                %260 = vst [vmem:[%s184 + $0x94] sm:%s176] %v259
                %v261 = vld [vmem:[%s183 + $0x98] sm:%s176]
                %262 = vst [vmem:[%s184 + $0x98] sm:%s176] %v261
                %v263 = vld [vmem:[%s183 + $0x9c] sm:%s176]
                %264 = vst [vmem:[%s184 + $0x9c] sm:%s176] %v263
                %v265 = vld [vmem:[%s183 + $0xa0] sm:%s176]
                %266 = vst [vmem:[%s184 + $0xa0] sm:%s176] %v265
                %v267 = vld [vmem:[%s183 + $0xa4] sm:%s176]
                %268 = vst [vmem:[%s184 + $0xa4] sm:%s176] %v267
                %v269 = vld [vmem:[%s183 + $0xa8] sm:%s176]
                %270 = vst [vmem:[%s184 + $0xa8] sm:%s176] %v269
                %v271 = vld [vmem:[%s183 + $0xac] sm:%s176]
                %272 = vst [vmem:[%s184 + $0xac] sm:%s176] %v271
                %v273 = vld [vmem:[%s183 + $0xb0] sm:%s176]
                %274 = vst [vmem:[%s184 + $0xb0] sm:%s176] %v273
                %v275 = vld [vmem:[%s183 + $0xb4] sm:%s176]
                %276 = vst [vmem:[%s184 + $0xb4] sm:%s176] %v275
                %v277 = vld [vmem:[%s183 + $0xb8] sm:%s176]
                %278 = vst [vmem:[%s184 + $0xb8] sm:%s176] %v277
                %v279 = vld [vmem:[%s183 + $0xbc] sm:%s176]
                %280 = vst [vmem:[%s184 + $0xbc] sm:%s176] %v279
                %v281 = vld [vmem:[%s183 + $0x180] sm:%s176]
                %282 = vst [vmem:[%s184 + $0xc0] sm:%s176] %v281
                %v283 = vld [vmem:[%s183 + $0x184] sm:%s176]
                %284 = vst [vmem:[%s184 + $0xc4] sm:%s176] %v283
                %v285 = vld [vmem:[%s183 + $0x188] sm:%s176]
                %286 = vst [vmem:[%s184 + $0xc8] sm:%s176] %v285
                %v287 = vld [vmem:[%s183 + $0x18c] sm:%s176]
                %288 = vst [vmem:[%s184 + $0xcc] sm:%s176] %v287
                %v289 = vld [vmem:[%s183 + $0x190] sm:%s176]
                %290 = vst [vmem:[%s184 + $0xd0] sm:%s176] %v289
                %v291 = vld [vmem:[%s183 + $0x194] sm:%s176]
                %292 = vst [vmem:[%s184 + $0xd4] sm:%s176] %v291
                %v293 = vld [vmem:[%s183 + $0x198] sm:%s176]
                %294 = vst [vmem:[%s184 + $0xd8] sm:%s176] %v293
                %v295 = vld [vmem:[%s183 + $0x19c] sm:%s176]
                %296 = vst [vmem:[%s184 + $0xdc] sm:%s176] %v295
                %v297 = vld [vmem:[%s183 + $0x1a0] sm:%s176]
                %298 = vst [vmem:[%s184 + $0xe0] sm:%s176] %v297
                %v299 = vld [vmem:[%s183 + $0x1a4] sm:%s176]
                %300 = vst [vmem:[%s184 + $0xe4] sm:%s176] %v299
                %v301 = vld [vmem:[%s183 + $0x1a8] sm:%s176]
                %302 = vst [vmem:[%s184 + $0xe8] sm:%s176] %v301
                %v303 = vld [vmem:[%s183 + $0x1ac] sm:%s176]
                %304 = vst [vmem:[%s184 + $0xec] sm:%s176] %v303
                %v305 = vld [vmem:[%s183 + $0x1b0] sm:%s176]
                %306 = vst [vmem:[%s184 + $0xf0] sm:%s176] %v305
                %v307 = vld [vmem:[%s183 + $0x1b4] sm:%s176]
                %308 = vst [vmem:[%s184 + $0xf4] sm:%s176] %v307
                %v309 = vld [vmem:[%s183 + $0x1b8] sm:%s176]
                %310 = vst [vmem:[%s184 + $0xf8] sm:%s176] %v309
                %v311 = vld [vmem:[%s183 + $0x1bc] sm:%s176]
                %312 = vst [vmem:[%s184 + $0xfc] sm:%s176] %v311
                %v313 = vld [vmem:[%s183 + $0x1c0] sm:%s176]
                %314 = vst [vmem:[%s184 + $0x100] sm:%s176] %v313
                %v315 = vld [vmem:[%s183 + $0x1c4] sm:%s176]
                %316 = vst [vmem:[%s184 + $0x104] sm:%s176] %v315
                %v317 = vld [vmem:[%s183 + $0x1c8] sm:%s176]
                %318 = vst [vmem:[%s184 + $0x108] sm:%s176] %v317
                %v319 = vld [vmem:[%s183 + $0x1cc] sm:%s176]
                %320 = vst [vmem:[%s184 + $0x10c] sm:%s176] %v319
                %v321 = vld [vmem:[%s183 + $0x1d0] sm:%s176]
                %322 = vst [vmem:[%s184 + $0x110] sm:%s176] %v321
                %v323 = vld [vmem:[%s183 + $0x1d4] sm:%s176]
                %324 = vst [vmem:[%s184 + $0x114] sm:%s176] %v323
                %v325 = vld [vmem:[%s183 + $0x1d8] sm:%s176]
                %326 = vst [vmem:[%s184 + $0x118] sm:%s176] %v325
                %v327 = vld [vmem:[%s183 + $0x1dc] sm:%s176]
                %328 = vst [vmem:[%s184 + $0x11c] sm:%s176] %v327
                %v329 = vld [vmem:[%s183 + $0x1e0] sm:%s176]
                %330 = vst [vmem:[%s184 + $0x120] sm:%s176] %v329
                %v331 = vld [vmem:[%s183 + $0x1e4] sm:%s176]
                %332 = vst [vmem:[%s184 + $0x124] sm:%s176] %v331
                %v333 = vld [vmem:[%s183 + $0x1e8] sm:%s176]
                %334 = vst [vmem:[%s184 + $0x128] sm:%s176] %v333
                %v335 = vld [vmem:[%s183 + $0x1ec] sm:%s176]
                %336 = vst [vmem:[%s184 + $0x12c] sm:%s176] %v335
                %v337 = vld [vmem:[%s183 + $0x1f0] sm:%s176]
                %338 = vst [vmem:[%s184 + $0x130] sm:%s176] %v337
                %v339 = vld [vmem:[%s183 + $0x1f4] sm:%s176]
                %340 = vst [vmem:[%s184 + $0x134] sm:%s176] %v339
                %v341 = vld [vmem:[%s183 + $0x1f8] sm:%s176]
                %342 = vst [vmem:[%s184 + $0x138] sm:%s176] %v341
                %v343 = vld [vmem:[%s183 + $0x1fc] sm:%s176]
                %344 = vst [vmem:[%s184 + $0x13c] sm:%s176] %v343
                %v345 = vld [vmem:[%s183 + $0x200] sm:%s176]
                %346 = vst [vmem:[%s184 + $0x140] sm:%s176] %v345
                %v347 = vld [vmem:[%s183 + $0x204] sm:%s176]
                %348 = vst [vmem:[%s184 + $0x144] sm:%s176] %v347
                %v349 = vld [vmem:[%s183 + $0x208] sm:%s176]
                %350 = vst [vmem:[%s184 + $0x148] sm:%s176] %v349
                %v351 = vld [vmem:[%s183 + $0x20c] sm:%s176]
                %352 = vst [vmem:[%s184 + $0x14c] sm:%s176] %v351
                %v353 = vld [vmem:[%s183 + $0x210] sm:%s176]
                %354 = vst [vmem:[%s184 + $0x150] sm:%s176] %v353
                %v355 = vld [vmem:[%s183 + $0x214] sm:%s176]
                %356 = vst [vmem:[%s184 + $0x154] sm:%s176] %v355
                %v357 = vld [vmem:[%s183 + $0x218] sm:%s176]
                %358 = vst [vmem:[%s184 + $0x158] sm:%s176] %v357
                %v359 = vld [vmem:[%s183 + $0x21c] sm:%s176]
                %360 = vst [vmem:[%s184 + $0x15c] sm:%s176] %v359
                %v361 = vld [vmem:[%s183 + $0x220] sm:%s176]
                %362 = vst [vmem:[%s184 + $0x160] sm:%s176] %v361
                %v363 = vld [vmem:[%s183 + $0x224] sm:%s176]
                %364 = vst [vmem:[%s184 + $0x164] sm:%s176] %v363
                %v365 = vld [vmem:[%s183 + $0x228] sm:%s176]
                %366 = vst [vmem:[%s184 + $0x168] sm:%s176] %v365
                %v367 = vld [vmem:[%s183 + $0x22c] sm:%s176]
                %368 = vst [vmem:[%s184 + $0x16c] sm:%s176] %v367
                %v369 = vld [vmem:[%s183 + $0x230] sm:%s176]
                %370 = vst [vmem:[%s184 + $0x170] sm:%s176] %v369
                %v371 = vld [vmem:[%s183 + $0x234] sm:%s176]
                %372 = vst [vmem:[%s184 + $0x174] sm:%s176] %v371
                %v373 = vld [vmem:[%s183 + $0x238] sm:%s176]
                %374 = vst [vmem:[%s184 + $0x178] sm:%s176] %v373
                %v375 = vld [vmem:[%s183 + $0x23c] sm:%s176]
                %376 = vst [vmem:[%s184 + $0x17c] sm:%s176] %v375
                %v377 = vld [vmem:[%s183 + $0x300] sm:%s176]
                %378 = vst [vmem:[%s184 + $0x180] sm:%s176] %v377
                %v379 = vld [vmem:[%s183 + $0x304] sm:%s176]
                %380 = vst [vmem:[%s184 + $0x184] sm:%s176] %v379
                %v381 = vld [vmem:[%s183 + $0x308] sm:%s176]
                %382 = vst [vmem:[%s184 + $0x188] sm:%s176] %v381
                %v383 = vld [vmem:[%s183 + $0x30c] sm:%s176]
                %384 = vst [vmem:[%s184 + $0x18c] sm:%s176] %v383
                %v385 = vld [vmem:[%s183 + $0x310] sm:%s176]
                %386 = vst [vmem:[%s184 + $0x190] sm:%s176] %v385
                %v387 = vld [vmem:[%s183 + $0x314] sm:%s176]
                %388 = vst [vmem:[%s184 + $0x194] sm:%s176] %v387
                %v389 = vld [vmem:[%s183 + $0x318] sm:%s176]
                %390 = vst [vmem:[%s184 + $0x198] sm:%s176] %v389
                %v391 = vld [vmem:[%s183 + $0x31c] sm:%s176]
                %392 = vst [vmem:[%s184 + $0x19c] sm:%s176] %v391
                %v393 = vld [vmem:[%s183 + $0x320] sm:%s176]
                %394 = vst [vmem:[%s184 + $0x1a0] sm:%s176] %v393
                %v395 = vld [vmem:[%s183 + $0x324] sm:%s176]
                %396 = vst [vmem:[%s184 + $0x1a4] sm:%s176] %v395
                %v397 = vld [vmem:[%s183 + $0x328] sm:%s176]
                %398 = vst [vmem:[%s184 + $0x1a8] sm:%s176] %v397
                %v399 = vld [vmem:[%s183 + $0x32c] sm:%s176]
                %400 = vst [vmem:[%s184 + $0x1ac] sm:%s176] %v399
                %v401 = vld [vmem:[%s183 + $0x330] sm:%s176]
                %402 = vst [vmem:[%s184 + $0x1b0] sm:%s176] %v401
                %v403 = vld [vmem:[%s183 + $0x334] sm:%s176]
                %404 = vst [vmem:[%s184 + $0x1b4] sm:%s176] %v403
                %v405 = vld [vmem:[%s183 + $0x338] sm:%s176]
                %406 = vst [vmem:[%s184 + $0x1b8] sm:%s176] %v405
                %v407 = vld [vmem:[%s183 + $0x33c] sm:%s176]
                %408 = vst [vmem:[%s184 + $0x1bc] sm:%s176] %v407
                %v409 = vld [vmem:[%s183 + $0x340] sm:%s176]
                %410 = vst [vmem:[%s184 + $0x1c0] sm:%s176] %v409
                %v411 = vld [vmem:[%s183 + $0x344] sm:%s176]
                %412 = vst [vmem:[%s184 + $0x1c4] sm:%s176] %v411
                %v413 = vld [vmem:[%s183 + $0x348] sm:%s176]
                %414 = vst [vmem:[%s184 + $0x1c8] sm:%s176] %v413
                %v415 = vld [vmem:[%s183 + $0x34c] sm:%s176]
                %416 = vst [vmem:[%s184 + $0x1cc] sm:%s176] %v415
                %v417 = vld [vmem:[%s183 + $0x350] sm:%s176]
                %418 = vst [vmem:[%s184 + $0x1d0] sm:%s176] %v417
                %v419 = vld [vmem:[%s183 + $0x354] sm:%s176]
                %420 = vst [vmem:[%s184 + $0x1d4] sm:%s176] %v419
                %v421 = vld [vmem:[%s183 + $0x358] sm:%s176]
                %422 = vst [vmem:[%s184 + $0x1d8] sm:%s176] %v421
                %v423 = vld [vmem:[%s183 + $0x35c] sm:%s176]
                %424 = vst [vmem:[%s184 + $0x1dc] sm:%s176] %v423
                %v425 = vld [vmem:[%s183 + $0x360] sm:%s176]
                %426 = vst [vmem:[%s184 + $0x1e0] sm:%s176] %v425
                %v427 = vld [vmem:[%s183 + $0x364] sm:%s176]
                %428 = vst [vmem:[%s184 + $0x1e4] sm:%s176] %v427
                %v429 = vld [vmem:[%s183 + $0x368] sm:%s176]
                %430 = vst [vmem:[%s184 + $0x1e8] sm:%s176] %v429
                %v431 = vld [vmem:[%s183 + $0x36c] sm:%s176]
                %432 = vst [vmem:[%s184 + $0x1ec] sm:%s176] %v431
                %v433 = vld [vmem:[%s183 + $0x370] sm:%s176]
                %434 = vst [vmem:[%s184 + $0x1f0] sm:%s176] %v433
                %v435 = vld [vmem:[%s183 + $0x374] sm:%s176]
                %436 = vst [vmem:[%s184 + $0x1f4] sm:%s176] %v435
                %v437 = vld [vmem:[%s183 + $0x378] sm:%s176]
                %438 = vst [vmem:[%s184 + $0x1f8] sm:%s176] %v437
                %v439 = vld [vmem:[%s183 + $0x37c] sm:%s176]
                %440 = vst [vmem:[%s184 + $0x1fc] sm:%s176] %v439
                %v441 = vld [vmem:[%s183 + $0x380] sm:%s176]
                %442 = vst [vmem:[%s184 + $0x200] sm:%s176] %v441
                %v443 = vld [vmem:[%s183 + $0x384] sm:%s176]
                %444 = vst [vmem:[%s184 + $0x204] sm:%s176] %v443
                %v445 = vld [vmem:[%s183 + $0x388] sm:%s176]
                %446 = vst [vmem:[%s184 + $0x208] sm:%s176] %v445
                %v447 = vld [vmem:[%s183 + $0x38c] sm:%s176]
                %448 = vst [vmem:[%s184 + $0x20c] sm:%s176] %v447
                %v449 = vld [vmem:[%s183 + $0x390] sm:%s176]
                %450 = vst [vmem:[%s184 + $0x210] sm:%s176] %v449
                %v451 = vld [vmem:[%s183 + $0x394] sm:%s176]
                %452 = vst [vmem:[%s184 + $0x214] sm:%s176] %v451
                %v453 = vld [vmem:[%s183 + $0x398] sm:%s176]
                %454 = vst [vmem:[%s184 + $0x218] sm:%s176] %v453
                %v455 = vld [vmem:[%s183 + $0x39c] sm:%s176]
                %456 = vst [vmem:[%s184 + $0x21c] sm:%s176] %v455
                %v457 = vld [vmem:[%s183 + $0x3a0] sm:%s176]
                %458 = vst [vmem:[%s184 + $0x220] sm:%s176] %v457
                %v459 = vld [vmem:[%s183 + $0x3a4] sm:%s176]
                %460 = vst [vmem:[%s184 + $0x224] sm:%s176] %v459
                %v461 = vld [vmem:[%s183 + $0x3a8] sm:%s176]
                %462 = vst [vmem:[%s184 + $0x228] sm:%s176] %v461
                %v463 = vld [vmem:[%s183 + $0x3ac] sm:%s176]
                %464 = vst [vmem:[%s184 + $0x22c] sm:%s176] %v463
                %v465 = vld [vmem:[%s183 + $0x3b0] sm:%s176]
                %466 = vst [vmem:[%s184 + $0x230] sm:%s176] %v465
                %v467 = vld [vmem:[%s183 + $0x3b4] sm:%s176]
                %468 = vst [vmem:[%s184 + $0x234] sm:%s176] %v467
                %v469 = vld [vmem:[%s183 + $0x3b8] sm:%s176]
                %470 = vst [vmem:[%s184 + $0x238] sm:%s176] %v469
                %v471 = vld [vmem:[%s183 + $0x3bc] sm:%s176]
                %472 = vst [vmem:[%s184 + $0x23c] sm:%s176] %v471
              $region41: #{basic_block_forward.2} parent=35 // loop_footer
                %s182 = sadd.s32 1, %s178
              $region42: #{basic_block_forward.2} parent=35 // loop_footer_branch
                %177 = sbr.rel target = $region38
              $region43: #{basic_block_forward.2} parent=35 // loop_exit
                _
            $region36: #{basic_block_forward.2} parent=27 // pred_fallthru
              _
          $region28: #{basic_block_forward.2} parent=23 // pred_fallthru
            _
          %781 = vnop
        $region24: #{basic_block_forward.2} parent=19 // pred_fallthru
          _
      $region20: #{basic_block_forward.2} parent=5 // pred_fallthru
        _
      %p782 = scmp.le.s32.totalorder 1, %s11
      %p783 = scmp.lt.s32.totalorder %s11, 3
      %p784 = pnand %p782, %p783
      %p785 = pneg %p784
      // Predicated region
      $region62: #{basic_block_forward.2} parent=5 // pred_check
        _
      $region63: #{basic_block_forward.2} parent=5 // pred_check_branch
        %787 = sbr.rel (%p784) target = $region65
      $region64: #{basic_block_forward.2} parent=5 // pred_region
        %s788 = ssub.s32 %s11, 1
        %s789 = sand.u32 %s24, 1
        %s790 = sand.u32 %s24, 1
        %s791 = smul.addr %s790, 576
        %s792 = scalar_lea.vmem [#allocation2], %s791
        // Predicated region
        $region66: #{basic_block_forward.2} parent=64 // pred_check
          %p793 = pneg %p37
        $region67: #{basic_block_forward.2} parent=64 // pred_check_branch
          %795 = sbr.rel (%p793) target = $region69
        $region68: #{basic_block_forward.2} parent=64 // pred_region
          _
        $region69: #{basic_block_forward.2} parent=64 // pred_fallthru
          _
        %s796 = sand.u32 %s24, 1
        %s797 = sand.u32 %s24, 1
        %s798 = smul.addr %s797, 576
        %s799 = scalar_lea.vmem [#allocation2], %s798
        %p800 = pneg %p37
        %p801 = pneg %p34
        %p802 = pneg %p58
        %p803 = pneg %p55
        %p804 = pneg %p84
        %p805 = pneg %p81
        %s806 = smul.u32 32, %s16
        %p807 = scmp.lt.s32.totalorder %s806, 63
        %s808 = scalar_select %p807, %s806, 63
        %s809 = smul.addr %s808, 8
        %s810 = scalar_lea.vmem %s2, %s809
        %p811 = pneg %p110
        %p812 = pneg %p107
        %p813 = scmp.lt.s32.totalorder %s16, 1
        %s814 = scalar_select %p813, %s16, 1
        %s815 = smul.addr %s814, 8
        %s816 = scalar_lea.vmem %s3, %s815
        %p817 = pneg %p136
        %p818 = pneg %p133
        %p819 = scmp.lt.s32.totalorder %s16, 1
        %s820 = scalar_select %p819, %s16, 1
        %s821 = smul.addr %s820, 8
        %s822 = scalar_lea.vmem %s4, %s821
        %s823 = smul.u32 16, %s16
        %s824 = smul.u32 32, %s16
        %p825 = scmp.lt.s32.totalorder %s824, 63
        %s826 = scalar_select %p825, %s824, 63
        %s827 = smul.addr %s826, 8
        %s828 = scalar_lea.vmem %s2, %s827
        %s829 = smul.u32 32, %s16
        %p830 = scmp.lt.s32.totalorder %s16, 1
        %s831 = scalar_select %p830, %s16, 1
        %s832 = smul.addr %s831, 8
        %s833 = scalar_lea.vmem %s3, %s832
        %p834 = scmp.lt.s32.totalorder %s16, 1
        %s835 = scalar_select %p834, %s16, 1
        %s836 = smul.addr %s835, 8
        %s837 = scalar_lea.vmem %s4, %s836
        %v839 = vld [vmem:[%s792] sm:$0xf]
        %v840 = vld [vmem:[%s792 + $0x4] sm:$0xf]
        %v841 = vld [vmem:[%s792 + $0x8] sm:$0x1]
        %v842 = vld [vmem:[%s792 + $0xc] sm:$0xf]
        %v843 = vld [vmem:[%s792 + $0x10] sm:$0xf]
        %v844 = vld [vmem:[%s792 + $0x14] sm:$0x1]
        %v845 = vld [vmem:[%s792 + $0x18] sm:$0xf]
        %v846 = vld [vmem:[%s792 + $0x1c] sm:$0xf]
        %v847 = vld [vmem:[%s792 + $0x20] sm:$0x1]
        %v848 = vld [vmem:[%s792 + $0x24] sm:$0xf]
        %v849 = vld [vmem:[%s792 + $0x28] sm:$0xf]
        %v850 = vld [vmem:[%s792 + $0x2c] sm:$0x1]
        %v851 = vld [vmem:[%s792 + $0x30] sm:$0xf]
        %v852 = vld [vmem:[%s792 + $0x34] sm:$0xf]
        %v853 = vld [vmem:[%s792 + $0x38] sm:$0x1]
        %v854 = vld [vmem:[%s792 + $0x3c] sm:$0xf]
        %v855 = vld [vmem:[%s792 + $0x40] sm:$0xf]
        %v856 = vld [vmem:[%s792 + $0x44] sm:$0x1]
        %v857 = vld [vmem:[%s792 + $0x48] sm:$0xf]
        %v858 = vld [vmem:[%s792 + $0x4c] sm:$0xf]
        %v859 = vld [vmem:[%s792 + $0x50] sm:$0x1]
        %v860 = vld [vmem:[%s792 + $0x54] sm:$0xf]
        %v861 = vld [vmem:[%s792 + $0x58] sm:$0xf]
        %v862 = vld [vmem:[%s792 + $0x5c] sm:$0x1]
        %v863 = vld [vmem:[%s792 + $0x60] sm:$0xf]
        %v864 = vld [vmem:[%s792 + $0x64] sm:$0xf]
        %v865 = vld [vmem:[%s792 + $0x68] sm:$0x1]
        %v866 = vld [vmem:[%s792 + $0x6c] sm:$0xf]
        %v867 = vld [vmem:[%s792 + $0x70] sm:$0xf]
        %v868 = vld [vmem:[%s792 + $0x74] sm:$0x1]
        %v869 = vld [vmem:[%s792 + $0x78] sm:$0xf]
        %v870 = vld [vmem:[%s792 + $0x7c] sm:$0xf]
        %v871 = vld [vmem:[%s792 + $0x80] sm:$0x1]
        %v872 = vld [vmem:[%s792 + $0x84] sm:$0xf]
        %v873 = vld [vmem:[%s792 + $0x88] sm:$0xf]
        %v874 = vld [vmem:[%s792 + $0x8c] sm:$0x1]
        %v875 = vld [vmem:[%s792 + $0x90] sm:$0xf]
        %v876 = vld [vmem:[%s792 + $0x94] sm:$0xf]
        %v877 = vld [vmem:[%s792 + $0x98] sm:$0x1]
        %v878 = vld [vmem:[%s792 + $0x9c] sm:$0xf]
        %v879 = vld [vmem:[%s792 + $0xa0] sm:$0xf]
        %v880 = vld [vmem:[%s792 + $0xa4] sm:$0x1]
        %v881 = vld [vmem:[%s792 + $0xa8] sm:$0xf]
        %v882 = vld [vmem:[%s792 + $0xac] sm:$0xf]
        %v883 = vld [vmem:[%s792 + $0xb0] sm:$0x1]
        %v884 = vld [vmem:[%s792 + $0xb4] sm:$0xf]
        %v885 = vld [vmem:[%s792 + $0xb8] sm:$0xf]
        %v886 = vld [vmem:[%s792 + $0xbc] sm:$0x1]
        %v887 = vld [vmem:[%s1] sm:$0x3]
        %vm888 = vsmask.f32 3328
        %vm889 = vsmask.f32 7440
        %vm890 = vmor %vm888, %vm889
        %v892 = vshrl.u32 %v839, 16
        %v894 = vrot.slane %v892, 4
        %v895 = vshll.u32 %v839, 16
        %v897 = vrot.slane %v895, 5
        %v898 = vor.u32 %v894, %v897
        %v899 = vrot.slane %v898, 4
        %v901 = vshll.u32 %v840, 16
        %v903 = vrot.slane %v901, 5
        %v904 = vsel %vm890, %v899, %v903
        %v905 = vshrl.u32 %v840, 16
        %v907 = vrot.slane %v905, 4
        %v908 = vor.u32 %v907, %v903
        %v909 = vrot.slane %v908, 4
        %v911 = vshll.u32 %v841, 16
        %v913 = vrot.slane %v911, 5
        %v914 = vsel %vm890, %v909, %v913
        %v916 = vshrl.u32 %v842, 16
        %v918 = vrot.slane %v916, 4
        %v919 = vshll.u32 %v842, 16
        %v921 = vrot.slane %v919, 5
        %v922 = vor.u32 %v918, %v921
        %v923 = vrot.slane %v922, 4
        %v925 = vshll.u32 %v843, 16
        %v927 = vrot.slane %v925, 5
        %v928 = vsel %vm890, %v923, %v927
        %v929 = vshrl.u32 %v843, 16
        %v931 = vrot.slane %v929, 4
        %v932 = vor.u32 %v931, %v927
        %v933 = vrot.slane %v932, 4
        %v935 = vshll.u32 %v844, 16
        %v937 = vrot.slane %v935, 5
        %v938 = vsel %vm890, %v933, %v937
        %v940 = vshrl.u32 %v845, 16
        %v942 = vrot.slane %v940, 4
        %v943 = vshll.u32 %v845, 16
        %v945 = vrot.slane %v943, 5
        %v946 = vor.u32 %v942, %v945
        %v947 = vrot.slane %v946, 4
        %v949 = vshll.u32 %v846, 16
        %v951 = vrot.slane %v949, 5
        %v952 = vsel %vm890, %v947, %v951
        %v953 = vshrl.u32 %v846, 16
        %v955 = vrot.slane %v953, 4
        %v956 = vor.u32 %v955, %v951
        %v957 = vrot.slane %v956, 4
        %v959 = vshll.u32 %v847, 16
        %v961 = vrot.slane %v959, 5
        %v962 = vsel %vm890, %v957, %v961
        %v964 = vshrl.u32 %v848, 16
        %v966 = vrot.slane %v964, 4
        %v967 = vshll.u32 %v848, 16
        %v969 = vrot.slane %v967, 5
        %v970 = vor.u32 %v966, %v969
        %v971 = vrot.slane %v970, 4
        %v973 = vshll.u32 %v849, 16
        %v975 = vrot.slane %v973, 5
        %v976 = vsel %vm890, %v971, %v975
        %v977 = vshrl.u32 %v849, 16
        %v979 = vrot.slane %v977, 4
        %v980 = vor.u32 %v979, %v975
        %v981 = vrot.slane %v980, 4
        %v983 = vshll.u32 %v850, 16
        %v985 = vrot.slane %v983, 5
        %v986 = vsel %vm890, %v981, %v985
        %v988 = vshrl.u32 %v851, 16
        %v990 = vrot.slane %v988, 4
        %v991 = vshll.u32 %v851, 16
        %v993 = vrot.slane %v991, 5
        %v994 = vor.u32 %v990, %v993
        %v995 = vrot.slane %v994, 4
        %v997 = vshll.u32 %v852, 16
        %v999 = vrot.slane %v997, 5
        %v1000 = vsel %vm890, %v995, %v999
        %v1001 = vshrl.u32 %v852, 16
        %v1003 = vrot.slane %v1001, 4
        %v1004 = vor.u32 %v1003, %v999
        %v1005 = vrot.slane %v1004, 4
        %v1007 = vshll.u32 %v853, 16
        %v1009 = vrot.slane %v1007, 5
        %v1010 = vsel %vm890, %v1005, %v1009
        %v1012 = vshrl.u32 %v854, 16
        %v1014 = vrot.slane %v1012, 4
        %v1015 = vshll.u32 %v854, 16
        %v1017 = vrot.slane %v1015, 5
        %v1018 = vor.u32 %v1014, %v1017
        %v1019 = vrot.slane %v1018, 4
        %v1021 = vshll.u32 %v855, 16
        %v1023 = vrot.slane %v1021, 5
        %v1024 = vsel %vm890, %v1019, %v1023
        %v1025 = vshrl.u32 %v855, 16
        %v1027 = vrot.slane %v1025, 4
        %v1028 = vor.u32 %v1027, %v1023
        %v1029 = vrot.slane %v1028, 4
        %v1031 = vshll.u32 %v856, 16
        %v1033 = vrot.slane %v1031, 5
        %v1034 = vsel %vm890, %v1029, %v1033
        %v1036 = vshrl.u32 %v857, 16
        %v1038 = vrot.slane %v1036, 4
        %v1039 = vshll.u32 %v857, 16
        %v1041 = vrot.slane %v1039, 5
        %v1042 = vor.u32 %v1038, %v1041
        %v1043 = vrot.slane %v1042, 4
        %v1045 = vshll.u32 %v858, 16
        %v1047 = vrot.slane %v1045, 5
        %v1048 = vsel %vm890, %v1043, %v1047
        %v1049 = vshrl.u32 %v858, 16
        %v1051 = vrot.slane %v1049, 4
        %v1052 = vor.u32 %v1051, %v1047
        %v1053 = vrot.slane %v1052, 4
        %v1055 = vshll.u32 %v859, 16
        %v1057 = vrot.slane %v1055, 5
        %v1058 = vsel %vm890, %v1053, %v1057
        %v1060 = vshrl.u32 %v860, 16
        %v1062 = vrot.slane %v1060, 4
        %v1063 = vshll.u32 %v860, 16
        %v1065 = vrot.slane %v1063, 5
        %v1066 = vor.u32 %v1062, %v1065
        %v1067 = vrot.slane %v1066, 4
        %v1069 = vshll.u32 %v861, 16
        %v1071 = vrot.slane %v1069, 5
        %v1072 = vsel %vm890, %v1067, %v1071
        %v1073 = vshrl.u32 %v861, 16
        %v1075 = vrot.slane %v1073, 4
        %v1076 = vor.u32 %v1075, %v1071
        %v1077 = vrot.slane %v1076, 4
        %v1079 = vshll.u32 %v862, 16
        %v1081 = vrot.slane %v1079, 5
        %v1082 = vsel %vm890, %v1077, %v1081
        %v1084 = vshrl.u32 %v863, 16
        %v1086 = vrot.slane %v1084, 4
        %v1087 = vshll.u32 %v863, 16
        %v1089 = vrot.slane %v1087, 5
        %v1090 = vor.u32 %v1086, %v1089
        %v1091 = vrot.slane %v1090, 4
        %v1093 = vshll.u32 %v864, 16
        %v1095 = vrot.slane %v1093, 5
        %v1096 = vsel %vm890, %v1091, %v1095
        %v1097 = vshrl.u32 %v864, 16
        %v1099 = vrot.slane %v1097, 4
        %v1100 = vor.u32 %v1099, %v1095
        %v1101 = vrot.slane %v1100, 4
        %v1103 = vshll.u32 %v865, 16
        %v1105 = vrot.slane %v1103, 5
        %v1106 = vsel %vm890, %v1101, %v1105
        %v1108 = vshrl.u32 %v866, 16
        %v1110 = vrot.slane %v1108, 4
        %v1111 = vshll.u32 %v866, 16
        %v1113 = vrot.slane %v1111, 5
        %v1114 = vor.u32 %v1110, %v1113
        %v1115 = vrot.slane %v1114, 4
        %v1117 = vshll.u32 %v867, 16
        %v1119 = vrot.slane %v1117, 5
        %v1120 = vsel %vm890, %v1115, %v1119
        %v1121 = vshrl.u32 %v867, 16
        %v1123 = vrot.slane %v1121, 4
        %v1124 = vor.u32 %v1123, %v1119
        %v1125 = vrot.slane %v1124, 4
        %v1127 = vshll.u32 %v868, 16
        %v1129 = vrot.slane %v1127, 5
        %v1130 = vsel %vm890, %v1125, %v1129
        %v1132 = vshrl.u32 %v869, 16
        %v1134 = vrot.slane %v1132, 4
        %v1135 = vshll.u32 %v869, 16
        %v1137 = vrot.slane %v1135, 5
        %v1138 = vor.u32 %v1134, %v1137
        %v1139 = vrot.slane %v1138, 4
        %v1141 = vshll.u32 %v870, 16
        %v1143 = vrot.slane %v1141, 5
        %v1144 = vsel %vm890, %v1139, %v1143
        %v1145 = vshrl.u32 %v870, 16
        %v1147 = vrot.slane %v1145, 4
        %v1148 = vor.u32 %v1147, %v1143
        %v1149 = vrot.slane %v1148, 4
        %v1151 = vshll.u32 %v871, 16
        %v1153 = vrot.slane %v1151, 5
        %v1154 = vsel %vm890, %v1149, %v1153
        %v1156 = vshrl.u32 %v872, 16
        %v1158 = vrot.slane %v1156, 4
        %v1159 = vshll.u32 %v872, 16
        %v1161 = vrot.slane %v1159, 5
        %v1162 = vor.u32 %v1158, %v1161
        %v1163 = vrot.slane %v1162, 4
        %v1165 = vshll.u32 %v873, 16
        %v1167 = vrot.slane %v1165, 5
        %v1168 = vsel %vm890, %v1163, %v1167
        %v1169 = vshrl.u32 %v873, 16
        %v1171 = vrot.slane %v1169, 4
        %v1172 = vor.u32 %v1171, %v1167
        %v1173 = vrot.slane %v1172, 4
        %v1175 = vshll.u32 %v874, 16
        %v1177 = vrot.slane %v1175, 5
        %v1178 = vsel %vm890, %v1173, %v1177
        %v1180 = vshrl.u32 %v875, 16
        %v1182 = vrot.slane %v1180, 4
        %v1183 = vshll.u32 %v875, 16
        %v1185 = vrot.slane %v1183, 5
        %v1186 = vor.u32 %v1182, %v1185
        %v1187 = vrot.slane %v1186, 4
        %v1189 = vshll.u32 %v876, 16
        %v1191 = vrot.slane %v1189, 5
        %v1192 = vsel %vm890, %v1187, %v1191
        %v1193 = vshrl.u32 %v876, 16
        %v1195 = vrot.slane %v1193, 4
        %v1196 = vor.u32 %v1195, %v1191
        %v1197 = vrot.slane %v1196, 4
        %v1199 = vshll.u32 %v877, 16
        %v1201 = vrot.slane %v1199, 5
        %v1202 = vsel %vm890, %v1197, %v1201
        %v1204 = vshrl.u32 %v878, 16
        %v1206 = vrot.slane %v1204, 4
        %v1207 = vshll.u32 %v878, 16
        %v1209 = vrot.slane %v1207, 5
        %v1210 = vor.u32 %v1206, %v1209
        %v1211 = vrot.slane %v1210, 4
        %v1213 = vshll.u32 %v879, 16
        %v1215 = vrot.slane %v1213, 5
        %v1216 = vsel %vm890, %v1211, %v1215
        %v1217 = vshrl.u32 %v879, 16
        %v1219 = vrot.slane %v1217, 4
        %v1220 = vor.u32 %v1219, %v1215
        %v1221 = vrot.slane %v1220, 4
        %v1223 = vshll.u32 %v880, 16
        %v1225 = vrot.slane %v1223, 5
        %v1226 = vsel %vm890, %v1221, %v1225
        %v1228 = vshrl.u32 %v881, 16
        %v1230 = vrot.slane %v1228, 4
        %v1231 = vshll.u32 %v881, 16
        %v1233 = vrot.slane %v1231, 5
        %v1234 = vor.u32 %v1230, %v1233
        %v1235 = vrot.slane %v1234, 4
        %v1237 = vshll.u32 %v882, 16
        %v1239 = vrot.slane %v1237, 5
        %v1240 = vsel %vm890, %v1235, %v1239
        %v1241 = vshrl.u32 %v882, 16
        %v1243 = vrot.slane %v1241, 4
        %v1244 = vor.u32 %v1243, %v1239
        %v1245 = vrot.slane %v1244, 4
        %v1247 = vshll.u32 %v883, 16
        %v1249 = vrot.slane %v1247, 5
        %v1250 = vsel %vm890, %v1245, %v1249
        %v1252 = vshrl.u32 %v884, 16
        %v1254 = vrot.slane %v1252, 4
        %v1255 = vshll.u32 %v884, 16
        %v1257 = vrot.slane %v1255, 5
        %v1258 = vor.u32 %v1254, %v1257
        %v1259 = vrot.slane %v1258, 4
        %v1261 = vshll.u32 %v885, 16
        %v1263 = vrot.slane %v1261, 5
        %v1264 = vsel %vm890, %v1259, %v1263
        %v1265 = vshrl.u32 %v885, 16
        %v1267 = vrot.slane %v1265, 4
        %v1268 = vor.u32 %v1267, %v1263
        %v1269 = vrot.slane %v1268, 4
        %v1271 = vshll.u32 %v886, 16
        %v1273 = vrot.slane %v1271, 5
        %v1274 = vsel %vm890, %v1269, %v1273
        %s1275 = scalar_lea.vmem %s1, 2
        %v1276 = vld [vmem:[%s1275] sm:$0x3]
        %v1277 = vunpack.c.l.b16 %v904
        %v1278 = vunpack.c.l.b16 %v914
        %v1279 = vunpack.c.l.b16 %v928
        %v1280 = vunpack.c.l.b16 %v938
        %v1281 = vunpack.c.l.b16 %v952
        %v1282 = vunpack.c.l.b16 %v962
        %v1283 = vunpack.c.l.b16 %v976
        %v1284 = vunpack.c.l.b16 %v986
        %v1285 = vunpack.c.l.b16 %v1000
        %v1286 = vunpack.c.l.b16 %v1010
        %v1287 = vunpack.c.l.b16 %v1024
        %v1288 = vunpack.c.l.b16 %v1034
        %v1289 = vunpack.c.l.b16 %v1048
        %v1290 = vunpack.c.l.b16 %v1058
        %v1291 = vunpack.c.l.b16 %v1072
        %v1292 = vunpack.c.l.b16 %v1082
        %v1293 = vunpack.c.l.b16 %v1096
        %v1294 = vunpack.c.l.b16 %v1106
        %v1295 = vunpack.c.l.b16 %v1120
        %v1296 = vunpack.c.l.b16 %v1130
        %v1297 = vunpack.c.l.b16 %v1144
        %v1298 = vunpack.c.l.b16 %v1154
        %v1299 = vunpack.c.l.b16 %v1168
        %v1300 = vunpack.c.l.b16 %v1178
        %v1301 = vunpack.c.l.b16 %v1192
        %v1302 = vunpack.c.l.b16 %v1202
        %v1303 = vunpack.c.l.b16 %v1216
        %v1304 = vunpack.c.l.b16 %v1226
        %v1305 = vunpack.c.l.b16 %v1240
        %v1306 = vunpack.c.l.b16 %v1250
        %v1307 = vunpack.c.l.b16 %v1264
        %v1308 = vunpack.c.l.b16 %v1274
        %v1309 = vpack.c.b16 %v1278, %v1277
        %v1310 = vpack.c.b16 %v1280, %v1279
        %v1311 = vpack.c.b16 %v1282, %v1281
        %v1312 = vpack.c.b16 %v1284, %v1283
        %v1313 = vpack.c.b16 %v1286, %v1285
        %v1314 = vpack.c.b16 %v1288, %v1287
        %v1315 = vpack.c.b16 %v1290, %v1289
        %v1316 = vpack.c.b16 %v1292, %v1291
        %v1317 = vpack.c.b16 %v1294, %v1293
        %v1318 = vpack.c.b16 %v1296, %v1295
        %v1319 = vpack.c.b16 %v1298, %v1297
        %v1320 = vpack.c.b16 %v1300, %v1299
        %v1321 = vpack.c.b16 %v1302, %v1301
        %v1322 = vpack.c.b16 %v1304, %v1303
        %v1323 = vpack.c.b16 %v1306, %v1305
        %v1324 = vpack.c.b16 %v1308, %v1307
        %vm1325 = vcmask 31744
        %v1327 = vsel %vm1325, %v1309, 0
        %v1330 = vsel %vm1325, %v1310, 0
        %v1333 = vsel %vm1325, %v1311, 0
        %v1336 = vsel %vm1325, %v1312, 0
        %v1339 = vsel %vm1325, %v1313, 0
        %v1342 = vsel %vm1325, %v1314, 0
        %v1345 = vsel %vm1325, %v1315, 0
        %v1348 = vsel %vm1325, %v1316, 0
        %v1351 = vsel %vm1325, %v1317, 0
        %v1354 = vsel %vm1325, %v1318, 0
        %v1357 = vsel %vm1325, %v1319, 0
        %v1360 = vsel %vm1325, %v1320, 0
        %v1363 = vsel %vm1325, %v1321, 0
        %v1366 = vsel %vm1325, %v1322, 0
        %v1369 = vsel %vm1325, %v1323, 0
        %v1372 = vsel %vm1325, %v1324, 0
        %vm1374 = vcmask 1041408
        %v1376 = vsel %vm1374, %v1276, 0
        %1378 = vmatprep.subr.bf16.mxu0 0
        %1379 = vmatpush1.bf16.msra.mxu0 0
        %1380 = vmatprep.subr.bf16.mxu0 0
        %1381 = vmatpush1.bf16.msra.mxu0 0
        %1382 = vmatprep.subr.bf16.mxu0 0
        %1383 = vmatpush1.bf16.msra.mxu0 0
        %1384 = vmatprep.subr.bf16.mxu0 0
        %1385 = vmatpush1.bf16.msra.mxu0 0
        %1386 = vmatprep.subr.bf16.mxu0 0
        %1387 = vmatpush1.bf16.msra.mxu0 0
        %1388 = vmatprep.subr.bf16.mxu0 0
        %1389 = vmatpush1.bf16.msra.mxu0 0
        %1390 = vmatprep.subr.bf16.mxu0 0
        %1391 = vmatpush1.bf16.msra.mxu0 0
        %1392 = vmatprep.subr.bf16.mxu0 0
        %1393 = vmatpush1.bf16.msra.mxu0 %v1376
        %1394 = vmatprep.subr.bf16.mxu0 0
        %1395 = vmatpush2.bf16.msra.mxu0 0
        %1396 = vmatprep.subr.bf16.mxu0 0
        %1397 = vmatpush2.bf16.msra.mxu0 0
        %1398 = vmatprep.subr.bf16.mxu0 0
        %1399 = vmatpush2.bf16.msra.mxu0 0
        %1400 = vmatprep.subr.bf16.mxu0 0
        %1401 = vmatpush2.bf16.msra.mxu0 0
        %1402 = vmatprep.subr.bf16.mxu0 0
        %1403 = vmatpush2.bf16.msra.mxu0 0
        %1404 = vmatprep.subr.bf16.mxu0 0
        %1405 = vmatpush2.bf16.msra.mxu0 0
        %1406 = vmatprep.subr.bf16.mxu0 0
        %1407 = vmatpush2.bf16.msra.mxu0 0
        %1408 = vmatprep.subr.bf16.mxu0 0
        %1409 = vmatpush2.bf16.msra.mxu0 0
        %1410 = vmatprep.mubr.bf16.mxu0 0
        %1411 = vmatmul.mubr.bf16.gmra.mxu0 %v1327
        %v1412 = vpop.f32.mrf.mxu0
        %v1413 = vadd.f32 0.0, %v1412
        %v1414 = vpop.f32.mrf.mxu0
        %v1415 = vpop.f32.mrf.mxu0
        %v1416 = vadd.f32 0.0, %v1415
        %v1417 = vpop.f32.mrf.mxu0
        %1418 = vmatprep.mubr.bf16.mxu0 0
        %1419 = vmatmul.mubr.bf16.gmra.mxu0 %v1330
        %v1420 = vpop.f32.mrf.mxu0
        %v1421 = vadd.f32 0.0, %v1420
        %v1422 = vpop.f32.mrf.mxu0
        %v1423 = vpop.f32.mrf.mxu0
        %v1424 = vadd.f32 0.0, %v1423
        %v1425 = vpop.f32.mrf.mxu0
        %1426 = vmatprep.mubr.bf16.mxu0 0
        %1427 = vmatmul.mubr.bf16.gmra.mxu0 %v1333
        %v1428 = vpop.f32.mrf.mxu0
        %v1429 = vadd.f32 0.0, %v1428
        %v1430 = vpop.f32.mrf.mxu0
        %v1431 = vpop.f32.mrf.mxu0
        %v1432 = vadd.f32 0.0, %v1431
        %v1433 = vpop.f32.mrf.mxu0
        %1434 = vmatprep.mubr.bf16.mxu0 0
        %1435 = vmatmul.mubr.bf16.gmra.mxu0 %v1336
        %v1436 = vpop.f32.mrf.mxu0
        %v1437 = vadd.f32 0.0, %v1436
        %v1438 = vpop.f32.mrf.mxu0
        %v1439 = vpop.f32.mrf.mxu0
        %v1440 = vadd.f32 0.0, %v1439
        %v1441 = vpop.f32.mrf.mxu0
        %1442 = vmatprep.mubr.bf16.mxu0 0
        %1443 = vmatmul.mubr.bf16.gmra.mxu0 %v1339
        %v1444 = vpop.f32.mrf.mxu0
        %v1445 = vadd.f32 0.0, %v1444
        %v1446 = vpop.f32.mrf.mxu0
        %v1447 = vpop.f32.mrf.mxu0
        %v1448 = vadd.f32 0.0, %v1447
        %v1449 = vpop.f32.mrf.mxu0
        %1450 = vmatprep.mubr.bf16.mxu0 0
        %1451 = vmatmul.mubr.bf16.gmra.mxu0 %v1342
        %v1452 = vpop.f32.mrf.mxu0
        %v1453 = vadd.f32 0.0, %v1452
        %v1454 = vpop.f32.mrf.mxu0
        %v1455 = vpop.f32.mrf.mxu0
        %v1456 = vadd.f32 0.0, %v1455
        %v1457 = vpop.f32.mrf.mxu0
        %1458 = vmatprep.mubr.bf16.mxu0 0
        %1459 = vmatmul.mubr.bf16.gmra.mxu0 %v1345
        %v1460 = vpop.f32.mrf.mxu0
        %v1461 = vadd.f32 0.0, %v1460
        %v1462 = vpop.f32.mrf.mxu0
        %v1463 = vpop.f32.mrf.mxu0
        %v1464 = vadd.f32 0.0, %v1463
        %v1465 = vpop.f32.mrf.mxu0
        %1466 = vmatprep.mubr.bf16.mxu0 0
        %1467 = vmatmul.mubr.bf16.gmra.mxu0 %v1348
        %v1468 = vpop.f32.mrf.mxu0
        %v1469 = vadd.f32 0.0, %v1468
        %v1470 = vpop.f32.mrf.mxu0
        %v1471 = vpop.f32.mrf.mxu0
        %v1472 = vadd.f32 0.0, %v1471
        %v1473 = vpop.f32.mrf.mxu0
        %1474 = vmatprep.mubr.bf16.mxu0 0
        %1475 = vmatmul.mubr.bf16.gmra.mxu0 %v1351
        %v1476 = vpop.f32.mrf.mxu0
        %v1477 = vadd.f32 0.0, %v1476
        %v1478 = vpop.f32.mrf.mxu0
        %v1479 = vpop.f32.mrf.mxu0
        %v1480 = vadd.f32 0.0, %v1479
        %v1481 = vpop.f32.mrf.mxu0
        %1482 = vmatprep.mubr.bf16.mxu0 0
        %1483 = vmatmul.mubr.bf16.gmra.mxu0 %v1354
        %v1484 = vpop.f32.mrf.mxu0
        %v1485 = vadd.f32 0.0, %v1484
        %v1486 = vpop.f32.mrf.mxu0
        %v1487 = vpop.f32.mrf.mxu0
        %v1488 = vadd.f32 0.0, %v1487
        %v1489 = vpop.f32.mrf.mxu0
        %1490 = vmatprep.mubr.bf16.mxu0 0
        %1491 = vmatmul.mubr.bf16.gmra.mxu0 %v1357
        %v1492 = vpop.f32.mrf.mxu0
        %v1493 = vadd.f32 0.0, %v1492
        %v1494 = vpop.f32.mrf.mxu0
        %v1495 = vpop.f32.mrf.mxu0
        %v1496 = vadd.f32 0.0, %v1495
        %v1497 = vpop.f32.mrf.mxu0
        %1498 = vmatprep.mubr.bf16.mxu0 0
        %1499 = vmatmul.mubr.bf16.gmra.mxu0 %v1360
        %v1500 = vpop.f32.mrf.mxu0
        %v1501 = vadd.f32 0.0, %v1500
        %v1502 = vpop.f32.mrf.mxu0
        %v1503 = vpop.f32.mrf.mxu0
        %v1504 = vadd.f32 0.0, %v1503
        %v1505 = vpop.f32.mrf.mxu0
        %1506 = vmatprep.mubr.bf16.mxu0 0
        %1507 = vmatmul.mubr.bf16.gmra.mxu0 %v1363
        %v1508 = vpop.f32.mrf.mxu0
        %v1509 = vadd.f32 0.0, %v1508
        %v1510 = vpop.f32.mrf.mxu0
        %v1511 = vpop.f32.mrf.mxu0
        %v1512 = vadd.f32 0.0, %v1511
        %v1513 = vpop.f32.mrf.mxu0
        %1514 = vmatprep.mubr.bf16.mxu0 0
        %1515 = vmatmul.mubr.bf16.gmra.mxu0 %v1366
        %v1516 = vpop.f32.mrf.mxu0
        %v1517 = vadd.f32 0.0, %v1516
        %v1518 = vpop.f32.mrf.mxu0
        %v1519 = vpop.f32.mrf.mxu0
        %v1520 = vadd.f32 0.0, %v1519
        %v1521 = vpop.f32.mrf.mxu0
        %1522 = vmatprep.mubr.bf16.mxu0 0
        %1523 = vmatmul.mubr.bf16.gmra.mxu0 %v1369
        %v1524 = vpop.f32.mrf.mxu0
        %v1525 = vadd.f32 0.0, %v1524
        %v1526 = vpop.f32.mrf.mxu0
        %v1527 = vpop.f32.mrf.mxu0
        %v1528 = vadd.f32 0.0, %v1527
        %v1529 = vpop.f32.mrf.mxu0
        %1530 = vmatprep.mubr.bf16.mxu0 0
        %1531 = vmatmul.mubr.bf16.gmra.mxu0 %v1372
        %v1532 = vpop.f32.mrf.mxu0
        %v1533 = vadd.f32 0.0, %v1532
        %v1534 = vpop.f32.mrf.mxu0
        %v1535 = vpop.f32.mrf.mxu0
        %v1536 = vadd.f32 0.0, %v1535
        %v1537 = vpop.f32.mrf.mxu0
        %1538 = vdwg.mxu0
        %v1571 = vunpack.c.l.b16 %v839
        %v1572 = vunpack.c.l.b16 %v840
        %v1573 = vunpack.c.l.b16 %v842
        %v1574 = vunpack.c.l.b16 %v843
        %v1575 = vunpack.c.l.b16 %v845
        %v1576 = vunpack.c.l.b16 %v846
        %v1577 = vunpack.c.l.b16 %v848
        %v1578 = vunpack.c.l.b16 %v849
        %v1579 = vunpack.c.l.b16 %v851
        %v1580 = vunpack.c.l.b16 %v852
        %v1581 = vunpack.c.l.b16 %v854
        %v1582 = vunpack.c.l.b16 %v855
        %v1583 = vunpack.c.l.b16 %v857
        %v1584 = vunpack.c.l.b16 %v858
        %v1585 = vunpack.c.l.b16 %v860
        %v1586 = vunpack.c.l.b16 %v861
        %v1587 = vunpack.c.l.b16 %v863
        %v1588 = vunpack.c.l.b16 %v864
        %v1589 = vunpack.c.l.b16 %v866
        %v1590 = vunpack.c.l.b16 %v867
        %v1591 = vunpack.c.l.b16 %v869
        %v1592 = vunpack.c.l.b16 %v870
        %v1593 = vunpack.c.l.b16 %v872
        %v1594 = vunpack.c.l.b16 %v873
        %v1595 = vunpack.c.l.b16 %v875
        %v1596 = vunpack.c.l.b16 %v876
        %v1597 = vunpack.c.l.b16 %v878
        %v1598 = vunpack.c.l.b16 %v879
        %v1599 = vunpack.c.l.b16 %v881
        %v1600 = vunpack.c.l.b16 %v882
        %v1601 = vunpack.c.l.b16 %v884
        %v1602 = vunpack.c.l.b16 %v885
        %v1603 = vpack.c.b16 %v1572, %v1571
        %v1604 = vpack.c.b16 %v1574, %v1573
        %v1605 = vpack.c.b16 %v1576, %v1575
        %v1606 = vpack.c.b16 %v1578, %v1577
        %v1607 = vpack.c.b16 %v1580, %v1579
        %v1608 = vpack.c.b16 %v1582, %v1581
        %v1609 = vpack.c.b16 %v1584, %v1583
        %v1610 = vpack.c.b16 %v1586, %v1585
        %v1611 = vpack.c.b16 %v1588, %v1587
        %v1612 = vpack.c.b16 %v1590, %v1589
        %v1613 = vpack.c.b16 %v1592, %v1591
        %v1614 = vpack.c.b16 %v1594, %v1593
        %v1615 = vpack.c.b16 %v1596, %v1595
        %v1616 = vpack.c.b16 %v1598, %v1597
        %v1617 = vpack.c.b16 %v1600, %v1599
        %v1618 = vpack.c.b16 %v1602, %v1601
        %v1620 = vsel %vm1325, %v1603, 0
        %v1623 = vsel %vm1325, %v1604, 0
        %v1626 = vsel %vm1325, %v1605, 0
        %v1629 = vsel %vm1325, %v1606, 0
        %v1632 = vsel %vm1325, %v1607, 0
        %v1635 = vsel %vm1325, %v1608, 0
        %v1638 = vsel %vm1325, %v1609, 0
        %v1641 = vsel %vm1325, %v1610, 0
        %v1644 = vsel %vm1325, %v1611, 0
        %v1647 = vsel %vm1325, %v1612, 0
        %v1650 = vsel %vm1325, %v1613, 0
        %v1653 = vsel %vm1325, %v1614, 0
        %v1656 = vsel %vm1325, %v1615, 0
        %v1659 = vsel %vm1325, %v1616, 0
        %v1662 = vsel %vm1325, %v1617, 0
        %v1665 = vsel %vm1325, %v1618, 0
        %v1668 = vsel %vm1374, %v887, 0
        %1670 = vmatprep.subr.bf16.mxu0 0
        %1671 = vmatpush1.bf16.msra.mxu0 0
        %1672 = vmatprep.subr.bf16.mxu0 0
        %1673 = vmatpush1.bf16.msra.mxu0 0
        %1674 = vmatprep.subr.bf16.mxu0 0
        %1675 = vmatpush1.bf16.msra.mxu0 0
        %1676 = vmatprep.subr.bf16.mxu0 0
        %1677 = vmatpush1.bf16.msra.mxu0 0
        %1678 = vmatprep.subr.bf16.mxu0 0
        %1679 = vmatpush1.bf16.msra.mxu0 0
        %1680 = vmatprep.subr.bf16.mxu0 0
        %1681 = vmatpush1.bf16.msra.mxu0 0
        %1682 = vmatprep.subr.bf16.mxu0 0
        %1683 = vmatpush1.bf16.msra.mxu0 0
        %1684 = vmatprep.subr.bf16.mxu0 0
        %1685 = vmatpush1.bf16.msra.mxu0 %v1668
        %1686 = vmatprep.subr.bf16.mxu0 0
        %1687 = vmatpush2.bf16.msra.mxu0 0
        %1688 = vmatprep.subr.bf16.mxu0 0
        %1689 = vmatpush2.bf16.msra.mxu0 0
        %1690 = vmatprep.subr.bf16.mxu0 0
        %1691 = vmatpush2.bf16.msra.mxu0 0
        %1692 = vmatprep.subr.bf16.mxu0 0
        %1693 = vmatpush2.bf16.msra.mxu0 0
        %1694 = vmatprep.subr.bf16.mxu0 0
        %1695 = vmatpush2.bf16.msra.mxu0 0
        %1696 = vmatprep.subr.bf16.mxu0 0
        %1697 = vmatpush2.bf16.msra.mxu0 0
        %1698 = vmatprep.subr.bf16.mxu0 0
        %1699 = vmatpush2.bf16.msra.mxu0 0
        %1700 = vmatprep.subr.bf16.mxu0 0
        %1701 = vmatpush2.bf16.msra.mxu0 0
        %1702 = vmatprep.mubr.bf16.mxu0 0
        %1703 = vmatmul.mubr.bf16.gmra.mxu0 %v1620
        %v1704 = vpop.f32.mrf.mxu0
        %v1705 = vadd.f32 %v1413, %v1704
        %v1706 = vpop.f32.mrf.mxu0
        %v1707 = vpop.f32.mrf.mxu0
        %v1708 = vadd.f32 %v1416, %v1707
        %v1709 = vpop.f32.mrf.mxu0
        %1710 = vmatprep.mubr.bf16.mxu0 0
        %1711 = vmatmul.mubr.bf16.gmra.mxu0 %v1623
        %v1712 = vpop.f32.mrf.mxu0
        %v1713 = vadd.f32 %v1421, %v1712
        %v1714 = vpop.f32.mrf.mxu0
        %v1715 = vpop.f32.mrf.mxu0
        %v1716 = vadd.f32 %v1424, %v1715
        %v1717 = vpop.f32.mrf.mxu0
        %1718 = vmatprep.mubr.bf16.mxu0 0
        %1719 = vmatmul.mubr.bf16.gmra.mxu0 %v1626
        %v1720 = vpop.f32.mrf.mxu0
        %v1721 = vadd.f32 %v1429, %v1720
        %v1722 = vpop.f32.mrf.mxu0
        %v1723 = vpop.f32.mrf.mxu0
        %v1724 = vadd.f32 %v1432, %v1723
        %v1725 = vpop.f32.mrf.mxu0
        %1726 = vmatprep.mubr.bf16.mxu0 0
        %1727 = vmatmul.mubr.bf16.gmra.mxu0 %v1629
        %v1728 = vpop.f32.mrf.mxu0
        %v1729 = vadd.f32 %v1437, %v1728
        %v1730 = vpop.f32.mrf.mxu0
        %v1731 = vpop.f32.mrf.mxu0
        %v1732 = vadd.f32 %v1440, %v1731
        %v1733 = vpop.f32.mrf.mxu0
        %1734 = vmatprep.mubr.bf16.mxu0 0
        %1735 = vmatmul.mubr.bf16.gmra.mxu0 %v1632
        %v1736 = vpop.f32.mrf.mxu0
        %v1737 = vadd.f32 %v1445, %v1736
        %v1738 = vpop.f32.mrf.mxu0
        %v1739 = vpop.f32.mrf.mxu0
        %v1740 = vadd.f32 %v1448, %v1739
        %v1741 = vpop.f32.mrf.mxu0
        %1742 = vmatprep.mubr.bf16.mxu0 0
        %1743 = vmatmul.mubr.bf16.gmra.mxu0 %v1635
        %v1744 = vpop.f32.mrf.mxu0
        %v1745 = vadd.f32 %v1453, %v1744
        %v1746 = vpop.f32.mrf.mxu0
        %v1747 = vpop.f32.mrf.mxu0
        %v1748 = vadd.f32 %v1456, %v1747
        %v1749 = vpop.f32.mrf.mxu0
        %1750 = vmatprep.mubr.bf16.mxu0 0
        %1751 = vmatmul.mubr.bf16.gmra.mxu0 %v1638
        %v1752 = vpop.f32.mrf.mxu0
        %v1753 = vadd.f32 %v1461, %v1752
        %v1754 = vpop.f32.mrf.mxu0
        %v1755 = vpop.f32.mrf.mxu0
        %v1756 = vadd.f32 %v1464, %v1755
        %v1757 = vpop.f32.mrf.mxu0
        %1758 = vmatprep.mubr.bf16.mxu0 0
        %1759 = vmatmul.mubr.bf16.gmra.mxu0 %v1641
        %v1760 = vpop.f32.mrf.mxu0
        %v1761 = vadd.f32 %v1469, %v1760
        %v1762 = vpop.f32.mrf.mxu0
        %v1763 = vpop.f32.mrf.mxu0
        %v1764 = vadd.f32 %v1472, %v1763
        %v1765 = vpop.f32.mrf.mxu0
        %1766 = vmatprep.mubr.bf16.mxu0 0
        %1767 = vmatmul.mubr.bf16.gmra.mxu0 %v1644
        %v1768 = vpop.f32.mrf.mxu0
        %v1769 = vadd.f32 %v1477, %v1768
        %v1770 = vpop.f32.mrf.mxu0
        %v1771 = vpop.f32.mrf.mxu0
        %v1772 = vadd.f32 %v1480, %v1771
        %v1773 = vpop.f32.mrf.mxu0
        %1774 = vmatprep.mubr.bf16.mxu0 0
        %1775 = vmatmul.mubr.bf16.gmra.mxu0 %v1647
        %v1776 = vpop.f32.mrf.mxu0
        %v1777 = vadd.f32 %v1485, %v1776
        %v1778 = vpop.f32.mrf.mxu0
        %v1779 = vpop.f32.mrf.mxu0
        %v1780 = vadd.f32 %v1488, %v1779
        %v1781 = vpop.f32.mrf.mxu0
        %1782 = vmatprep.mubr.bf16.mxu0 0
        %1783 = vmatmul.mubr.bf16.gmra.mxu0 %v1650
        %v1784 = vpop.f32.mrf.mxu0
        %v1785 = vadd.f32 %v1493, %v1784
        %v1786 = vpop.f32.mrf.mxu0
        %v1787 = vpop.f32.mrf.mxu0
        %v1788 = vadd.f32 %v1496, %v1787
        %v1789 = vpop.f32.mrf.mxu0
        %1790 = vmatprep.mubr.bf16.mxu0 0
        %1791 = vmatmul.mubr.bf16.gmra.mxu0 %v1653
        %v1792 = vpop.f32.mrf.mxu0
        %v1793 = vadd.f32 %v1501, %v1792
        %v1794 = vpop.f32.mrf.mxu0
        %v1795 = vpop.f32.mrf.mxu0
        %v1796 = vadd.f32 %v1504, %v1795
        %v1797 = vpop.f32.mrf.mxu0
        %1798 = vmatprep.mubr.bf16.mxu0 0
        %1799 = vmatmul.mubr.bf16.gmra.mxu0 %v1656
        %v1800 = vpop.f32.mrf.mxu0
        %v1801 = vadd.f32 %v1509, %v1800
        %v1802 = vpop.f32.mrf.mxu0
        %v1803 = vpop.f32.mrf.mxu0
        %v1804 = vadd.f32 %v1512, %v1803
        %v1805 = vpop.f32.mrf.mxu0
        %1806 = vmatprep.mubr.bf16.mxu0 0
        %1807 = vmatmul.mubr.bf16.gmra.mxu0 %v1659
        %v1808 = vpop.f32.mrf.mxu0
        %v1809 = vadd.f32 %v1517, %v1808
        %v1810 = vpop.f32.mrf.mxu0
        %v1811 = vpop.f32.mrf.mxu0
        %v1812 = vadd.f32 %v1520, %v1811
        %v1813 = vpop.f32.mrf.mxu0
        %1814 = vmatprep.mubr.bf16.mxu0 0
        %1815 = vmatmul.mubr.bf16.gmra.mxu0 %v1662
        %v1816 = vpop.f32.mrf.mxu0
        %v1817 = vadd.f32 %v1525, %v1816
        %v1818 = vpop.f32.mrf.mxu0
        %v1819 = vpop.f32.mrf.mxu0
        %v1820 = vadd.f32 %v1528, %v1819
        %v1821 = vpop.f32.mrf.mxu0
        %1822 = vmatprep.mubr.bf16.mxu0 0
        %1823 = vmatmul.mubr.bf16.gmra.mxu0 %v1665
        %v1824 = vpop.f32.mrf.mxu0
        %v1825 = vadd.f32 %v1533, %v1824
        %v1826 = vpop.f32.mrf.mxu0
        %v1827 = vpop.f32.mrf.mxu0
        %v1828 = vadd.f32 %v1536, %v1827
        %v1829 = vpop.f32.mrf.mxu0
        %1830 = vdwg.mxu0
        %vm1847 = vcmask 1042432
        %vm1848 = vcmask 1046532
        %vm1849 = vmor %vm1847, %vm1848
        %v1850 = vrot.slane %v839, 5
        %v1851 = vrot.slane %v1850, 4
        %v1852 = vrot.slane %v840, 5
        %v1853 = vsel %vm1849, %v1851, %v1852
        %v1854 = vrot.slane %v1852, 4
        %v1855 = vrot.slane %v841, 5
        %v1856 = vsel %vm1849, %v1854, %v1855
        %v1857 = vrot.slane %v842, 5
        %v1858 = vrot.slane %v1857, 4
        %v1859 = vrot.slane %v843, 5
        %v1860 = vsel %vm1849, %v1858, %v1859
        %v1861 = vrot.slane %v1859, 4
        %v1862 = vrot.slane %v844, 5
        %v1863 = vsel %vm1849, %v1861, %v1862
        %v1864 = vrot.slane %v845, 5
        %v1865 = vrot.slane %v1864, 4
        %v1866 = vrot.slane %v846, 5
        %v1867 = vsel %vm1849, %v1865, %v1866
        %v1868 = vrot.slane %v1866, 4
        %v1869 = vrot.slane %v847, 5
        %v1870 = vsel %vm1849, %v1868, %v1869
        %v1871 = vrot.slane %v848, 5
        %v1872 = vrot.slane %v1871, 4
        %v1873 = vrot.slane %v849, 5
        %v1874 = vsel %vm1849, %v1872, %v1873
        %v1875 = vrot.slane %v1873, 4
        %v1876 = vrot.slane %v850, 5
        %v1877 = vsel %vm1849, %v1875, %v1876
        %v1878 = vrot.slane %v851, 5
        %v1879 = vrot.slane %v1878, 4
        %v1880 = vrot.slane %v852, 5
        %v1881 = vsel %vm1849, %v1879, %v1880
        %v1882 = vrot.slane %v1880, 4
        %v1883 = vrot.slane %v853, 5
        %v1884 = vsel %vm1849, %v1882, %v1883
        %v1885 = vrot.slane %v854, 5
        %v1886 = vrot.slane %v1885, 4
        %v1887 = vrot.slane %v855, 5
        %v1888 = vsel %vm1849, %v1886, %v1887
        %v1889 = vrot.slane %v1887, 4
        %v1890 = vrot.slane %v856, 5
        %v1891 = vsel %vm1849, %v1889, %v1890
        %v1892 = vrot.slane %v857, 5
        %v1893 = vrot.slane %v1892, 4
        %v1894 = vrot.slane %v858, 5
        %v1895 = vsel %vm1849, %v1893, %v1894
        %v1896 = vrot.slane %v1894, 4
        %v1897 = vrot.slane %v859, 5
        %v1898 = vsel %vm1849, %v1896, %v1897
        %v1899 = vrot.slane %v860, 5
        %v1900 = vrot.slane %v1899, 4
        %v1901 = vrot.slane %v861, 5
        %v1902 = vsel %vm1849, %v1900, %v1901
        %v1903 = vrot.slane %v1901, 4
        %v1904 = vrot.slane %v862, 5
        %v1905 = vsel %vm1849, %v1903, %v1904
        %v1906 = vrot.slane %v863, 5
        %v1907 = vrot.slane %v1906, 4
        %v1908 = vrot.slane %v864, 5
        %v1909 = vsel %vm1849, %v1907, %v1908
        %v1910 = vrot.slane %v1908, 4
        %v1911 = vrot.slane %v865, 5
        %v1912 = vsel %vm1849, %v1910, %v1911
        %v1913 = vrot.slane %v866, 5
        %v1914 = vrot.slane %v1913, 4
        %v1915 = vrot.slane %v867, 5
        %v1916 = vsel %vm1849, %v1914, %v1915
        %v1917 = vrot.slane %v1915, 4
        %v1918 = vrot.slane %v868, 5
        %v1919 = vsel %vm1849, %v1917, %v1918
        %v1920 = vrot.slane %v869, 5
        %v1921 = vrot.slane %v1920, 4
        %v1922 = vrot.slane %v870, 5
        %v1923 = vsel %vm1849, %v1921, %v1922
        %v1924 = vrot.slane %v1922, 4
        %v1925 = vrot.slane %v871, 5
        %v1926 = vsel %vm1849, %v1924, %v1925
        %v1927 = vrot.slane %v872, 5
        %v1928 = vrot.slane %v1927, 4
        %v1929 = vrot.slane %v873, 5
        %v1930 = vsel %vm1849, %v1928, %v1929
        %v1931 = vrot.slane %v1929, 4
        %v1932 = vrot.slane %v874, 5
        %v1933 = vsel %vm1849, %v1931, %v1932
        %v1934 = vrot.slane %v875, 5
        %v1935 = vrot.slane %v1934, 4
        %v1936 = vrot.slane %v876, 5
        %v1937 = vsel %vm1849, %v1935, %v1936
        %v1938 = vrot.slane %v1936, 4
        %v1939 = vrot.slane %v877, 5
        %v1940 = vsel %vm1849, %v1938, %v1939
        %v1941 = vrot.slane %v878, 5
        %v1942 = vrot.slane %v1941, 4
        %v1943 = vrot.slane %v879, 5
        %v1944 = vsel %vm1849, %v1942, %v1943
        %v1945 = vrot.slane %v1943, 4
        %v1946 = vrot.slane %v880, 5
        %v1947 = vsel %vm1849, %v1945, %v1946
        %v1948 = vrot.slane %v881, 5
        %v1949 = vrot.slane %v1948, 4
        %v1950 = vrot.slane %v882, 5
        %v1951 = vsel %vm1849, %v1949, %v1950
        %v1952 = vrot.slane %v1950, 4
        %v1953 = vrot.slane %v883, 5
        %v1954 = vsel %vm1849, %v1952, %v1953
        %v1955 = vrot.slane %v884, 5
        %v1956 = vrot.slane %v1955, 4
        %v1957 = vrot.slane %v885, 5
        %v1958 = vsel %vm1849, %v1956, %v1957
        %v1959 = vrot.slane %v1957, 4
        %v1960 = vrot.slane %v886, 5
        %v1961 = vsel %vm1849, %v1959, %v1960
        %s1962 = scalar_lea.vmem %s1, 4
        %v1963 = vld [vmem:[%s1962] sm:$0x3]
        %v1964 = vunpack.c.l.b16 %v1853
        %v1965 = vunpack.c.l.b16 %v1856
        %v1966 = vunpack.c.l.b16 %v1860
        %v1967 = vunpack.c.l.b16 %v1863
        %v1968 = vunpack.c.l.b16 %v1867
        %v1969 = vunpack.c.l.b16 %v1870
        %v1970 = vunpack.c.l.b16 %v1874
        %v1971 = vunpack.c.l.b16 %v1877
        %v1972 = vunpack.c.l.b16 %v1881
        %v1973 = vunpack.c.l.b16 %v1884
        %v1974 = vunpack.c.l.b16 %v1888
        %v1975 = vunpack.c.l.b16 %v1891
        %v1976 = vunpack.c.l.b16 %v1895
        %v1977 = vunpack.c.l.b16 %v1898
        %v1978 = vunpack.c.l.b16 %v1902
        %v1979 = vunpack.c.l.b16 %v1905
        %v1980 = vunpack.c.l.b16 %v1909
        %v1981 = vunpack.c.l.b16 %v1912
        %v1982 = vunpack.c.l.b16 %v1916
        %v1983 = vunpack.c.l.b16 %v1919
        %v1984 = vunpack.c.l.b16 %v1923
        %v1985 = vunpack.c.l.b16 %v1926
        %v1986 = vunpack.c.l.b16 %v1930
        %v1987 = vunpack.c.l.b16 %v1933
        %v1988 = vunpack.c.l.b16 %v1937
        %v1989 = vunpack.c.l.b16 %v1940
        %v1990 = vunpack.c.l.b16 %v1944
        %v1991 = vunpack.c.l.b16 %v1947
        %v1992 = vunpack.c.l.b16 %v1951
        %v1993 = vunpack.c.l.b16 %v1954
        %v1994 = vunpack.c.l.b16 %v1958
        %v1995 = vunpack.c.l.b16 %v1961
        %v1996 = vpack.c.b16 %v1965, %v1964
        %v1997 = vpack.c.b16 %v1967, %v1966
        %v1998 = vpack.c.b16 %v1969, %v1968
        %v1999 = vpack.c.b16 %v1971, %v1970
        %v2000 = vpack.c.b16 %v1973, %v1972
        %v2001 = vpack.c.b16 %v1975, %v1974
        %v2002 = vpack.c.b16 %v1977, %v1976
        %v2003 = vpack.c.b16 %v1979, %v1978
        %v2004 = vpack.c.b16 %v1981, %v1980
        %v2005 = vpack.c.b16 %v1983, %v1982
        %v2006 = vpack.c.b16 %v1985, %v1984
        %v2007 = vpack.c.b16 %v1987, %v1986
        %v2008 = vpack.c.b16 %v1989, %v1988
        %v2009 = vpack.c.b16 %v1991, %v1990
        %v2010 = vpack.c.b16 %v1993, %v1992
        %v2011 = vpack.c.b16 %v1995, %v1994
        %v2013 = vsel %vm1325, %v1996, 0
        %v2016 = vsel %vm1325, %v1997, 0
        %v2019 = vsel %vm1325, %v1998, 0
        %v2022 = vsel %vm1325, %v1999, 0
        %v2025 = vsel %vm1325, %v2000, 0
        %v2028 = vsel %vm1325, %v2001, 0
        %v2031 = vsel %vm1325, %v2002, 0
        %v2034 = vsel %vm1325, %v2003, 0
        %v2037 = vsel %vm1325, %v2004, 0
        %v2040 = vsel %vm1325, %v2005, 0
        %v2043 = vsel %vm1325, %v2006, 0
        %v2046 = vsel %vm1325, %v2007, 0
        %v2049 = vsel %vm1325, %v2008, 0
        %v2052 = vsel %vm1325, %v2009, 0
        %v2055 = vsel %vm1325, %v2010, 0
        %v2058 = vsel %vm1325, %v2011, 0
        %v2061 = vsel %vm1374, %v1963, 0
        %2063 = vmatprep.subr.bf16.mxu0 0
        %2064 = vmatpush1.bf16.msra.mxu0 0
        %2065 = vmatprep.subr.bf16.mxu0 0
        %2066 = vmatpush1.bf16.msra.mxu0 0
        %2067 = vmatprep.subr.bf16.mxu0 0
        %2068 = vmatpush1.bf16.msra.mxu0 0
        %2069 = vmatprep.subr.bf16.mxu0 0
        %2070 = vmatpush1.bf16.msra.mxu0 0
        %2071 = vmatprep.subr.bf16.mxu0 0
        %2072 = vmatpush1.bf16.msra.mxu0 0
        %2073 = vmatprep.subr.bf16.mxu0 0
        %2074 = vmatpush1.bf16.msra.mxu0 0
        %2075 = vmatprep.subr.bf16.mxu0 0
        %2076 = vmatpush1.bf16.msra.mxu0 0
        %2077 = vmatprep.subr.bf16.mxu0 0
        %2078 = vmatpush1.bf16.msra.mxu0 %v2061
        %2079 = vmatprep.subr.bf16.mxu0 0
        %2080 = vmatpush2.bf16.msra.mxu0 0
        %2081 = vmatprep.subr.bf16.mxu0 0
        %2082 = vmatpush2.bf16.msra.mxu0 0
        %2083 = vmatprep.subr.bf16.mxu0 0
        %2084 = vmatpush2.bf16.msra.mxu0 0
        %2085 = vmatprep.subr.bf16.mxu0 0
        %2086 = vmatpush2.bf16.msra.mxu0 0
        %2087 = vmatprep.subr.bf16.mxu0 0
        %2088 = vmatpush2.bf16.msra.mxu0 0
        %2089 = vmatprep.subr.bf16.mxu0 0
        %2090 = vmatpush2.bf16.msra.mxu0 0
        %2091 = vmatprep.subr.bf16.mxu0 0
        %2092 = vmatpush2.bf16.msra.mxu0 0
        %2093 = vmatprep.subr.bf16.mxu0 0
        %2094 = vmatpush2.bf16.msra.mxu0 0
        %2095 = vmatprep.mubr.bf16.mxu0 0
        %2096 = vmatmul.mubr.bf16.gmra.mxu0 %v2013
        %v2097 = vpop.f32.mrf.mxu0
        %v2098 = vadd.f32 0.0, %v2097
        %v2099 = vpop.f32.mrf.mxu0
        %v2100 = vpop.f32.mrf.mxu0
        %v2101 = vadd.f32 0.0, %v2100
        %v2102 = vpop.f32.mrf.mxu0
        %2103 = vmatprep.mubr.bf16.mxu0 0
        %2104 = vmatmul.mubr.bf16.gmra.mxu0 %v2016
        %v2105 = vpop.f32.mrf.mxu0
        %v2106 = vadd.f32 0.0, %v2105
        %v2107 = vpop.f32.mrf.mxu0
        %v2108 = vpop.f32.mrf.mxu0
        %v2109 = vadd.f32 0.0, %v2108
        %v2110 = vpop.f32.mrf.mxu0
        %2111 = vmatprep.mubr.bf16.mxu0 0
        %2112 = vmatmul.mubr.bf16.gmra.mxu0 %v2019
        %v2113 = vpop.f32.mrf.mxu0
        %v2114 = vadd.f32 0.0, %v2113
        %v2115 = vpop.f32.mrf.mxu0
        %v2116 = vpop.f32.mrf.mxu0
        %v2117 = vadd.f32 0.0, %v2116
        %v2118 = vpop.f32.mrf.mxu0
        %2119 = vmatprep.mubr.bf16.mxu0 0
        %2120 = vmatmul.mubr.bf16.gmra.mxu0 %v2022
        %v2121 = vpop.f32.mrf.mxu0
        %v2122 = vadd.f32 0.0, %v2121
        %v2123 = vpop.f32.mrf.mxu0
        %v2124 = vpop.f32.mrf.mxu0
        %v2125 = vadd.f32 0.0, %v2124
        %v2126 = vpop.f32.mrf.mxu0
        %2127 = vmatprep.mubr.bf16.mxu0 0
        %2128 = vmatmul.mubr.bf16.gmra.mxu0 %v2025
        %v2129 = vpop.f32.mrf.mxu0
        %v2130 = vadd.f32 0.0, %v2129
        %v2131 = vpop.f32.mrf.mxu0
        %v2132 = vpop.f32.mrf.mxu0
        %v2133 = vadd.f32 0.0, %v2132
        %v2134 = vpop.f32.mrf.mxu0
        %2135 = vmatprep.mubr.bf16.mxu0 0
        %2136 = vmatmul.mubr.bf16.gmra.mxu0 %v2028
        %v2137 = vpop.f32.mrf.mxu0
        %v2138 = vadd.f32 0.0, %v2137
        %v2139 = vpop.f32.mrf.mxu0
        %v2140 = vpop.f32.mrf.mxu0
        %v2141 = vadd.f32 0.0, %v2140
        %v2142 = vpop.f32.mrf.mxu0
        %2143 = vmatprep.mubr.bf16.mxu0 0
        %2144 = vmatmul.mubr.bf16.gmra.mxu0 %v2031
        %v2145 = vpop.f32.mrf.mxu0
        %v2146 = vadd.f32 0.0, %v2145
        %v2147 = vpop.f32.mrf.mxu0
        %v2148 = vpop.f32.mrf.mxu0
        %v2149 = vadd.f32 0.0, %v2148
        %v2150 = vpop.f32.mrf.mxu0
        %2151 = vmatprep.mubr.bf16.mxu0 0
        %2152 = vmatmul.mubr.bf16.gmra.mxu0 %v2034
        %v2153 = vpop.f32.mrf.mxu0
        %v2154 = vadd.f32 0.0, %v2153
        %v2155 = vpop.f32.mrf.mxu0
        %v2156 = vpop.f32.mrf.mxu0
        %v2157 = vadd.f32 0.0, %v2156
        %v2158 = vpop.f32.mrf.mxu0
        %2159 = vmatprep.mubr.bf16.mxu0 0
        %2160 = vmatmul.mubr.bf16.gmra.mxu0 %v2037
        %v2161 = vpop.f32.mrf.mxu0
        %v2162 = vadd.f32 0.0, %v2161
        %v2163 = vpop.f32.mrf.mxu0
        %v2164 = vpop.f32.mrf.mxu0
        %v2165 = vadd.f32 0.0, %v2164
        %v2166 = vpop.f32.mrf.mxu0
        %2167 = vmatprep.mubr.bf16.mxu0 0
        %2168 = vmatmul.mubr.bf16.gmra.mxu0 %v2040
        %v2169 = vpop.f32.mrf.mxu0
        %v2170 = vadd.f32 0.0, %v2169
        %v2171 = vpop.f32.mrf.mxu0
        %v2172 = vpop.f32.mrf.mxu0
        %v2173 = vadd.f32 0.0, %v2172
        %v2174 = vpop.f32.mrf.mxu0
        %2175 = vmatprep.mubr.bf16.mxu0 0
        %2176 = vmatmul.mubr.bf16.gmra.mxu0 %v2043
        %v2177 = vpop.f32.mrf.mxu0
        %v2178 = vadd.f32 0.0, %v2177
        %v2179 = vpop.f32.mrf.mxu0
        %v2180 = vpop.f32.mrf.mxu0
        %v2181 = vadd.f32 0.0, %v2180
        %v2182 = vpop.f32.mrf.mxu0
        %2183 = vmatprep.mubr.bf16.mxu0 0
        %2184 = vmatmul.mubr.bf16.gmra.mxu0 %v2046
        %v2185 = vpop.f32.mrf.mxu0
        %v2186 = vadd.f32 0.0, %v2185
        %v2187 = vpop.f32.mrf.mxu0
        %v2188 = vpop.f32.mrf.mxu0
        %v2189 = vadd.f32 0.0, %v2188
        %v2190 = vpop.f32.mrf.mxu0
        %2191 = vmatprep.mubr.bf16.mxu0 0
        %2192 = vmatmul.mubr.bf16.gmra.mxu0 %v2049
        %v2193 = vpop.f32.mrf.mxu0
        %v2194 = vadd.f32 0.0, %v2193
        %v2195 = vpop.f32.mrf.mxu0
        %v2196 = vpop.f32.mrf.mxu0
        %v2197 = vadd.f32 0.0, %v2196
        %v2198 = vpop.f32.mrf.mxu0
        %2199 = vmatprep.mubr.bf16.mxu0 0
        %2200 = vmatmul.mubr.bf16.gmra.mxu0 %v2052
        %v2201 = vpop.f32.mrf.mxu0
        %v2202 = vadd.f32 0.0, %v2201
        %v2203 = vpop.f32.mrf.mxu0
        %v2204 = vpop.f32.mrf.mxu0
        %v2205 = vadd.f32 0.0, %v2204
        %v2206 = vpop.f32.mrf.mxu0
        %2207 = vmatprep.mubr.bf16.mxu0 0
        %2208 = vmatmul.mubr.bf16.gmra.mxu0 %v2055
        %v2209 = vpop.f32.mrf.mxu0
        %v2210 = vadd.f32 0.0, %v2209
        %v2211 = vpop.f32.mrf.mxu0
        %v2212 = vpop.f32.mrf.mxu0
        %v2213 = vadd.f32 0.0, %v2212
        %v2214 = vpop.f32.mrf.mxu0
        %2215 = vmatprep.mubr.bf16.mxu0 0
        %2216 = vmatmul.mubr.bf16.gmra.mxu0 %v2058
        %v2217 = vpop.f32.mrf.mxu0
        %v2218 = vadd.f32 0.0, %v2217
        %v2219 = vpop.f32.mrf.mxu0
        %v2220 = vpop.f32.mrf.mxu0
        %v2221 = vadd.f32 0.0, %v2220
        %v2222 = vpop.f32.mrf.mxu0
        %2223 = vdwg.mxu0
        %v2224 = vadd.f32 %v1705, %v2098
        %v2225 = vadd.f32 %v1708, %v2101
        %v2226 = vadd.f32 %v1713, %v2106
        %v2227 = vadd.f32 %v1716, %v2109
        %v2228 = vadd.f32 %v1721, %v2114
        %v2229 = vadd.f32 %v1724, %v2117
        %v2230 = vadd.f32 %v1729, %v2122
        %v2231 = vadd.f32 %v1732, %v2125
        %v2232 = vadd.f32 %v1737, %v2130
        %v2233 = vadd.f32 %v1740, %v2133
        %v2234 = vadd.f32 %v1745, %v2138
        %v2235 = vadd.f32 %v1748, %v2141
        %v2236 = vadd.f32 %v1753, %v2146
        %v2237 = vadd.f32 %v1756, %v2149
        %v2238 = vadd.f32 %v1761, %v2154
        %v2239 = vadd.f32 %v1764, %v2157
        %v2240 = vadd.f32 %v1769, %v2162
        %v2241 = vadd.f32 %v1772, %v2165
        %v2242 = vadd.f32 %v1777, %v2170
        %v2243 = vadd.f32 %v1780, %v2173
        %v2244 = vadd.f32 %v1785, %v2178
        %v2245 = vadd.f32 %v1788, %v2181
        %v2246 = vadd.f32 %v1793, %v2186
        %v2247 = vadd.f32 %v1796, %v2189
        %v2248 = vadd.f32 %v1801, %v2194
        %v2249 = vadd.f32 %v1804, %v2197
        %v2250 = vadd.f32 %v1809, %v2202
        %v2251 = vadd.f32 %v1812, %v2205
        %v2252 = vadd.f32 %v1817, %v2210
        %v2253 = vadd.f32 %v1820, %v2213
        %v2254 = vadd.f32 %v1825, %v2218
        %v2255 = vadd.f32 %v1828, %v2221
        %s2256 = scalar_lea.vmem %s792, 192 [#allocation2]
        %v2257 = vld [vmem:[%s2256] sm:$0xf]
        %v2258 = vld [vmem:[%s2256 + $0x4] sm:$0xf]
        %v2259 = vld [vmem:[%s2256 + $0x8] sm:$0x1]
        %v2260 = vld [vmem:[%s2256 + $0xc] sm:$0xf]
        %v2261 = vld [vmem:[%s2256 + $0x10] sm:$0xf]
        %v2262 = vld [vmem:[%s2256 + $0x14] sm:$0x1]
        %v2263 = vld [vmem:[%s2256 + $0x18] sm:$0xf]
        %v2264 = vld [vmem:[%s2256 + $0x1c] sm:$0xf]
        %v2265 = vld [vmem:[%s2256 + $0x20] sm:$0x1]
        %v2266 = vld [vmem:[%s2256 + $0x24] sm:$0xf]
        %v2267 = vld [vmem:[%s2256 + $0x28] sm:$0xf]
        %v2268 = vld [vmem:[%s2256 + $0x2c] sm:$0x1]
        %v2269 = vld [vmem:[%s2256 + $0x30] sm:$0xf]
        %v2270 = vld [vmem:[%s2256 + $0x34] sm:$0xf]
        %v2271 = vld [vmem:[%s2256 + $0x38] sm:$0x1]
        %v2272 = vld [vmem:[%s2256 + $0x3c] sm:$0xf]
        %v2273 = vld [vmem:[%s2256 + $0x40] sm:$0xf]
        %v2274 = vld [vmem:[%s2256 + $0x44] sm:$0x1]
        %v2275 = vld [vmem:[%s2256 + $0x48] sm:$0xf]
        %v2276 = vld [vmem:[%s2256 + $0x4c] sm:$0xf]
        %v2277 = vld [vmem:[%s2256 + $0x50] sm:$0x1]
        %v2278 = vld [vmem:[%s2256 + $0x54] sm:$0xf]
        %v2279 = vld [vmem:[%s2256 + $0x58] sm:$0xf]
        %v2280 = vld [vmem:[%s2256 + $0x5c] sm:$0x1]
        %v2281 = vld [vmem:[%s2256 + $0x60] sm:$0xf]
        %v2282 = vld [vmem:[%s2256 + $0x64] sm:$0xf]
        %v2283 = vld [vmem:[%s2256 + $0x68] sm:$0x1]
        %v2284 = vld [vmem:[%s2256 + $0x6c] sm:$0xf]
        %v2285 = vld [vmem:[%s2256 + $0x70] sm:$0xf]
        %v2286 = vld [vmem:[%s2256 + $0x74] sm:$0x1]
        %v2287 = vld [vmem:[%s2256 + $0x78] sm:$0xf]
        %v2288 = vld [vmem:[%s2256 + $0x7c] sm:$0xf]
        %v2289 = vld [vmem:[%s2256 + $0x80] sm:$0x1]
        %v2290 = vld [vmem:[%s2256 + $0x84] sm:$0xf]
        %v2291 = vld [vmem:[%s2256 + $0x88] sm:$0xf]
        %v2292 = vld [vmem:[%s2256 + $0x8c] sm:$0x1]
        %v2293 = vld [vmem:[%s2256 + $0x90] sm:$0xf]
        %v2294 = vld [vmem:[%s2256 + $0x94] sm:$0xf]
        %v2295 = vld [vmem:[%s2256 + $0x98] sm:$0x1]
        %v2296 = vld [vmem:[%s2256 + $0x9c] sm:$0xf]
        %v2297 = vld [vmem:[%s2256 + $0xa0] sm:$0xf]
        %v2298 = vld [vmem:[%s2256 + $0xa4] sm:$0x1]
        %v2299 = vld [vmem:[%s2256 + $0xa8] sm:$0xf]
        %v2300 = vld [vmem:[%s2256 + $0xac] sm:$0xf]
        %v2301 = vld [vmem:[%s2256 + $0xb0] sm:$0x1]
        %v2302 = vld [vmem:[%s2256 + $0xb4] sm:$0xf]
        %v2303 = vld [vmem:[%s2256 + $0xb8] sm:$0xf]
        %v2304 = vld [vmem:[%s2256 + $0xbc] sm:$0x1]
        %s2305 = scalar_lea.vmem %s1, 6
        %v2306 = vld [vmem:[%s2305] sm:$0x3]
        %v2339 = vunpack.c.l.b16 %v2257
        %v2340 = vunpack.c.l.b16 %v2258
        %v2341 = vunpack.c.l.b16 %v2260
        %v2342 = vunpack.c.l.b16 %v2261
        %v2343 = vunpack.c.l.b16 %v2263
        %v2344 = vunpack.c.l.b16 %v2264
        %v2345 = vunpack.c.l.b16 %v2266
        %v2346 = vunpack.c.l.b16 %v2267
        %v2347 = vunpack.c.l.b16 %v2269
        %v2348 = vunpack.c.l.b16 %v2270
        %v2349 = vunpack.c.l.b16 %v2272
        %v2350 = vunpack.c.l.b16 %v2273
        %v2351 = vunpack.c.l.b16 %v2275
        %v2352 = vunpack.c.l.b16 %v2276
        %v2353 = vunpack.c.l.b16 %v2278
        %v2354 = vunpack.c.l.b16 %v2279
        %v2355 = vunpack.c.l.b16 %v2281
        %v2356 = vunpack.c.l.b16 %v2282
        %v2357 = vunpack.c.l.b16 %v2284
        %v2358 = vunpack.c.l.b16 %v2285
        %v2359 = vunpack.c.l.b16 %v2287
        %v2360 = vunpack.c.l.b16 %v2288
        %v2361 = vunpack.c.l.b16 %v2290
        %v2362 = vunpack.c.l.b16 %v2291
        %v2363 = vunpack.c.l.b16 %v2293
        %v2364 = vunpack.c.l.b16 %v2294
        %v2365 = vunpack.c.l.b16 %v2296
        %v2366 = vunpack.c.l.b16 %v2297
        %v2367 = vunpack.c.l.b16 %v2299
        %v2368 = vunpack.c.l.b16 %v2300
        %v2369 = vunpack.c.l.b16 %v2302
        %v2370 = vunpack.c.l.b16 %v2303
        %v2371 = vpack.c.b16 %v2340, %v2339
        %v2372 = vpack.c.b16 %v2342, %v2341
        %v2373 = vpack.c.b16 %v2344, %v2343
        %v2374 = vpack.c.b16 %v2346, %v2345
        %v2375 = vpack.c.b16 %v2348, %v2347
        %v2376 = vpack.c.b16 %v2350, %v2349
        %v2377 = vpack.c.b16 %v2352, %v2351
        %v2378 = vpack.c.b16 %v2354, %v2353
        %v2379 = vpack.c.b16 %v2356, %v2355
        %v2380 = vpack.c.b16 %v2358, %v2357
        %v2381 = vpack.c.b16 %v2360, %v2359
        %v2382 = vpack.c.b16 %v2362, %v2361
        %v2383 = vpack.c.b16 %v2364, %v2363
        %v2384 = vpack.c.b16 %v2366, %v2365
        %v2385 = vpack.c.b16 %v2368, %v2367
        %v2386 = vpack.c.b16 %v2370, %v2369
        %v2388 = vsel %vm1325, %v2371, 0
        %v2391 = vsel %vm1325, %v2372, 0
        %v2394 = vsel %vm1325, %v2373, 0
        %v2397 = vsel %vm1325, %v2374, 0
        %v2400 = vsel %vm1325, %v2375, 0
        %v2403 = vsel %vm1325, %v2376, 0
        %v2406 = vsel %vm1325, %v2377, 0
        %v2409 = vsel %vm1325, %v2378, 0
        %v2412 = vsel %vm1325, %v2379, 0
        %v2415 = vsel %vm1325, %v2380, 0
        %v2418 = vsel %vm1325, %v2381, 0
        %v2421 = vsel %vm1325, %v2382, 0
        %v2424 = vsel %vm1325, %v2383, 0
        %v2427 = vsel %vm1325, %v2384, 0
        %v2430 = vsel %vm1325, %v2385, 0
        %v2433 = vsel %vm1325, %v2386, 0
        %v2436 = vsel %vm1374, %v2306, 0
        %2438 = vmatprep.subr.bf16.mxu0 0
        %2439 = vmatpush1.bf16.msra.mxu0 0
        %2440 = vmatprep.subr.bf16.mxu0 0
        %2441 = vmatpush1.bf16.msra.mxu0 0
        %2442 = vmatprep.subr.bf16.mxu0 0
        %2443 = vmatpush1.bf16.msra.mxu0 0
        %2444 = vmatprep.subr.bf16.mxu0 0
        %2445 = vmatpush1.bf16.msra.mxu0 0
        %2446 = vmatprep.subr.bf16.mxu0 0
        %2447 = vmatpush1.bf16.msra.mxu0 0
        %2448 = vmatprep.subr.bf16.mxu0 0
        %2449 = vmatpush1.bf16.msra.mxu0 0
        %2450 = vmatprep.subr.bf16.mxu0 0
        %2451 = vmatpush1.bf16.msra.mxu0 0
        %2452 = vmatprep.subr.bf16.mxu0 0
        %2453 = vmatpush1.bf16.msra.mxu0 %v2436
        %2454 = vmatprep.subr.bf16.mxu0 0
        %2455 = vmatpush2.bf16.msra.mxu0 0
        %2456 = vmatprep.subr.bf16.mxu0 0
        %2457 = vmatpush2.bf16.msra.mxu0 0
        %2458 = vmatprep.subr.bf16.mxu0 0
        %2459 = vmatpush2.bf16.msra.mxu0 0
        %2460 = vmatprep.subr.bf16.mxu0 0
        %2461 = vmatpush2.bf16.msra.mxu0 0
        %2462 = vmatprep.subr.bf16.mxu0 0
        %2463 = vmatpush2.bf16.msra.mxu0 0
        %2464 = vmatprep.subr.bf16.mxu0 0
        %2465 = vmatpush2.bf16.msra.mxu0 0
        %2466 = vmatprep.subr.bf16.mxu0 0
        %2467 = vmatpush2.bf16.msra.mxu0 0
        %2468 = vmatprep.subr.bf16.mxu0 0
        %2469 = vmatpush2.bf16.msra.mxu0 0
        %2470 = vmatprep.mubr.bf16.mxu0 0
        %2471 = vmatmul.mubr.bf16.gmra.mxu0 %v2388
        %v2472 = vpop.f32.mrf.mxu0
        %v2473 = vadd.f32 0.0, %v2472
        %v2474 = vpop.f32.mrf.mxu0
        %v2475 = vpop.f32.mrf.mxu0
        %v2476 = vadd.f32 0.0, %v2475
        %v2477 = vpop.f32.mrf.mxu0
        %2478 = vmatprep.mubr.bf16.mxu0 0
        %2479 = vmatmul.mubr.bf16.gmra.mxu0 %v2391
        %v2480 = vpop.f32.mrf.mxu0
        %v2481 = vadd.f32 0.0, %v2480
        %v2482 = vpop.f32.mrf.mxu0
        %v2483 = vpop.f32.mrf.mxu0
        %v2484 = vadd.f32 0.0, %v2483
        %v2485 = vpop.f32.mrf.mxu0
        %2486 = vmatprep.mubr.bf16.mxu0 0
        %2487 = vmatmul.mubr.bf16.gmra.mxu0 %v2394
        %v2488 = vpop.f32.mrf.mxu0
        %v2489 = vadd.f32 0.0, %v2488
        %v2490 = vpop.f32.mrf.mxu0
        %v2491 = vpop.f32.mrf.mxu0
        %v2492 = vadd.f32 0.0, %v2491
        %v2493 = vpop.f32.mrf.mxu0
        %2494 = vmatprep.mubr.bf16.mxu0 0
        %2495 = vmatmul.mubr.bf16.gmra.mxu0 %v2397
        %v2496 = vpop.f32.mrf.mxu0
        %v2497 = vadd.f32 0.0, %v2496
        %v2498 = vpop.f32.mrf.mxu0
        %v2499 = vpop.f32.mrf.mxu0
        %v2500 = vadd.f32 0.0, %v2499
        %v2501 = vpop.f32.mrf.mxu0
        %2502 = vmatprep.mubr.bf16.mxu0 0
        %2503 = vmatmul.mubr.bf16.gmra.mxu0 %v2400
        %v2504 = vpop.f32.mrf.mxu0
        %v2505 = vadd.f32 0.0, %v2504
        %v2506 = vpop.f32.mrf.mxu0
        %v2507 = vpop.f32.mrf.mxu0
        %v2508 = vadd.f32 0.0, %v2507
        %v2509 = vpop.f32.mrf.mxu0
        %2510 = vmatprep.mubr.bf16.mxu0 0
        %2511 = vmatmul.mubr.bf16.gmra.mxu0 %v2403
        %v2512 = vpop.f32.mrf.mxu0
        %v2513 = vadd.f32 0.0, %v2512
        %v2514 = vpop.f32.mrf.mxu0
        %v2515 = vpop.f32.mrf.mxu0
        %v2516 = vadd.f32 0.0, %v2515
        %v2517 = vpop.f32.mrf.mxu0
        %2518 = vmatprep.mubr.bf16.mxu0 0
        %2519 = vmatmul.mubr.bf16.gmra.mxu0 %v2406
        %v2520 = vpop.f32.mrf.mxu0
        %v2521 = vadd.f32 0.0, %v2520
        %v2522 = vpop.f32.mrf.mxu0
        %v2523 = vpop.f32.mrf.mxu0
        %v2524 = vadd.f32 0.0, %v2523
        %v2525 = vpop.f32.mrf.mxu0
        %2526 = vmatprep.mubr.bf16.mxu0 0
        %2527 = vmatmul.mubr.bf16.gmra.mxu0 %v2409
        %v2528 = vpop.f32.mrf.mxu0
        %v2529 = vadd.f32 0.0, %v2528
        %v2530 = vpop.f32.mrf.mxu0
        %v2531 = vpop.f32.mrf.mxu0
        %v2532 = vadd.f32 0.0, %v2531
        %v2533 = vpop.f32.mrf.mxu0
        %2534 = vmatprep.mubr.bf16.mxu0 0
        %2535 = vmatmul.mubr.bf16.gmra.mxu0 %v2412
        %v2536 = vpop.f32.mrf.mxu0
        %v2537 = vadd.f32 0.0, %v2536
        %v2538 = vpop.f32.mrf.mxu0
        %v2539 = vpop.f32.mrf.mxu0
        %v2540 = vadd.f32 0.0, %v2539
        %v2541 = vpop.f32.mrf.mxu0
        %2542 = vmatprep.mubr.bf16.mxu0 0
        %2543 = vmatmul.mubr.bf16.gmra.mxu0 %v2415
        %v2544 = vpop.f32.mrf.mxu0
        %v2545 = vadd.f32 0.0, %v2544
        %v2546 = vpop.f32.mrf.mxu0
        %v2547 = vpop.f32.mrf.mxu0
        %v2548 = vadd.f32 0.0, %v2547
        %v2549 = vpop.f32.mrf.mxu0
        %2550 = vmatprep.mubr.bf16.mxu0 0
        %2551 = vmatmul.mubr.bf16.gmra.mxu0 %v2418
        %v2552 = vpop.f32.mrf.mxu0
        %v2553 = vadd.f32 0.0, %v2552
        %v2554 = vpop.f32.mrf.mxu0
        %v2555 = vpop.f32.mrf.mxu0
        %v2556 = vadd.f32 0.0, %v2555
        %v2557 = vpop.f32.mrf.mxu0
        %2558 = vmatprep.mubr.bf16.mxu0 0
        %2559 = vmatmul.mubr.bf16.gmra.mxu0 %v2421
        %v2560 = vpop.f32.mrf.mxu0
        %v2561 = vadd.f32 0.0, %v2560
        %v2562 = vpop.f32.mrf.mxu0
        %v2563 = vpop.f32.mrf.mxu0
        %v2564 = vadd.f32 0.0, %v2563
        %v2565 = vpop.f32.mrf.mxu0
        %2566 = vmatprep.mubr.bf16.mxu0 0
        %2567 = vmatmul.mubr.bf16.gmra.mxu0 %v2424
        %v2568 = vpop.f32.mrf.mxu0
        %v2569 = vadd.f32 0.0, %v2568
        %v2570 = vpop.f32.mrf.mxu0
        %v2571 = vpop.f32.mrf.mxu0
        %v2572 = vadd.f32 0.0, %v2571
        %v2573 = vpop.f32.mrf.mxu0
        %2574 = vmatprep.mubr.bf16.mxu0 0
        %2575 = vmatmul.mubr.bf16.gmra.mxu0 %v2427
        %v2576 = vpop.f32.mrf.mxu0
        %v2577 = vadd.f32 0.0, %v2576
        %v2578 = vpop.f32.mrf.mxu0
        %v2579 = vpop.f32.mrf.mxu0
        %v2580 = vadd.f32 0.0, %v2579
        %v2581 = vpop.f32.mrf.mxu0
        %2582 = vmatprep.mubr.bf16.mxu0 0
        %2583 = vmatmul.mubr.bf16.gmra.mxu0 %v2430
        %v2584 = vpop.f32.mrf.mxu0
        %v2585 = vadd.f32 0.0, %v2584
        %v2586 = vpop.f32.mrf.mxu0
        %v2587 = vpop.f32.mrf.mxu0
        %v2588 = vadd.f32 0.0, %v2587
        %v2589 = vpop.f32.mrf.mxu0
        %2590 = vmatprep.mubr.bf16.mxu0 0
        %2591 = vmatmul.mubr.bf16.gmra.mxu0 %v2433
        %v2592 = vpop.f32.mrf.mxu0
        %v2593 = vadd.f32 0.0, %v2592
        %v2594 = vpop.f32.mrf.mxu0
        %v2595 = vpop.f32.mrf.mxu0
        %v2596 = vadd.f32 0.0, %v2595
        %v2597 = vpop.f32.mrf.mxu0
        %2598 = vdwg.mxu0
        %v2599 = vadd.f32 %v2224, %v2473
        %v2600 = vadd.f32 %v2225, %v2476
        %v2601 = vadd.f32 %v2226, %v2481
        %v2602 = vadd.f32 %v2227, %v2484
        %v2603 = vadd.f32 %v2228, %v2489
        %v2604 = vadd.f32 %v2229, %v2492
        %v2605 = vadd.f32 %v2230, %v2497
        %v2606 = vadd.f32 %v2231, %v2500
        %v2607 = vadd.f32 %v2232, %v2505
        %v2608 = vadd.f32 %v2233, %v2508
        %v2609 = vadd.f32 %v2234, %v2513
        %v2610 = vadd.f32 %v2235, %v2516
        %v2611 = vadd.f32 %v2236, %v2521
        %v2612 = vadd.f32 %v2237, %v2524
        %v2613 = vadd.f32 %v2238, %v2529
        %v2614 = vadd.f32 %v2239, %v2532
        %v2615 = vadd.f32 %v2240, %v2537
        %v2616 = vadd.f32 %v2241, %v2540
        %v2617 = vadd.f32 %v2242, %v2545
        %v2618 = vadd.f32 %v2243, %v2548
        %v2619 = vadd.f32 %v2244, %v2553
        %v2620 = vadd.f32 %v2245, %v2556
        %v2621 = vadd.f32 %v2246, %v2561
        %v2622 = vadd.f32 %v2247, %v2564
        %v2623 = vadd.f32 %v2248, %v2569
        %v2624 = vadd.f32 %v2249, %v2572
        %v2625 = vadd.f32 %v2250, %v2577
        %v2626 = vadd.f32 %v2251, %v2580
        %v2627 = vadd.f32 %v2252, %v2585
        %v2628 = vadd.f32 %v2253, %v2588
        %v2629 = vadd.f32 %v2254, %v2593
        %v2630 = vadd.f32 %v2255, %v2596
        %v2632 = vshrl.u32 %v2257, 16
        %v2634 = vrot.slane %v2632, 4
        %v2635 = vshll.u32 %v2257, 16
        %v2637 = vrot.slane %v2635, 5
        %v2638 = vor.u32 %v2634, %v2637
        %v2639 = vrot.slane %v2638, 4
        %v2641 = vshll.u32 %v2258, 16
        %v2643 = vrot.slane %v2641, 5
        %v2644 = vsel %vm890, %v2639, %v2643
        %v2645 = vshrl.u32 %v2258, 16
        %v2647 = vrot.slane %v2645, 4
        %v2648 = vor.u32 %v2647, %v2643
        %v2649 = vrot.slane %v2648, 4
        %v2651 = vshll.u32 %v2259, 16
        %v2653 = vrot.slane %v2651, 5
        %v2654 = vsel %vm890, %v2649, %v2653
        %v2656 = vshrl.u32 %v2260, 16
        %v2658 = vrot.slane %v2656, 4
        %v2659 = vshll.u32 %v2260, 16
        %v2661 = vrot.slane %v2659, 5
        %v2662 = vor.u32 %v2658, %v2661
        %v2663 = vrot.slane %v2662, 4
        %v2665 = vshll.u32 %v2261, 16
        %v2667 = vrot.slane %v2665, 5
        %v2668 = vsel %vm890, %v2663, %v2667
        %v2669 = vshrl.u32 %v2261, 16
        %v2671 = vrot.slane %v2669, 4
        %v2672 = vor.u32 %v2671, %v2667
        %v2673 = vrot.slane %v2672, 4
        %v2675 = vshll.u32 %v2262, 16
        %v2677 = vrot.slane %v2675, 5
        %v2678 = vsel %vm890, %v2673, %v2677
        %v2680 = vshrl.u32 %v2263, 16
        %v2682 = vrot.slane %v2680, 4
        %v2683 = vshll.u32 %v2263, 16
        %v2685 = vrot.slane %v2683, 5
        %v2686 = vor.u32 %v2682, %v2685
        %v2687 = vrot.slane %v2686, 4
        %v2689 = vshll.u32 %v2264, 16
        %v2691 = vrot.slane %v2689, 5
        %v2692 = vsel %vm890, %v2687, %v2691
        %v2693 = vshrl.u32 %v2264, 16
        %v2695 = vrot.slane %v2693, 4
        %v2696 = vor.u32 %v2695, %v2691
        %v2697 = vrot.slane %v2696, 4
        %v2699 = vshll.u32 %v2265, 16
        %v2701 = vrot.slane %v2699, 5
        %v2702 = vsel %vm890, %v2697, %v2701
        %v2704 = vshrl.u32 %v2266, 16
        %v2706 = vrot.slane %v2704, 4
        %v2707 = vshll.u32 %v2266, 16
        %v2709 = vrot.slane %v2707, 5
        %v2710 = vor.u32 %v2706, %v2709
        %v2711 = vrot.slane %v2710, 4
        %v2713 = vshll.u32 %v2267, 16
        %v2715 = vrot.slane %v2713, 5
        %v2716 = vsel %vm890, %v2711, %v2715
        %v2717 = vshrl.u32 %v2267, 16
        %v2719 = vrot.slane %v2717, 4
        %v2720 = vor.u32 %v2719, %v2715
        %v2721 = vrot.slane %v2720, 4
        %v2723 = vshll.u32 %v2268, 16
        %v2725 = vrot.slane %v2723, 5
        %v2726 = vsel %vm890, %v2721, %v2725
        %v2728 = vshrl.u32 %v2269, 16
        %v2730 = vrot.slane %v2728, 4
        %v2731 = vshll.u32 %v2269, 16
        %v2733 = vrot.slane %v2731, 5
        %v2734 = vor.u32 %v2730, %v2733
        %v2735 = vrot.slane %v2734, 4
        %v2737 = vshll.u32 %v2270, 16
        %v2739 = vrot.slane %v2737, 5
        %v2740 = vsel %vm890, %v2735, %v2739
        %v2741 = vshrl.u32 %v2270, 16
        %v2743 = vrot.slane %v2741, 4
        %v2744 = vor.u32 %v2743, %v2739
        %v2745 = vrot.slane %v2744, 4
        %v2747 = vshll.u32 %v2271, 16
        %v2749 = vrot.slane %v2747, 5
        %v2750 = vsel %vm890, %v2745, %v2749
        %v2752 = vshrl.u32 %v2272, 16
        %v2754 = vrot.slane %v2752, 4
        %v2755 = vshll.u32 %v2272, 16
        %v2757 = vrot.slane %v2755, 5
        %v2758 = vor.u32 %v2754, %v2757
        %v2759 = vrot.slane %v2758, 4
        %v2761 = vshll.u32 %v2273, 16
        %v2763 = vrot.slane %v2761, 5
        %v2764 = vsel %vm890, %v2759, %v2763
        %v2765 = vshrl.u32 %v2273, 16
        %v2767 = vrot.slane %v2765, 4
        %v2768 = vor.u32 %v2767, %v2763
        %v2769 = vrot.slane %v2768, 4
        %v2771 = vshll.u32 %v2274, 16
        %v2773 = vrot.slane %v2771, 5
        %v2774 = vsel %vm890, %v2769, %v2773
        %v2776 = vshrl.u32 %v2275, 16
        %v2778 = vrot.slane %v2776, 4
        %v2779 = vshll.u32 %v2275, 16
        %v2781 = vrot.slane %v2779, 5
        %v2782 = vor.u32 %v2778, %v2781
        %v2783 = vrot.slane %v2782, 4
        %v2785 = vshll.u32 %v2276, 16
        %v2787 = vrot.slane %v2785, 5
        %v2788 = vsel %vm890, %v2783, %v2787
        %v2789 = vshrl.u32 %v2276, 16
        %v2791 = vrot.slane %v2789, 4
        %v2792 = vor.u32 %v2791, %v2787
        %v2793 = vrot.slane %v2792, 4
        %v2795 = vshll.u32 %v2277, 16
        %v2797 = vrot.slane %v2795, 5
        %v2798 = vsel %vm890, %v2793, %v2797
        %v2800 = vshrl.u32 %v2278, 16
        %v2802 = vrot.slane %v2800, 4
        %v2803 = vshll.u32 %v2278, 16
        %v2805 = vrot.slane %v2803, 5
        %v2806 = vor.u32 %v2802, %v2805
        %v2807 = vrot.slane %v2806, 4
        %v2809 = vshll.u32 %v2279, 16
        %v2811 = vrot.slane %v2809, 5
        %v2812 = vsel %vm890, %v2807, %v2811
        %v2813 = vshrl.u32 %v2279, 16
        %v2815 = vrot.slane %v2813, 4
        %v2816 = vor.u32 %v2815, %v2811
        %v2817 = vrot.slane %v2816, 4
        %v2819 = vshll.u32 %v2280, 16
        %v2821 = vrot.slane %v2819, 5
        %v2822 = vsel %vm890, %v2817, %v2821
        %v2824 = vshrl.u32 %v2281, 16
        %v2826 = vrot.slane %v2824, 4
        %v2827 = vshll.u32 %v2281, 16
        %v2829 = vrot.slane %v2827, 5
        %v2830 = vor.u32 %v2826, %v2829
        %v2831 = vrot.slane %v2830, 4
        %v2833 = vshll.u32 %v2282, 16
        %v2835 = vrot.slane %v2833, 5
        %v2836 = vsel %vm890, %v2831, %v2835
        %v2837 = vshrl.u32 %v2282, 16
        %v2839 = vrot.slane %v2837, 4
        %v2840 = vor.u32 %v2839, %v2835
        %v2841 = vrot.slane %v2840, 4
        %v2843 = vshll.u32 %v2283, 16
        %v2845 = vrot.slane %v2843, 5
        %v2846 = vsel %vm890, %v2841, %v2845
        %v2848 = vshrl.u32 %v2284, 16
        %v2850 = vrot.slane %v2848, 4
        %v2851 = vshll.u32 %v2284, 16
        %v2853 = vrot.slane %v2851, 5
        %v2854 = vor.u32 %v2850, %v2853
        %v2855 = vrot.slane %v2854, 4
        %v2857 = vshll.u32 %v2285, 16
        %v2859 = vrot.slane %v2857, 5
        %v2860 = vsel %vm890, %v2855, %v2859
        %v2861 = vshrl.u32 %v2285, 16
        %v2863 = vrot.slane %v2861, 4
        %v2864 = vor.u32 %v2863, %v2859
        %v2865 = vrot.slane %v2864, 4
        %v2867 = vshll.u32 %v2286, 16
        %v2869 = vrot.slane %v2867, 5
        %v2870 = vsel %vm890, %v2865, %v2869
        %v2872 = vshrl.u32 %v2287, 16
        %v2874 = vrot.slane %v2872, 4
        %v2875 = vshll.u32 %v2287, 16
        %v2877 = vrot.slane %v2875, 5
        %v2878 = vor.u32 %v2874, %v2877
        %v2879 = vrot.slane %v2878, 4
        %v2881 = vshll.u32 %v2288, 16
        %v2883 = vrot.slane %v2881, 5
        %v2884 = vsel %vm890, %v2879, %v2883
        %v2885 = vshrl.u32 %v2288, 16
        %v2887 = vrot.slane %v2885, 4
        %v2888 = vor.u32 %v2887, %v2883
        %v2889 = vrot.slane %v2888, 4
        %v2891 = vshll.u32 %v2289, 16
        %v2893 = vrot.slane %v2891, 5
        %v2894 = vsel %vm890, %v2889, %v2893
        %v2896 = vshrl.u32 %v2290, 16
        %v2898 = vrot.slane %v2896, 4
        %v2899 = vshll.u32 %v2290, 16
        %v2901 = vrot.slane %v2899, 5
        %v2902 = vor.u32 %v2898, %v2901
        %v2903 = vrot.slane %v2902, 4
        %v2905 = vshll.u32 %v2291, 16
        %v2907 = vrot.slane %v2905, 5
        %v2908 = vsel %vm890, %v2903, %v2907
        %v2909 = vshrl.u32 %v2291, 16
        %v2911 = vrot.slane %v2909, 4
        %v2912 = vor.u32 %v2911, %v2907
        %v2913 = vrot.slane %v2912, 4
        %v2915 = vshll.u32 %v2292, 16
        %v2917 = vrot.slane %v2915, 5
        %v2918 = vsel %vm890, %v2913, %v2917
        %v2920 = vshrl.u32 %v2293, 16
        %v2922 = vrot.slane %v2920, 4
        %v2923 = vshll.u32 %v2293, 16
        %v2925 = vrot.slane %v2923, 5
        %v2926 = vor.u32 %v2922, %v2925
        %v2927 = vrot.slane %v2926, 4
        %v2929 = vshll.u32 %v2294, 16
        %v2931 = vrot.slane %v2929, 5
        %v2932 = vsel %vm890, %v2927, %v2931
        %v2933 = vshrl.u32 %v2294, 16
        %v2935 = vrot.slane %v2933, 4
        %v2936 = vor.u32 %v2935, %v2931
        %v2937 = vrot.slane %v2936, 4
        %v2939 = vshll.u32 %v2295, 16
        %v2941 = vrot.slane %v2939, 5
        %v2942 = vsel %vm890, %v2937, %v2941
        %v2944 = vshrl.u32 %v2296, 16
        %v2946 = vrot.slane %v2944, 4
        %v2947 = vshll.u32 %v2296, 16
        %v2949 = vrot.slane %v2947, 5
        %v2950 = vor.u32 %v2946, %v2949
        %v2951 = vrot.slane %v2950, 4
        %v2953 = vshll.u32 %v2297, 16
        %v2955 = vrot.slane %v2953, 5
        %v2956 = vsel %vm890, %v2951, %v2955
        %v2957 = vshrl.u32 %v2297, 16
        %v2959 = vrot.slane %v2957, 4
        %v2960 = vor.u32 %v2959, %v2955
        %v2961 = vrot.slane %v2960, 4
        %v2963 = vshll.u32 %v2298, 16
        %v2965 = vrot.slane %v2963, 5
        %v2966 = vsel %vm890, %v2961, %v2965
        %v2968 = vshrl.u32 %v2299, 16
        %v2970 = vrot.slane %v2968, 4
        %v2971 = vshll.u32 %v2299, 16
        %v2973 = vrot.slane %v2971, 5
        %v2974 = vor.u32 %v2970, %v2973
        %v2975 = vrot.slane %v2974, 4
        %v2977 = vshll.u32 %v2300, 16
        %v2979 = vrot.slane %v2977, 5
        %v2980 = vsel %vm890, %v2975, %v2979
        %v2981 = vshrl.u32 %v2300, 16
        %v2983 = vrot.slane %v2981, 4
        %v2984 = vor.u32 %v2983, %v2979
        %v2985 = vrot.slane %v2984, 4
        %v2987 = vshll.u32 %v2301, 16
        %v2989 = vrot.slane %v2987, 5
        %v2990 = vsel %vm890, %v2985, %v2989
        %v2992 = vshrl.u32 %v2302, 16
        %v2994 = vrot.slane %v2992, 4
        %v2995 = vshll.u32 %v2302, 16
        %v2997 = vrot.slane %v2995, 5
        %v2998 = vor.u32 %v2994, %v2997
        %v2999 = vrot.slane %v2998, 4
        %v3001 = vshll.u32 %v2303, 16
        %v3003 = vrot.slane %v3001, 5
        %v3004 = vsel %vm890, %v2999, %v3003
        %v3005 = vshrl.u32 %v2303, 16
        %v3007 = vrot.slane %v3005, 4
        %v3008 = vor.u32 %v3007, %v3003
        %v3009 = vrot.slane %v3008, 4
        %v3011 = vshll.u32 %v2304, 16
        %v3013 = vrot.slane %v3011, 5
        %v3014 = vsel %vm890, %v3009, %v3013
        %s3015 = scalar_lea.vmem %s1, 8
        %v3016 = vld [vmem:[%s3015] sm:$0x3]
        %v3017 = vunpack.c.l.b16 %v2644
        %v3018 = vunpack.c.l.b16 %v2654
        %v3019 = vunpack.c.l.b16 %v2668
        %v3020 = vunpack.c.l.b16 %v2678
        %v3021 = vunpack.c.l.b16 %v2692
        %v3022 = vunpack.c.l.b16 %v2702
        %v3023 = vunpack.c.l.b16 %v2716
        %v3024 = vunpack.c.l.b16 %v2726
        %v3025 = vunpack.c.l.b16 %v2740
        %v3026 = vunpack.c.l.b16 %v2750
        %v3027 = vunpack.c.l.b16 %v2764
        %v3028 = vunpack.c.l.b16 %v2774
        %v3029 = vunpack.c.l.b16 %v2788
        %v3030 = vunpack.c.l.b16 %v2798
        %v3031 = vunpack.c.l.b16 %v2812
        %v3032 = vunpack.c.l.b16 %v2822
        %v3033 = vunpack.c.l.b16 %v2836
        %v3034 = vunpack.c.l.b16 %v2846
        %v3035 = vunpack.c.l.b16 %v2860
        %v3036 = vunpack.c.l.b16 %v2870
        %v3037 = vunpack.c.l.b16 %v2884
        %v3038 = vunpack.c.l.b16 %v2894
        %v3039 = vunpack.c.l.b16 %v2908
        %v3040 = vunpack.c.l.b16 %v2918
        %v3041 = vunpack.c.l.b16 %v2932
        %v3042 = vunpack.c.l.b16 %v2942
        %v3043 = vunpack.c.l.b16 %v2956
        %v3044 = vunpack.c.l.b16 %v2966
        %v3045 = vunpack.c.l.b16 %v2980
        %v3046 = vunpack.c.l.b16 %v2990
        %v3047 = vunpack.c.l.b16 %v3004
        %v3048 = vunpack.c.l.b16 %v3014
        %v3049 = vpack.c.b16 %v3018, %v3017
        %v3050 = vpack.c.b16 %v3020, %v3019
        %v3051 = vpack.c.b16 %v3022, %v3021
        %v3052 = vpack.c.b16 %v3024, %v3023
        %v3053 = vpack.c.b16 %v3026, %v3025
        %v3054 = vpack.c.b16 %v3028, %v3027
        %v3055 = vpack.c.b16 %v3030, %v3029
        %v3056 = vpack.c.b16 %v3032, %v3031
        %v3057 = vpack.c.b16 %v3034, %v3033
        %v3058 = vpack.c.b16 %v3036, %v3035
        %v3059 = vpack.c.b16 %v3038, %v3037
        %v3060 = vpack.c.b16 %v3040, %v3039
        %v3061 = vpack.c.b16 %v3042, %v3041
        %v3062 = vpack.c.b16 %v3044, %v3043
        %v3063 = vpack.c.b16 %v3046, %v3045
        %v3064 = vpack.c.b16 %v3048, %v3047
        %v3066 = vsel %vm1325, %v3049, 0
        %v3069 = vsel %vm1325, %v3050, 0
        %v3072 = vsel %vm1325, %v3051, 0
        %v3075 = vsel %vm1325, %v3052, 0
        %v3078 = vsel %vm1325, %v3053, 0
        %v3081 = vsel %vm1325, %v3054, 0
        %v3084 = vsel %vm1325, %v3055, 0
        %v3087 = vsel %vm1325, %v3056, 0
        %v3090 = vsel %vm1325, %v3057, 0
        %v3093 = vsel %vm1325, %v3058, 0
        %v3096 = vsel %vm1325, %v3059, 0
        %v3099 = vsel %vm1325, %v3060, 0
        %v3102 = vsel %vm1325, %v3061, 0
        %v3105 = vsel %vm1325, %v3062, 0
        %v3108 = vsel %vm1325, %v3063, 0
        %v3111 = vsel %vm1325, %v3064, 0
        %v3114 = vsel %vm1374, %v3016, 0
        %3116 = vmatprep.subr.bf16.mxu0 0
        %3117 = vmatpush1.bf16.msra.mxu0 0
        %3118 = vmatprep.subr.bf16.mxu0 0
        %3119 = vmatpush1.bf16.msra.mxu0 0
        %3120 = vmatprep.subr.bf16.mxu0 0
        %3121 = vmatpush1.bf16.msra.mxu0 0
        %3122 = vmatprep.subr.bf16.mxu0 0
        %3123 = vmatpush1.bf16.msra.mxu0 0
        %3124 = vmatprep.subr.bf16.mxu0 0
        %3125 = vmatpush1.bf16.msra.mxu0 0
        %3126 = vmatprep.subr.bf16.mxu0 0
        %3127 = vmatpush1.bf16.msra.mxu0 0
        %3128 = vmatprep.subr.bf16.mxu0 0
        %3129 = vmatpush1.bf16.msra.mxu0 0
        %3130 = vmatprep.subr.bf16.mxu0 0
        %3131 = vmatpush1.bf16.msra.mxu0 %v3114
        %3132 = vmatprep.subr.bf16.mxu0 0
        %3133 = vmatpush2.bf16.msra.mxu0 0
        %3134 = vmatprep.subr.bf16.mxu0 0
        %3135 = vmatpush2.bf16.msra.mxu0 0
        %3136 = vmatprep.subr.bf16.mxu0 0
        %3137 = vmatpush2.bf16.msra.mxu0 0
        %3138 = vmatprep.subr.bf16.mxu0 0
        %3139 = vmatpush2.bf16.msra.mxu0 0
        %3140 = vmatprep.subr.bf16.mxu0 0
        %3141 = vmatpush2.bf16.msra.mxu0 0
        %3142 = vmatprep.subr.bf16.mxu0 0
        %3143 = vmatpush2.bf16.msra.mxu0 0
        %3144 = vmatprep.subr.bf16.mxu0 0
        %3145 = vmatpush2.bf16.msra.mxu0 0
        %3146 = vmatprep.subr.bf16.mxu0 0
        %3147 = vmatpush2.bf16.msra.mxu0 0
        %3148 = vmatprep.mubr.bf16.mxu0 0
        %3149 = vmatmul.mubr.bf16.gmra.mxu0 %v3066
        %v3150 = vpop.f32.mrf.mxu0
        %v3151 = vadd.f32 0.0, %v3150
        %v3152 = vpop.f32.mrf.mxu0
        %v3153 = vpop.f32.mrf.mxu0
        %v3154 = vadd.f32 0.0, %v3153
        %v3155 = vpop.f32.mrf.mxu0
        %3156 = vmatprep.mubr.bf16.mxu0 0
        %3157 = vmatmul.mubr.bf16.gmra.mxu0 %v3069
        %v3158 = vpop.f32.mrf.mxu0
        %v3159 = vadd.f32 0.0, %v3158
        %v3160 = vpop.f32.mrf.mxu0
        %v3161 = vpop.f32.mrf.mxu0
        %v3162 = vadd.f32 0.0, %v3161
        %v3163 = vpop.f32.mrf.mxu0
        %3164 = vmatprep.mubr.bf16.mxu0 0
        %3165 = vmatmul.mubr.bf16.gmra.mxu0 %v3072
        %v3166 = vpop.f32.mrf.mxu0
        %v3167 = vadd.f32 0.0, %v3166
        %v3168 = vpop.f32.mrf.mxu0
        %v3169 = vpop.f32.mrf.mxu0
        %v3170 = vadd.f32 0.0, %v3169
        %v3171 = vpop.f32.mrf.mxu0
        %3172 = vmatprep.mubr.bf16.mxu0 0
        %3173 = vmatmul.mubr.bf16.gmra.mxu0 %v3075
        %v3174 = vpop.f32.mrf.mxu0
        %v3175 = vadd.f32 0.0, %v3174
        %v3176 = vpop.f32.mrf.mxu0
        %v3177 = vpop.f32.mrf.mxu0
        %v3178 = vadd.f32 0.0, %v3177
        %v3179 = vpop.f32.mrf.mxu0
        %3180 = vmatprep.mubr.bf16.mxu0 0
        %3181 = vmatmul.mubr.bf16.gmra.mxu0 %v3078
        %v3182 = vpop.f32.mrf.mxu0
        %v3183 = vadd.f32 0.0, %v3182
        %v3184 = vpop.f32.mrf.mxu0
        %v3185 = vpop.f32.mrf.mxu0
        %v3186 = vadd.f32 0.0, %v3185
        %v3187 = vpop.f32.mrf.mxu0
        %3188 = vmatprep.mubr.bf16.mxu0 0
        %3189 = vmatmul.mubr.bf16.gmra.mxu0 %v3081
        %v3190 = vpop.f32.mrf.mxu0
        %v3191 = vadd.f32 0.0, %v3190
        %v3192 = vpop.f32.mrf.mxu0
        %v3193 = vpop.f32.mrf.mxu0
        %v3194 = vadd.f32 0.0, %v3193
        %v3195 = vpop.f32.mrf.mxu0
        %3196 = vmatprep.mubr.bf16.mxu0 0
        %3197 = vmatmul.mubr.bf16.gmra.mxu0 %v3084
        %v3198 = vpop.f32.mrf.mxu0
        %v3199 = vadd.f32 0.0, %v3198
        %v3200 = vpop.f32.mrf.mxu0
        %v3201 = vpop.f32.mrf.mxu0
        %v3202 = vadd.f32 0.0, %v3201
        %v3203 = vpop.f32.mrf.mxu0
        %3204 = vmatprep.mubr.bf16.mxu0 0
        %3205 = vmatmul.mubr.bf16.gmra.mxu0 %v3087
        %v3206 = vpop.f32.mrf.mxu0
        %v3207 = vadd.f32 0.0, %v3206
        %v3208 = vpop.f32.mrf.mxu0
        %v3209 = vpop.f32.mrf.mxu0
        %v3210 = vadd.f32 0.0, %v3209
        %v3211 = vpop.f32.mrf.mxu0
        %3212 = vmatprep.mubr.bf16.mxu0 0
        %3213 = vmatmul.mubr.bf16.gmra.mxu0 %v3090
        %v3214 = vpop.f32.mrf.mxu0
        %v3215 = vadd.f32 0.0, %v3214
        %v3216 = vpop.f32.mrf.mxu0
        %v3217 = vpop.f32.mrf.mxu0
        %v3218 = vadd.f32 0.0, %v3217
        %v3219 = vpop.f32.mrf.mxu0
        %3220 = vmatprep.mubr.bf16.mxu0 0
        %3221 = vmatmul.mubr.bf16.gmra.mxu0 %v3093
        %v3222 = vpop.f32.mrf.mxu0
        %v3223 = vadd.f32 0.0, %v3222
        %v3224 = vpop.f32.mrf.mxu0
        %v3225 = vpop.f32.mrf.mxu0
        %v3226 = vadd.f32 0.0, %v3225
        %v3227 = vpop.f32.mrf.mxu0
        %3228 = vmatprep.mubr.bf16.mxu0 0
        %3229 = vmatmul.mubr.bf16.gmra.mxu0 %v3096
        %v3230 = vpop.f32.mrf.mxu0
        %v3231 = vadd.f32 0.0, %v3230
        %v3232 = vpop.f32.mrf.mxu0
        %v3233 = vpop.f32.mrf.mxu0
        %v3234 = vadd.f32 0.0, %v3233
        %v3235 = vpop.f32.mrf.mxu0
        %3236 = vmatprep.mubr.bf16.mxu0 0
        %3237 = vmatmul.mubr.bf16.gmra.mxu0 %v3099
        %v3238 = vpop.f32.mrf.mxu0
        %v3239 = vadd.f32 0.0, %v3238
        %v3240 = vpop.f32.mrf.mxu0
        %v3241 = vpop.f32.mrf.mxu0
        %v3242 = vadd.f32 0.0, %v3241
        %v3243 = vpop.f32.mrf.mxu0
        %3244 = vmatprep.mubr.bf16.mxu0 0
        %3245 = vmatmul.mubr.bf16.gmra.mxu0 %v3102
        %v3246 = vpop.f32.mrf.mxu0
        %v3247 = vadd.f32 0.0, %v3246
        %v3248 = vpop.f32.mrf.mxu0
        %v3249 = vpop.f32.mrf.mxu0
        %v3250 = vadd.f32 0.0, %v3249
        %v3251 = vpop.f32.mrf.mxu0
        %3252 = vmatprep.mubr.bf16.mxu0 0
        %3253 = vmatmul.mubr.bf16.gmra.mxu0 %v3105
        %v3254 = vpop.f32.mrf.mxu0
        %v3255 = vadd.f32 0.0, %v3254
        %v3256 = vpop.f32.mrf.mxu0
        %v3257 = vpop.f32.mrf.mxu0
        %v3258 = vadd.f32 0.0, %v3257
        %v3259 = vpop.f32.mrf.mxu0
        %3260 = vmatprep.mubr.bf16.mxu0 0
        %3261 = vmatmul.mubr.bf16.gmra.mxu0 %v3108
        %v3262 = vpop.f32.mrf.mxu0
        %v3263 = vadd.f32 0.0, %v3262
        %v3264 = vpop.f32.mrf.mxu0
        %v3265 = vpop.f32.mrf.mxu0
        %v3266 = vadd.f32 0.0, %v3265
        %v3267 = vpop.f32.mrf.mxu0
        %3268 = vmatprep.mubr.bf16.mxu0 0
        %3269 = vmatmul.mubr.bf16.gmra.mxu0 %v3111
        %v3270 = vpop.f32.mrf.mxu0
        %v3271 = vadd.f32 0.0, %v3270
        %v3272 = vpop.f32.mrf.mxu0
        %v3273 = vpop.f32.mrf.mxu0
        %v3274 = vadd.f32 0.0, %v3273
        %v3275 = vpop.f32.mrf.mxu0
        %3276 = vdwg.mxu0
        %v3277 = vadd.f32 %v2599, %v3151
        %v3278 = vadd.f32 %v2600, %v3154
        %v3279 = vadd.f32 %v2601, %v3159
        %v3280 = vadd.f32 %v2602, %v3162
        %v3281 = vadd.f32 %v2603, %v3167
        %v3282 = vadd.f32 %v2604, %v3170
        %v3283 = vadd.f32 %v2605, %v3175
        %v3284 = vadd.f32 %v2606, %v3178
        %v3285 = vadd.f32 %v2607, %v3183
        %v3286 = vadd.f32 %v2608, %v3186
        %v3287 = vadd.f32 %v2609, %v3191
        %v3288 = vadd.f32 %v2610, %v3194
        %v3289 = vadd.f32 %v2611, %v3199
        %v3290 = vadd.f32 %v2612, %v3202
        %v3291 = vadd.f32 %v2613, %v3207
        %v3292 = vadd.f32 %v2614, %v3210
        %v3293 = vadd.f32 %v2615, %v3215
        %v3294 = vadd.f32 %v2616, %v3218
        %v3295 = vadd.f32 %v2617, %v3223
        %v3296 = vadd.f32 %v2618, %v3226
        %v3297 = vadd.f32 %v2619, %v3231
        %v3298 = vadd.f32 %v2620, %v3234
        %v3299 = vadd.f32 %v2621, %v3239
        %v3300 = vadd.f32 %v2622, %v3242
        %v3301 = vadd.f32 %v2623, %v3247
        %v3302 = vadd.f32 %v2624, %v3250
        %v3303 = vadd.f32 %v2625, %v3255
        %v3304 = vadd.f32 %v2626, %v3258
        %v3305 = vadd.f32 %v2627, %v3263
        %v3306 = vadd.f32 %v2628, %v3266
        %v3307 = vadd.f32 %v2629, %v3271
        %v3308 = vadd.f32 %v2630, %v3274
        %v3325 = vrot.slane %v2257, 5
        %v3326 = vrot.slane %v3325, 4
        %v3327 = vrot.slane %v2258, 5
        %v3328 = vsel %vm1849, %v3326, %v3327
        %v3329 = vrot.slane %v3327, 4
        %v3330 = vrot.slane %v2259, 5
        %v3331 = vsel %vm1849, %v3329, %v3330
        %v3332 = vrot.slane %v2260, 5
        %v3333 = vrot.slane %v3332, 4
        %v3334 = vrot.slane %v2261, 5
        %v3335 = vsel %vm1849, %v3333, %v3334
        %v3336 = vrot.slane %v3334, 4
        %v3337 = vrot.slane %v2262, 5
        %v3338 = vsel %vm1849, %v3336, %v3337
        %v3339 = vrot.slane %v2263, 5
        %v3340 = vrot.slane %v3339, 4
        %v3341 = vrot.slane %v2264, 5
        %v3342 = vsel %vm1849, %v3340, %v3341
        %v3343 = vrot.slane %v3341, 4
        %v3344 = vrot.slane %v2265, 5
        %v3345 = vsel %vm1849, %v3343, %v3344
        %v3346 = vrot.slane %v2266, 5
        %v3347 = vrot.slane %v3346, 4
        %v3348 = vrot.slane %v2267, 5
        %v3349 = vsel %vm1849, %v3347, %v3348
        %v3350 = vrot.slane %v3348, 4
        %v3351 = vrot.slane %v2268, 5
        %v3352 = vsel %vm1849, %v3350, %v3351
        %v3353 = vrot.slane %v2269, 5
        %v3354 = vrot.slane %v3353, 4
        %v3355 = vrot.slane %v2270, 5
        %v3356 = vsel %vm1849, %v3354, %v3355
        %v3357 = vrot.slane %v3355, 4
        %v3358 = vrot.slane %v2271, 5
        %v3359 = vsel %vm1849, %v3357, %v3358
        %v3360 = vrot.slane %v2272, 5
        %v3361 = vrot.slane %v3360, 4
        %v3362 = vrot.slane %v2273, 5
        %v3363 = vsel %vm1849, %v3361, %v3362
        %v3364 = vrot.slane %v3362, 4
        %v3365 = vrot.slane %v2274, 5
        %v3366 = vsel %vm1849, %v3364, %v3365
        %v3367 = vrot.slane %v2275, 5
        %v3368 = vrot.slane %v3367, 4
        %v3369 = vrot.slane %v2276, 5
        %v3370 = vsel %vm1849, %v3368, %v3369
        %v3371 = vrot.slane %v3369, 4
        %v3372 = vrot.slane %v2277, 5
        %v3373 = vsel %vm1849, %v3371, %v3372
        %v3374 = vrot.slane %v2278, 5
        %v3375 = vrot.slane %v3374, 4
        %v3376 = vrot.slane %v2279, 5
        %v3377 = vsel %vm1849, %v3375, %v3376
        %v3378 = vrot.slane %v3376, 4
        %v3379 = vrot.slane %v2280, 5
        %v3380 = vsel %vm1849, %v3378, %v3379
        %v3381 = vrot.slane %v2281, 5
        %v3382 = vrot.slane %v3381, 4
        %v3383 = vrot.slane %v2282, 5
        %v3384 = vsel %vm1849, %v3382, %v3383
        %v3385 = vrot.slane %v3383, 4
        %v3386 = vrot.slane %v2283, 5
        %v3387 = vsel %vm1849, %v3385, %v3386
        %v3388 = vrot.slane %v2284, 5
        %v3389 = vrot.slane %v3388, 4
        %v3390 = vrot.slane %v2285, 5
        %v3391 = vsel %vm1849, %v3389, %v3390
        %v3392 = vrot.slane %v3390, 4
        %v3393 = vrot.slane %v2286, 5
        %v3394 = vsel %vm1849, %v3392, %v3393
        %v3395 = vrot.slane %v2287, 5
        %v3396 = vrot.slane %v3395, 4
        %v3397 = vrot.slane %v2288, 5
        %v3398 = vsel %vm1849, %v3396, %v3397
        %v3399 = vrot.slane %v3397, 4
        %v3400 = vrot.slane %v2289, 5
        %v3401 = vsel %vm1849, %v3399, %v3400
        %v3402 = vrot.slane %v2290, 5
        %v3403 = vrot.slane %v3402, 4
        %v3404 = vrot.slane %v2291, 5
        %v3405 = vsel %vm1849, %v3403, %v3404
        %v3406 = vrot.slane %v3404, 4
        %v3407 = vrot.slane %v2292, 5
        %v3408 = vsel %vm1849, %v3406, %v3407
        %v3409 = vrot.slane %v2293, 5
        %v3410 = vrot.slane %v3409, 4
        %v3411 = vrot.slane %v2294, 5
        %v3412 = vsel %vm1849, %v3410, %v3411
        %v3413 = vrot.slane %v3411, 4
        %v3414 = vrot.slane %v2295, 5
        %v3415 = vsel %vm1849, %v3413, %v3414
        %v3416 = vrot.slane %v2296, 5
        %v3417 = vrot.slane %v3416, 4
        %v3418 = vrot.slane %v2297, 5
        %v3419 = vsel %vm1849, %v3417, %v3418
        %v3420 = vrot.slane %v3418, 4
        %v3421 = vrot.slane %v2298, 5
        %v3422 = vsel %vm1849, %v3420, %v3421
        %v3423 = vrot.slane %v2299, 5
        %v3424 = vrot.slane %v3423, 4
        %v3425 = vrot.slane %v2300, 5
        %v3426 = vsel %vm1849, %v3424, %v3425
        %v3427 = vrot.slane %v3425, 4
        %v3428 = vrot.slane %v2301, 5
        %v3429 = vsel %vm1849, %v3427, %v3428
        %v3430 = vrot.slane %v2302, 5
        %v3431 = vrot.slane %v3430, 4
        %v3432 = vrot.slane %v2303, 5
        %v3433 = vsel %vm1849, %v3431, %v3432
        %v3434 = vrot.slane %v3432, 4
        %v3435 = vrot.slane %v2304, 5
        %v3436 = vsel %vm1849, %v3434, %v3435
        %s3437 = scalar_lea.vmem %s1, 10
        %v3438 = vld [vmem:[%s3437] sm:$0x3]
        %v3439 = vunpack.c.l.b16 %v3328
        %v3440 = vunpack.c.l.b16 %v3331
        %v3441 = vunpack.c.l.b16 %v3335
        %v3442 = vunpack.c.l.b16 %v3338
        %v3443 = vunpack.c.l.b16 %v3342
        %v3444 = vunpack.c.l.b16 %v3345
        %v3445 = vunpack.c.l.b16 %v3349
        %v3446 = vunpack.c.l.b16 %v3352
        %v3447 = vunpack.c.l.b16 %v3356
        %v3448 = vunpack.c.l.b16 %v3359
        %v3449 = vunpack.c.l.b16 %v3363
        %v3450 = vunpack.c.l.b16 %v3366
        %v3451 = vunpack.c.l.b16 %v3370
        %v3452 = vunpack.c.l.b16 %v3373
        %v3453 = vunpack.c.l.b16 %v3377
        %v3454 = vunpack.c.l.b16 %v3380
        %v3455 = vunpack.c.l.b16 %v3384
        %v3456 = vunpack.c.l.b16 %v3387
        %v3457 = vunpack.c.l.b16 %v3391
        %v3458 = vunpack.c.l.b16 %v3394
        %v3459 = vunpack.c.l.b16 %v3398
        %v3460 = vunpack.c.l.b16 %v3401
        %v3461 = vunpack.c.l.b16 %v3405
        %v3462 = vunpack.c.l.b16 %v3408
        %v3463 = vunpack.c.l.b16 %v3412
        %v3464 = vunpack.c.l.b16 %v3415
        %v3465 = vunpack.c.l.b16 %v3419
        %v3466 = vunpack.c.l.b16 %v3422
        %v3467 = vunpack.c.l.b16 %v3426
        %v3468 = vunpack.c.l.b16 %v3429
        %v3469 = vunpack.c.l.b16 %v3433
        %v3470 = vunpack.c.l.b16 %v3436
        %v3471 = vpack.c.b16 %v3440, %v3439
        %v3472 = vpack.c.b16 %v3442, %v3441
        %v3473 = vpack.c.b16 %v3444, %v3443
        %v3474 = vpack.c.b16 %v3446, %v3445
        %v3475 = vpack.c.b16 %v3448, %v3447
        %v3476 = vpack.c.b16 %v3450, %v3449
        %v3477 = vpack.c.b16 %v3452, %v3451
        %v3478 = vpack.c.b16 %v3454, %v3453
        %v3479 = vpack.c.b16 %v3456, %v3455
        %v3480 = vpack.c.b16 %v3458, %v3457
        %v3481 = vpack.c.b16 %v3460, %v3459
        %v3482 = vpack.c.b16 %v3462, %v3461
        %v3483 = vpack.c.b16 %v3464, %v3463
        %v3484 = vpack.c.b16 %v3466, %v3465
        %v3485 = vpack.c.b16 %v3468, %v3467
        %v3486 = vpack.c.b16 %v3470, %v3469
        %v3488 = vsel %vm1325, %v3471, 0
        %v3491 = vsel %vm1325, %v3472, 0
        %v3494 = vsel %vm1325, %v3473, 0
        %v3497 = vsel %vm1325, %v3474, 0
        %v3500 = vsel %vm1325, %v3475, 0
        %v3503 = vsel %vm1325, %v3476, 0
        %v3506 = vsel %vm1325, %v3477, 0
        %v3509 = vsel %vm1325, %v3478, 0
        %v3512 = vsel %vm1325, %v3479, 0
        %v3515 = vsel %vm1325, %v3480, 0
        %v3518 = vsel %vm1325, %v3481, 0
        %v3521 = vsel %vm1325, %v3482, 0
        %v3524 = vsel %vm1325, %v3483, 0
        %v3527 = vsel %vm1325, %v3484, 0
        %v3530 = vsel %vm1325, %v3485, 0
        %v3533 = vsel %vm1325, %v3486, 0
        %v3536 = vsel %vm1374, %v3438, 0
        %3538 = vmatprep.subr.bf16.mxu0 0
        %3539 = vmatpush1.bf16.msra.mxu0 0
        %3540 = vmatprep.subr.bf16.mxu0 0
        %3541 = vmatpush1.bf16.msra.mxu0 0
        %3542 = vmatprep.subr.bf16.mxu0 0
        %3543 = vmatpush1.bf16.msra.mxu0 0
        %3544 = vmatprep.subr.bf16.mxu0 0
        %3545 = vmatpush1.bf16.msra.mxu0 0
        %3546 = vmatprep.subr.bf16.mxu0 0
        %3547 = vmatpush1.bf16.msra.mxu0 0
        %3548 = vmatprep.subr.bf16.mxu0 0
        %3549 = vmatpush1.bf16.msra.mxu0 0
        %3550 = vmatprep.subr.bf16.mxu0 0
        %3551 = vmatpush1.bf16.msra.mxu0 0
        %3552 = vmatprep.subr.bf16.mxu0 0
        %3553 = vmatpush1.bf16.msra.mxu0 %v3536
        %3554 = vmatprep.subr.bf16.mxu0 0
        %3555 = vmatpush2.bf16.msra.mxu0 0
        %3556 = vmatprep.subr.bf16.mxu0 0
        %3557 = vmatpush2.bf16.msra.mxu0 0
        %3558 = vmatprep.subr.bf16.mxu0 0
        %3559 = vmatpush2.bf16.msra.mxu0 0
        %3560 = vmatprep.subr.bf16.mxu0 0
        %3561 = vmatpush2.bf16.msra.mxu0 0
        %3562 = vmatprep.subr.bf16.mxu0 0
        %3563 = vmatpush2.bf16.msra.mxu0 0
        %3564 = vmatprep.subr.bf16.mxu0 0
        %3565 = vmatpush2.bf16.msra.mxu0 0
        %3566 = vmatprep.subr.bf16.mxu0 0
        %3567 = vmatpush2.bf16.msra.mxu0 0
        %3568 = vmatprep.subr.bf16.mxu0 0
        %3569 = vmatpush2.bf16.msra.mxu0 0
        %3570 = vmatprep.mubr.bf16.mxu0 0
        %3571 = vmatmul.mubr.bf16.gmra.mxu0 %v3488
        %v3572 = vpop.f32.mrf.mxu0
        %v3573 = vadd.f32 0.0, %v3572
        %v3574 = vpop.f32.mrf.mxu0
        %v3575 = vpop.f32.mrf.mxu0
        %v3576 = vadd.f32 0.0, %v3575
        %v3577 = vpop.f32.mrf.mxu0
        %3578 = vmatprep.mubr.bf16.mxu0 0
        %3579 = vmatmul.mubr.bf16.gmra.mxu0 %v3491
        %v3580 = vpop.f32.mrf.mxu0
        %v3581 = vadd.f32 0.0, %v3580
        %v3582 = vpop.f32.mrf.mxu0
        %v3583 = vpop.f32.mrf.mxu0
        %v3584 = vadd.f32 0.0, %v3583
        %v3585 = vpop.f32.mrf.mxu0
        %3586 = vmatprep.mubr.bf16.mxu0 0
        %3587 = vmatmul.mubr.bf16.gmra.mxu0 %v3494
        %v3588 = vpop.f32.mrf.mxu0
        %v3589 = vadd.f32 0.0, %v3588
        %v3590 = vpop.f32.mrf.mxu0
        %v3591 = vpop.f32.mrf.mxu0
        %v3592 = vadd.f32 0.0, %v3591
        %v3593 = vpop.f32.mrf.mxu0
        %3594 = vmatprep.mubr.bf16.mxu0 0
        %3595 = vmatmul.mubr.bf16.gmra.mxu0 %v3497
        %v3596 = vpop.f32.mrf.mxu0
        %v3597 = vadd.f32 0.0, %v3596
        %v3598 = vpop.f32.mrf.mxu0
        %v3599 = vpop.f32.mrf.mxu0
        %v3600 = vadd.f32 0.0, %v3599
        %v3601 = vpop.f32.mrf.mxu0
        %3602 = vmatprep.mubr.bf16.mxu0 0
        %3603 = vmatmul.mubr.bf16.gmra.mxu0 %v3500
        %v3604 = vpop.f32.mrf.mxu0
        %v3605 = vadd.f32 0.0, %v3604
        %v3606 = vpop.f32.mrf.mxu0
        %v3607 = vpop.f32.mrf.mxu0
        %v3608 = vadd.f32 0.0, %v3607
        %v3609 = vpop.f32.mrf.mxu0
        %3610 = vmatprep.mubr.bf16.mxu0 0
        %3611 = vmatmul.mubr.bf16.gmra.mxu0 %v3503
        %v3612 = vpop.f32.mrf.mxu0
        %v3613 = vadd.f32 0.0, %v3612
        %v3614 = vpop.f32.mrf.mxu0
        %v3615 = vpop.f32.mrf.mxu0
        %v3616 = vadd.f32 0.0, %v3615
        %v3617 = vpop.f32.mrf.mxu0
        %3618 = vmatprep.mubr.bf16.mxu0 0
        %3619 = vmatmul.mubr.bf16.gmra.mxu0 %v3506
        %v3620 = vpop.f32.mrf.mxu0
        %v3621 = vadd.f32 0.0, %v3620
        %v3622 = vpop.f32.mrf.mxu0
        %v3623 = vpop.f32.mrf.mxu0
        %v3624 = vadd.f32 0.0, %v3623
        %v3625 = vpop.f32.mrf.mxu0
        %3626 = vmatprep.mubr.bf16.mxu0 0
        %3627 = vmatmul.mubr.bf16.gmra.mxu0 %v3509
        %v3628 = vpop.f32.mrf.mxu0
        %v3629 = vadd.f32 0.0, %v3628
        %v3630 = vpop.f32.mrf.mxu0
        %v3631 = vpop.f32.mrf.mxu0
        %v3632 = vadd.f32 0.0, %v3631
        %v3633 = vpop.f32.mrf.mxu0
        %3634 = vmatprep.mubr.bf16.mxu0 0
        %3635 = vmatmul.mubr.bf16.gmra.mxu0 %v3512
        %v3636 = vpop.f32.mrf.mxu0
        %v3637 = vadd.f32 0.0, %v3636
        %v3638 = vpop.f32.mrf.mxu0
        %v3639 = vpop.f32.mrf.mxu0
        %v3640 = vadd.f32 0.0, %v3639
        %v3641 = vpop.f32.mrf.mxu0
        %3642 = vmatprep.mubr.bf16.mxu0 0
        %3643 = vmatmul.mubr.bf16.gmra.mxu0 %v3515
        %v3644 = vpop.f32.mrf.mxu0
        %v3645 = vadd.f32 0.0, %v3644
        %v3646 = vpop.f32.mrf.mxu0
        %v3647 = vpop.f32.mrf.mxu0
        %v3648 = vadd.f32 0.0, %v3647
        %v3649 = vpop.f32.mrf.mxu0
        %3650 = vmatprep.mubr.bf16.mxu0 0
        %3651 = vmatmul.mubr.bf16.gmra.mxu0 %v3518
        %v3652 = vpop.f32.mrf.mxu0
        %v3653 = vadd.f32 0.0, %v3652
        %v3654 = vpop.f32.mrf.mxu0
        %v3655 = vpop.f32.mrf.mxu0
        %v3656 = vadd.f32 0.0, %v3655
        %v3657 = vpop.f32.mrf.mxu0
        %3658 = vmatprep.mubr.bf16.mxu0 0
        %3659 = vmatmul.mubr.bf16.gmra.mxu0 %v3521
        %v3660 = vpop.f32.mrf.mxu0
        %v3661 = vadd.f32 0.0, %v3660
        %v3662 = vpop.f32.mrf.mxu0
        %v3663 = vpop.f32.mrf.mxu0
        %v3664 = vadd.f32 0.0, %v3663
        %v3665 = vpop.f32.mrf.mxu0
        %3666 = vmatprep.mubr.bf16.mxu0 0
        %3667 = vmatmul.mubr.bf16.gmra.mxu0 %v3524
        %v3668 = vpop.f32.mrf.mxu0
        %v3669 = vadd.f32 0.0, %v3668
        %v3670 = vpop.f32.mrf.mxu0
        %v3671 = vpop.f32.mrf.mxu0
        %v3672 = vadd.f32 0.0, %v3671
        %v3673 = vpop.f32.mrf.mxu0
        %3674 = vmatprep.mubr.bf16.mxu0 0
        %3675 = vmatmul.mubr.bf16.gmra.mxu0 %v3527
        %v3676 = vpop.f32.mrf.mxu0
        %v3677 = vadd.f32 0.0, %v3676
        %v3678 = vpop.f32.mrf.mxu0
        %v3679 = vpop.f32.mrf.mxu0
        %v3680 = vadd.f32 0.0, %v3679
        %v3681 = vpop.f32.mrf.mxu0
        %3682 = vmatprep.mubr.bf16.mxu0 0
        %3683 = vmatmul.mubr.bf16.gmra.mxu0 %v3530
        %v3684 = vpop.f32.mrf.mxu0
        %v3685 = vadd.f32 0.0, %v3684
        %v3686 = vpop.f32.mrf.mxu0
        %v3687 = vpop.f32.mrf.mxu0
        %v3688 = vadd.f32 0.0, %v3687
        %v3689 = vpop.f32.mrf.mxu0
        %3690 = vmatprep.mubr.bf16.mxu0 0
        %3691 = vmatmul.mubr.bf16.gmra.mxu0 %v3533
        %v3692 = vpop.f32.mrf.mxu0
        %v3693 = vadd.f32 0.0, %v3692
        %v3694 = vpop.f32.mrf.mxu0
        %v3695 = vpop.f32.mrf.mxu0
        %v3696 = vadd.f32 0.0, %v3695
        %v3697 = vpop.f32.mrf.mxu0
        %3698 = vdwg.mxu0
        %v3699 = vadd.f32 %v3277, %v3573
        %v3700 = vadd.f32 %v3278, %v3576
        %v3701 = vadd.f32 %v3279, %v3581
        %v3702 = vadd.f32 %v3280, %v3584
        %v3703 = vadd.f32 %v3281, %v3589
        %v3704 = vadd.f32 %v3282, %v3592
        %v3705 = vadd.f32 %v3283, %v3597
        %v3706 = vadd.f32 %v3284, %v3600
        %v3707 = vadd.f32 %v3285, %v3605
        %v3708 = vadd.f32 %v3286, %v3608
        %v3709 = vadd.f32 %v3287, %v3613
        %v3710 = vadd.f32 %v3288, %v3616
        %v3711 = vadd.f32 %v3289, %v3621
        %v3712 = vadd.f32 %v3290, %v3624
        %v3713 = vadd.f32 %v3291, %v3629
        %v3714 = vadd.f32 %v3292, %v3632
        %v3715 = vadd.f32 %v3293, %v3637
        %v3716 = vadd.f32 %v3294, %v3640
        %v3717 = vadd.f32 %v3295, %v3645
        %v3718 = vadd.f32 %v3296, %v3648
        %v3719 = vadd.f32 %v3297, %v3653
        %v3720 = vadd.f32 %v3298, %v3656
        %v3721 = vadd.f32 %v3299, %v3661
        %v3722 = vadd.f32 %v3300, %v3664
        %v3723 = vadd.f32 %v3301, %v3669
        %v3724 = vadd.f32 %v3302, %v3672
        %v3725 = vadd.f32 %v3303, %v3677
        %v3726 = vadd.f32 %v3304, %v3680
        %v3727 = vadd.f32 %v3305, %v3685
        %v3728 = vadd.f32 %v3306, %v3688
        %v3729 = vadd.f32 %v3307, %v3693
        %v3730 = vadd.f32 %v3308, %v3696
        %s3731 = scalar_lea.vmem %s792, 384 [#allocation2]
        %v3732 = vld [vmem:[%s3731] sm:$0xf]
        %v3733 = vld [vmem:[%s3731 + $0x4] sm:$0xf]
        %v3734 = vld [vmem:[%s3731 + $0x8] sm:$0x1]
        %v3735 = vld [vmem:[%s3731 + $0xc] sm:$0xf]
        %v3736 = vld [vmem:[%s3731 + $0x10] sm:$0xf]
        %v3737 = vld [vmem:[%s3731 + $0x14] sm:$0x1]
        %v3738 = vld [vmem:[%s3731 + $0x18] sm:$0xf]
        %v3739 = vld [vmem:[%s3731 + $0x1c] sm:$0xf]
        %v3740 = vld [vmem:[%s3731 + $0x20] sm:$0x1]
        %v3741 = vld [vmem:[%s3731 + $0x24] sm:$0xf]
        %v3742 = vld [vmem:[%s3731 + $0x28] sm:$0xf]
        %v3743 = vld [vmem:[%s3731 + $0x2c] sm:$0x1]
        %v3744 = vld [vmem:[%s3731 + $0x30] sm:$0xf]
        %v3745 = vld [vmem:[%s3731 + $0x34] sm:$0xf]
        %v3746 = vld [vmem:[%s3731 + $0x38] sm:$0x1]
        %v3747 = vld [vmem:[%s3731 + $0x3c] sm:$0xf]
        %v3748 = vld [vmem:[%s3731 + $0x40] sm:$0xf]
        %v3749 = vld [vmem:[%s3731 + $0x44] sm:$0x1]
        %v3750 = vld [vmem:[%s3731 + $0x48] sm:$0xf]
        %v3751 = vld [vmem:[%s3731 + $0x4c] sm:$0xf]
        %v3752 = vld [vmem:[%s3731 + $0x50] sm:$0x1]
        %v3753 = vld [vmem:[%s3731 + $0x54] sm:$0xf]
        %v3754 = vld [vmem:[%s3731 + $0x58] sm:$0xf]
        %v3755 = vld [vmem:[%s3731 + $0x5c] sm:$0x1]
        %v3756 = vld [vmem:[%s3731 + $0x60] sm:$0xf]
        %v3757 = vld [vmem:[%s3731 + $0x64] sm:$0xf]
        %v3758 = vld [vmem:[%s3731 + $0x68] sm:$0x1]
        %v3759 = vld [vmem:[%s3731 + $0x6c] sm:$0xf]
        %v3760 = vld [vmem:[%s3731 + $0x70] sm:$0xf]
        %v3761 = vld [vmem:[%s3731 + $0x74] sm:$0x1]
        %v3762 = vld [vmem:[%s3731 + $0x78] sm:$0xf]
        %v3763 = vld [vmem:[%s3731 + $0x7c] sm:$0xf]
        %v3764 = vld [vmem:[%s3731 + $0x80] sm:$0x1]
        %v3765 = vld [vmem:[%s3731 + $0x84] sm:$0xf]
        %v3766 = vld [vmem:[%s3731 + $0x88] sm:$0xf]
        %v3767 = vld [vmem:[%s3731 + $0x8c] sm:$0x1]
        %v3768 = vld [vmem:[%s3731 + $0x90] sm:$0xf]
        %v3769 = vld [vmem:[%s3731 + $0x94] sm:$0xf]
        %v3770 = vld [vmem:[%s3731 + $0x98] sm:$0x1]
        %v3771 = vld [vmem:[%s3731 + $0x9c] sm:$0xf]
        %v3772 = vld [vmem:[%s3731 + $0xa0] sm:$0xf]
        %v3773 = vld [vmem:[%s3731 + $0xa4] sm:$0x1]
        %v3774 = vld [vmem:[%s3731 + $0xa8] sm:$0xf]
        %v3775 = vld [vmem:[%s3731 + $0xac] sm:$0xf]
        %v3776 = vld [vmem:[%s3731 + $0xb0] sm:$0x1]
        %v3777 = vld [vmem:[%s3731 + $0xb4] sm:$0xf]
        %v3778 = vld [vmem:[%s3731 + $0xb8] sm:$0xf]
        %v3779 = vld [vmem:[%s3731 + $0xbc] sm:$0x1]
        %s3780 = scalar_lea.vmem %s1, 12
        %v3781 = vld [vmem:[%s3780] sm:$0x3]
        %v3814 = vunpack.c.l.b16 %v3732
        %v3815 = vunpack.c.l.b16 %v3733
        %v3816 = vunpack.c.l.b16 %v3735
        %v3817 = vunpack.c.l.b16 %v3736
        %v3818 = vunpack.c.l.b16 %v3738
        %v3819 = vunpack.c.l.b16 %v3739
        %v3820 = vunpack.c.l.b16 %v3741
        %v3821 = vunpack.c.l.b16 %v3742
        %v3822 = vunpack.c.l.b16 %v3744
        %v3823 = vunpack.c.l.b16 %v3745
        %v3824 = vunpack.c.l.b16 %v3747
        %v3825 = vunpack.c.l.b16 %v3748
        %v3826 = vunpack.c.l.b16 %v3750
        %v3827 = vunpack.c.l.b16 %v3751
        %v3828 = vunpack.c.l.b16 %v3753
        %v3829 = vunpack.c.l.b16 %v3754
        %v3830 = vunpack.c.l.b16 %v3756
        %v3831 = vunpack.c.l.b16 %v3757
        %v3832 = vunpack.c.l.b16 %v3759
        %v3833 = vunpack.c.l.b16 %v3760
        %v3834 = vunpack.c.l.b16 %v3762
        %v3835 = vunpack.c.l.b16 %v3763
        %v3836 = vunpack.c.l.b16 %v3765
        %v3837 = vunpack.c.l.b16 %v3766
        %v3838 = vunpack.c.l.b16 %v3768
        %v3839 = vunpack.c.l.b16 %v3769
        %v3840 = vunpack.c.l.b16 %v3771
        %v3841 = vunpack.c.l.b16 %v3772
        %v3842 = vunpack.c.l.b16 %v3774
        %v3843 = vunpack.c.l.b16 %v3775
        %v3844 = vunpack.c.l.b16 %v3777
        %v3845 = vunpack.c.l.b16 %v3778
        %v3846 = vpack.c.b16 %v3815, %v3814
        %v3847 = vpack.c.b16 %v3817, %v3816
        %v3848 = vpack.c.b16 %v3819, %v3818
        %v3849 = vpack.c.b16 %v3821, %v3820
        %v3850 = vpack.c.b16 %v3823, %v3822
        %v3851 = vpack.c.b16 %v3825, %v3824
        %v3852 = vpack.c.b16 %v3827, %v3826
        %v3853 = vpack.c.b16 %v3829, %v3828
        %v3854 = vpack.c.b16 %v3831, %v3830
        %v3855 = vpack.c.b16 %v3833, %v3832
        %v3856 = vpack.c.b16 %v3835, %v3834
        %v3857 = vpack.c.b16 %v3837, %v3836
        %v3858 = vpack.c.b16 %v3839, %v3838
        %v3859 = vpack.c.b16 %v3841, %v3840
        %v3860 = vpack.c.b16 %v3843, %v3842
        %v3861 = vpack.c.b16 %v3845, %v3844
        %v3863 = vsel %vm1325, %v3846, 0
        %v3866 = vsel %vm1325, %v3847, 0
        %v3869 = vsel %vm1325, %v3848, 0
        %v3872 = vsel %vm1325, %v3849, 0
        %v3875 = vsel %vm1325, %v3850, 0
        %v3878 = vsel %vm1325, %v3851, 0
        %v3881 = vsel %vm1325, %v3852, 0
        %v3884 = vsel %vm1325, %v3853, 0
        %v3887 = vsel %vm1325, %v3854, 0
        %v3890 = vsel %vm1325, %v3855, 0
        %v3893 = vsel %vm1325, %v3856, 0
        %v3896 = vsel %vm1325, %v3857, 0
        %v3899 = vsel %vm1325, %v3858, 0
        %v3902 = vsel %vm1325, %v3859, 0
        %v3905 = vsel %vm1325, %v3860, 0
        %v3908 = vsel %vm1325, %v3861, 0
        %v3911 = vsel %vm1374, %v3781, 0
        %3913 = vmatprep.subr.bf16.mxu0 0
        %3914 = vmatpush1.bf16.msra.mxu0 0
        %3915 = vmatprep.subr.bf16.mxu0 0
        %3916 = vmatpush1.bf16.msra.mxu0 0
        %3917 = vmatprep.subr.bf16.mxu0 0
        %3918 = vmatpush1.bf16.msra.mxu0 0
        %3919 = vmatprep.subr.bf16.mxu0 0
        %3920 = vmatpush1.bf16.msra.mxu0 0
        %3921 = vmatprep.subr.bf16.mxu0 0
        %3922 = vmatpush1.bf16.msra.mxu0 0
        %3923 = vmatprep.subr.bf16.mxu0 0
        %3924 = vmatpush1.bf16.msra.mxu0 0
        %3925 = vmatprep.subr.bf16.mxu0 0
        %3926 = vmatpush1.bf16.msra.mxu0 0
        %3927 = vmatprep.subr.bf16.mxu0 0
        %3928 = vmatpush1.bf16.msra.mxu0 %v3911
        %3929 = vmatprep.subr.bf16.mxu0 0
        %3930 = vmatpush2.bf16.msra.mxu0 0
        %3931 = vmatprep.subr.bf16.mxu0 0
        %3932 = vmatpush2.bf16.msra.mxu0 0
        %3933 = vmatprep.subr.bf16.mxu0 0
        %3934 = vmatpush2.bf16.msra.mxu0 0
        %3935 = vmatprep.subr.bf16.mxu0 0
        %3936 = vmatpush2.bf16.msra.mxu0 0
        %3937 = vmatprep.subr.bf16.mxu0 0
        %3938 = vmatpush2.bf16.msra.mxu0 0
        %3939 = vmatprep.subr.bf16.mxu0 0
        %3940 = vmatpush2.bf16.msra.mxu0 0
        %3941 = vmatprep.subr.bf16.mxu0 0
        %3942 = vmatpush2.bf16.msra.mxu0 0
        %3943 = vmatprep.subr.bf16.mxu0 0
        %3944 = vmatpush2.bf16.msra.mxu0 0
        %3945 = vmatprep.mubr.bf16.mxu0 0
        %3946 = vmatmul.mubr.bf16.gmra.mxu0 %v3863
        %v3947 = vpop.f32.mrf.mxu0
        %v3948 = vadd.f32 0.0, %v3947
        %v3949 = vpop.f32.mrf.mxu0
        %v3950 = vpop.f32.mrf.mxu0
        %v3951 = vadd.f32 0.0, %v3950
        %v3952 = vpop.f32.mrf.mxu0
        %3953 = vmatprep.mubr.bf16.mxu0 0
        %3954 = vmatmul.mubr.bf16.gmra.mxu0 %v3866
        %v3955 = vpop.f32.mrf.mxu0
        %v3956 = vadd.f32 0.0, %v3955
        %v3957 = vpop.f32.mrf.mxu0
        %v3958 = vpop.f32.mrf.mxu0
        %v3959 = vadd.f32 0.0, %v3958
        %v3960 = vpop.f32.mrf.mxu0
        %3961 = vmatprep.mubr.bf16.mxu0 0
        %3962 = vmatmul.mubr.bf16.gmra.mxu0 %v3869
        %v3963 = vpop.f32.mrf.mxu0
        %v3964 = vadd.f32 0.0, %v3963
        %v3965 = vpop.f32.mrf.mxu0
        %v3966 = vpop.f32.mrf.mxu0
        %v3967 = vadd.f32 0.0, %v3966
        %v3968 = vpop.f32.mrf.mxu0
        %3969 = vmatprep.mubr.bf16.mxu0 0
        %3970 = vmatmul.mubr.bf16.gmra.mxu0 %v3872
        %v3971 = vpop.f32.mrf.mxu0
        %v3972 = vadd.f32 0.0, %v3971
        %v3973 = vpop.f32.mrf.mxu0
        %v3974 = vpop.f32.mrf.mxu0
        %v3975 = vadd.f32 0.0, %v3974
        %v3976 = vpop.f32.mrf.mxu0
        %3977 = vmatprep.mubr.bf16.mxu0 0
        %3978 = vmatmul.mubr.bf16.gmra.mxu0 %v3875
        %v3979 = vpop.f32.mrf.mxu0
        %v3980 = vadd.f32 0.0, %v3979
        %v3981 = vpop.f32.mrf.mxu0
        %v3982 = vpop.f32.mrf.mxu0
        %v3983 = vadd.f32 0.0, %v3982
        %v3984 = vpop.f32.mrf.mxu0
        %3985 = vmatprep.mubr.bf16.mxu0 0
        %3986 = vmatmul.mubr.bf16.gmra.mxu0 %v3878
        %v3987 = vpop.f32.mrf.mxu0
        %v3988 = vadd.f32 0.0, %v3987
        %v3989 = vpop.f32.mrf.mxu0
        %v3990 = vpop.f32.mrf.mxu0
        %v3991 = vadd.f32 0.0, %v3990
        %v3992 = vpop.f32.mrf.mxu0
        %3993 = vmatprep.mubr.bf16.mxu0 0
        %3994 = vmatmul.mubr.bf16.gmra.mxu0 %v3881
        %v3995 = vpop.f32.mrf.mxu0
        %v3996 = vadd.f32 0.0, %v3995
        %v3997 = vpop.f32.mrf.mxu0
        %v3998 = vpop.f32.mrf.mxu0
        %v3999 = vadd.f32 0.0, %v3998
        %v4000 = vpop.f32.mrf.mxu0
        %4001 = vmatprep.mubr.bf16.mxu0 0
        %4002 = vmatmul.mubr.bf16.gmra.mxu0 %v3884
        %v4003 = vpop.f32.mrf.mxu0
        %v4004 = vadd.f32 0.0, %v4003
        %v4005 = vpop.f32.mrf.mxu0
        %v4006 = vpop.f32.mrf.mxu0
        %v4007 = vadd.f32 0.0, %v4006
        %v4008 = vpop.f32.mrf.mxu0
        %4009 = vmatprep.mubr.bf16.mxu0 0
        %4010 = vmatmul.mubr.bf16.gmra.mxu0 %v3887
        %v4011 = vpop.f32.mrf.mxu0
        %v4012 = vadd.f32 0.0, %v4011
        %v4013 = vpop.f32.mrf.mxu0
        %v4014 = vpop.f32.mrf.mxu0
        %v4015 = vadd.f32 0.0, %v4014
        %v4016 = vpop.f32.mrf.mxu0
        %4017 = vmatprep.mubr.bf16.mxu0 0
        %4018 = vmatmul.mubr.bf16.gmra.mxu0 %v3890
        %v4019 = vpop.f32.mrf.mxu0
        %v4020 = vadd.f32 0.0, %v4019
        %v4021 = vpop.f32.mrf.mxu0
        %v4022 = vpop.f32.mrf.mxu0
        %v4023 = vadd.f32 0.0, %v4022
        %v4024 = vpop.f32.mrf.mxu0
        %4025 = vmatprep.mubr.bf16.mxu0 0
        %4026 = vmatmul.mubr.bf16.gmra.mxu0 %v3893
        %v4027 = vpop.f32.mrf.mxu0
        %v4028 = vadd.f32 0.0, %v4027
        %v4029 = vpop.f32.mrf.mxu0
        %v4030 = vpop.f32.mrf.mxu0
        %v4031 = vadd.f32 0.0, %v4030
        %v4032 = vpop.f32.mrf.mxu0
        %4033 = vmatprep.mubr.bf16.mxu0 0
        %4034 = vmatmul.mubr.bf16.gmra.mxu0 %v3896
        %v4035 = vpop.f32.mrf.mxu0
        %v4036 = vadd.f32 0.0, %v4035
        %v4037 = vpop.f32.mrf.mxu0
        %v4038 = vpop.f32.mrf.mxu0
        %v4039 = vadd.f32 0.0, %v4038
        %v4040 = vpop.f32.mrf.mxu0
        %4041 = vmatprep.mubr.bf16.mxu0 0
        %4042 = vmatmul.mubr.bf16.gmra.mxu0 %v3899
        %v4043 = vpop.f32.mrf.mxu0
        %v4044 = vadd.f32 0.0, %v4043
        %v4045 = vpop.f32.mrf.mxu0
        %v4046 = vpop.f32.mrf.mxu0
        %v4047 = vadd.f32 0.0, %v4046
        %v4048 = vpop.f32.mrf.mxu0
        %4049 = vmatprep.mubr.bf16.mxu0 0
        %4050 = vmatmul.mubr.bf16.gmra.mxu0 %v3902
        %v4051 = vpop.f32.mrf.mxu0
        %v4052 = vadd.f32 0.0, %v4051
        %v4053 = vpop.f32.mrf.mxu0
        %v4054 = vpop.f32.mrf.mxu0
        %v4055 = vadd.f32 0.0, %v4054
        %v4056 = vpop.f32.mrf.mxu0
        %4057 = vmatprep.mubr.bf16.mxu0 0
        %4058 = vmatmul.mubr.bf16.gmra.mxu0 %v3905
        %v4059 = vpop.f32.mrf.mxu0
        %v4060 = vadd.f32 0.0, %v4059
        %v4061 = vpop.f32.mrf.mxu0
        %v4062 = vpop.f32.mrf.mxu0
        %v4063 = vadd.f32 0.0, %v4062
        %v4064 = vpop.f32.mrf.mxu0
        %4065 = vmatprep.mubr.bf16.mxu0 0
        %4066 = vmatmul.mubr.bf16.gmra.mxu0 %v3908
        %v4067 = vpop.f32.mrf.mxu0
        %v4068 = vadd.f32 0.0, %v4067
        %v4069 = vpop.f32.mrf.mxu0
        %v4070 = vpop.f32.mrf.mxu0
        %v4071 = vadd.f32 0.0, %v4070
        %v4072 = vpop.f32.mrf.mxu0
        %4073 = vdwg.mxu0
        %v4074 = vadd.f32 %v3699, %v3948
        %v4075 = vadd.f32 %v3700, %v3951
        %v4076 = vadd.f32 %v3701, %v3956
        %v4077 = vadd.f32 %v3702, %v3959
        %v4078 = vadd.f32 %v3703, %v3964
        %v4079 = vadd.f32 %v3704, %v3967
        %v4080 = vadd.f32 %v3705, %v3972
        %v4081 = vadd.f32 %v3706, %v3975
        %v4082 = vadd.f32 %v3707, %v3980
        %v4083 = vadd.f32 %v3708, %v3983
        %v4084 = vadd.f32 %v3709, %v3988
        %v4085 = vadd.f32 %v3710, %v3991
        %v4086 = vadd.f32 %v3711, %v3996
        %v4087 = vadd.f32 %v3712, %v3999
        %v4088 = vadd.f32 %v3713, %v4004
        %v4089 = vadd.f32 %v3714, %v4007
        %v4090 = vadd.f32 %v3715, %v4012
        %v4091 = vadd.f32 %v3716, %v4015
        %v4092 = vadd.f32 %v3717, %v4020
        %v4093 = vadd.f32 %v3718, %v4023
        %v4094 = vadd.f32 %v3719, %v4028
        %v4095 = vadd.f32 %v3720, %v4031
        %v4096 = vadd.f32 %v3721, %v4036
        %v4097 = vadd.f32 %v3722, %v4039
        %v4098 = vadd.f32 %v3723, %v4044
        %v4099 = vadd.f32 %v3724, %v4047
        %v4100 = vadd.f32 %v3725, %v4052
        %v4101 = vadd.f32 %v3726, %v4055
        %v4102 = vadd.f32 %v3727, %v4060
        %v4103 = vadd.f32 %v3728, %v4063
        %v4104 = vadd.f32 %v3729, %v4068
        %v4105 = vadd.f32 %v3730, %v4071
        %v4107 = vshrl.u32 %v3732, 16
        %v4109 = vrot.slane %v4107, 4
        %v4110 = vshll.u32 %v3732, 16
        %v4112 = vrot.slane %v4110, 5
        %v4113 = vor.u32 %v4109, %v4112
        %v4114 = vrot.slane %v4113, 4
        %v4116 = vshll.u32 %v3733, 16
        %v4118 = vrot.slane %v4116, 5
        %v4119 = vsel %vm890, %v4114, %v4118
        %v4120 = vshrl.u32 %v3733, 16
        %v4122 = vrot.slane %v4120, 4
        %v4123 = vor.u32 %v4122, %v4118
        %v4124 = vrot.slane %v4123, 4
        %v4126 = vshll.u32 %v3734, 16
        %v4128 = vrot.slane %v4126, 5
        %v4129 = vsel %vm890, %v4124, %v4128
        %v4131 = vshrl.u32 %v3735, 16
        %v4133 = vrot.slane %v4131, 4
        %v4134 = vshll.u32 %v3735, 16
        %v4136 = vrot.slane %v4134, 5
        %v4137 = vor.u32 %v4133, %v4136
        %v4138 = vrot.slane %v4137, 4
        %v4140 = vshll.u32 %v3736, 16
        %v4142 = vrot.slane %v4140, 5
        %v4143 = vsel %vm890, %v4138, %v4142
        %v4144 = vshrl.u32 %v3736, 16
        %v4146 = vrot.slane %v4144, 4
        %v4147 = vor.u32 %v4146, %v4142
        %v4148 = vrot.slane %v4147, 4
        %v4150 = vshll.u32 %v3737, 16
        %v4152 = vrot.slane %v4150, 5
        %v4153 = vsel %vm890, %v4148, %v4152
        %v4155 = vshrl.u32 %v3738, 16
        %v4157 = vrot.slane %v4155, 4
        %v4158 = vshll.u32 %v3738, 16
        %v4160 = vrot.slane %v4158, 5
        %v4161 = vor.u32 %v4157, %v4160
        %v4162 = vrot.slane %v4161, 4
        %v4164 = vshll.u32 %v3739, 16
        %v4166 = vrot.slane %v4164, 5
        %v4167 = vsel %vm890, %v4162, %v4166
        %v4168 = vshrl.u32 %v3739, 16
        %v4170 = vrot.slane %v4168, 4
        %v4171 = vor.u32 %v4170, %v4166
        %v4172 = vrot.slane %v4171, 4
        %v4174 = vshll.u32 %v3740, 16
        %v4176 = vrot.slane %v4174, 5
        %v4177 = vsel %vm890, %v4172, %v4176
        %v4179 = vshrl.u32 %v3741, 16
        %v4181 = vrot.slane %v4179, 4
        %v4182 = vshll.u32 %v3741, 16
        %v4184 = vrot.slane %v4182, 5
        %v4185 = vor.u32 %v4181, %v4184
        %v4186 = vrot.slane %v4185, 4
        %v4188 = vshll.u32 %v3742, 16
        %v4190 = vrot.slane %v4188, 5
        %v4191 = vsel %vm890, %v4186, %v4190
        %v4192 = vshrl.u32 %v3742, 16
        %v4194 = vrot.slane %v4192, 4
        %v4195 = vor.u32 %v4194, %v4190
        %v4196 = vrot.slane %v4195, 4
        %v4198 = vshll.u32 %v3743, 16
        %v4200 = vrot.slane %v4198, 5
        %v4201 = vsel %vm890, %v4196, %v4200
        %v4203 = vshrl.u32 %v3744, 16
        %v4205 = vrot.slane %v4203, 4
        %v4206 = vshll.u32 %v3744, 16
        %v4208 = vrot.slane %v4206, 5
        %v4209 = vor.u32 %v4205, %v4208
        %v4210 = vrot.slane %v4209, 4
        %v4212 = vshll.u32 %v3745, 16
        %v4214 = vrot.slane %v4212, 5
        %v4215 = vsel %vm890, %v4210, %v4214
        %v4216 = vshrl.u32 %v3745, 16
        %v4218 = vrot.slane %v4216, 4
        %v4219 = vor.u32 %v4218, %v4214
        %v4220 = vrot.slane %v4219, 4
        %v4222 = vshll.u32 %v3746, 16
        %v4224 = vrot.slane %v4222, 5
        %v4225 = vsel %vm890, %v4220, %v4224
        %v4227 = vshrl.u32 %v3747, 16
        %v4229 = vrot.slane %v4227, 4
        %v4230 = vshll.u32 %v3747, 16
        %v4232 = vrot.slane %v4230, 5
        %v4233 = vor.u32 %v4229, %v4232
        %v4234 = vrot.slane %v4233, 4
        %v4236 = vshll.u32 %v3748, 16
        %v4238 = vrot.slane %v4236, 5
        %v4239 = vsel %vm890, %v4234, %v4238
        %v4240 = vshrl.u32 %v3748, 16
        %v4242 = vrot.slane %v4240, 4
        %v4243 = vor.u32 %v4242, %v4238
        %v4244 = vrot.slane %v4243, 4
        %v4246 = vshll.u32 %v3749, 16
        %v4248 = vrot.slane %v4246, 5
        %v4249 = vsel %vm890, %v4244, %v4248
        %v4251 = vshrl.u32 %v3750, 16
        %v4253 = vrot.slane %v4251, 4
        %v4254 = vshll.u32 %v3750, 16
        %v4256 = vrot.slane %v4254, 5
        %v4257 = vor.u32 %v4253, %v4256
        %v4258 = vrot.slane %v4257, 4
        %v4260 = vshll.u32 %v3751, 16
        %v4262 = vrot.slane %v4260, 5
        %v4263 = vsel %vm890, %v4258, %v4262
        %v4264 = vshrl.u32 %v3751, 16
        %v4266 = vrot.slane %v4264, 4
        %v4267 = vor.u32 %v4266, %v4262
        %v4268 = vrot.slane %v4267, 4
        %v4270 = vshll.u32 %v3752, 16
        %v4272 = vrot.slane %v4270, 5
        %v4273 = vsel %vm890, %v4268, %v4272
        %v4275 = vshrl.u32 %v3753, 16
        %v4277 = vrot.slane %v4275, 4
        %v4278 = vshll.u32 %v3753, 16
        %v4280 = vrot.slane %v4278, 5
        %v4281 = vor.u32 %v4277, %v4280
        %v4282 = vrot.slane %v4281, 4
        %v4284 = vshll.u32 %v3754, 16
        %v4286 = vrot.slane %v4284, 5
        %v4287 = vsel %vm890, %v4282, %v4286
        %v4288 = vshrl.u32 %v3754, 16
        %v4290 = vrot.slane %v4288, 4
        %v4291 = vor.u32 %v4290, %v4286
        %v4292 = vrot.slane %v4291, 4
        %v4294 = vshll.u32 %v3755, 16
        %v4296 = vrot.slane %v4294, 5
        %v4297 = vsel %vm890, %v4292, %v4296
        %v4299 = vshrl.u32 %v3756, 16
        %v4301 = vrot.slane %v4299, 4
        %v4302 = vshll.u32 %v3756, 16
        %v4304 = vrot.slane %v4302, 5
        %v4305 = vor.u32 %v4301, %v4304
        %v4306 = vrot.slane %v4305, 4
        %v4308 = vshll.u32 %v3757, 16
        %v4310 = vrot.slane %v4308, 5
        %v4311 = vsel %vm890, %v4306, %v4310
        %v4312 = vshrl.u32 %v3757, 16
        %v4314 = vrot.slane %v4312, 4
        %v4315 = vor.u32 %v4314, %v4310
        %v4316 = vrot.slane %v4315, 4
        %v4318 = vshll.u32 %v3758, 16
        %v4320 = vrot.slane %v4318, 5
        %v4321 = vsel %vm890, %v4316, %v4320
        %v4323 = vshrl.u32 %v3759, 16
        %v4325 = vrot.slane %v4323, 4
        %v4326 = vshll.u32 %v3759, 16
        %v4328 = vrot.slane %v4326, 5
        %v4329 = vor.u32 %v4325, %v4328
        %v4330 = vrot.slane %v4329, 4
        %v4332 = vshll.u32 %v3760, 16
        %v4334 = vrot.slane %v4332, 5
        %v4335 = vsel %vm890, %v4330, %v4334
        %v4336 = vshrl.u32 %v3760, 16
        %v4338 = vrot.slane %v4336, 4
        %v4339 = vor.u32 %v4338, %v4334
        %v4340 = vrot.slane %v4339, 4
        %v4342 = vshll.u32 %v3761, 16
        %v4344 = vrot.slane %v4342, 5
        %v4345 = vsel %vm890, %v4340, %v4344
        %v4347 = vshrl.u32 %v3762, 16
        %v4349 = vrot.slane %v4347, 4
        %v4350 = vshll.u32 %v3762, 16
        %v4352 = vrot.slane %v4350, 5
        %v4353 = vor.u32 %v4349, %v4352
        %v4354 = vrot.slane %v4353, 4
        %v4356 = vshll.u32 %v3763, 16
        %v4358 = vrot.slane %v4356, 5
        %v4359 = vsel %vm890, %v4354, %v4358
        %v4360 = vshrl.u32 %v3763, 16
        %v4362 = vrot.slane %v4360, 4
        %v4363 = vor.u32 %v4362, %v4358
        %v4364 = vrot.slane %v4363, 4
        %v4366 = vshll.u32 %v3764, 16
        %v4368 = vrot.slane %v4366, 5
        %v4369 = vsel %vm890, %v4364, %v4368
        %v4371 = vshrl.u32 %v3765, 16
        %v4373 = vrot.slane %v4371, 4
        %v4374 = vshll.u32 %v3765, 16
        %v4376 = vrot.slane %v4374, 5
        %v4377 = vor.u32 %v4373, %v4376
        %v4378 = vrot.slane %v4377, 4
        %v4380 = vshll.u32 %v3766, 16
        %v4382 = vrot.slane %v4380, 5
        %v4383 = vsel %vm890, %v4378, %v4382
        %v4384 = vshrl.u32 %v3766, 16
        %v4386 = vrot.slane %v4384, 4
        %v4387 = vor.u32 %v4386, %v4382
        %v4388 = vrot.slane %v4387, 4
        %v4390 = vshll.u32 %v3767, 16
        %v4392 = vrot.slane %v4390, 5
        %v4393 = vsel %vm890, %v4388, %v4392
        %v4395 = vshrl.u32 %v3768, 16
        %v4397 = vrot.slane %v4395, 4
        %v4398 = vshll.u32 %v3768, 16
        %v4400 = vrot.slane %v4398, 5
        %v4401 = vor.u32 %v4397, %v4400
        %v4402 = vrot.slane %v4401, 4
        %v4404 = vshll.u32 %v3769, 16
        %v4406 = vrot.slane %v4404, 5
        %v4407 = vsel %vm890, %v4402, %v4406
        %v4408 = vshrl.u32 %v3769, 16
        %v4410 = vrot.slane %v4408, 4
        %v4411 = vor.u32 %v4410, %v4406
        %v4412 = vrot.slane %v4411, 4
        %v4414 = vshll.u32 %v3770, 16
        %v4416 = vrot.slane %v4414, 5
        %v4417 = vsel %vm890, %v4412, %v4416
        %v4419 = vshrl.u32 %v3771, 16
        %v4421 = vrot.slane %v4419, 4
        %v4422 = vshll.u32 %v3771, 16
        %v4424 = vrot.slane %v4422, 5
        %v4425 = vor.u32 %v4421, %v4424
        %v4426 = vrot.slane %v4425, 4
        %v4428 = vshll.u32 %v3772, 16
        %v4430 = vrot.slane %v4428, 5
        %v4431 = vsel %vm890, %v4426, %v4430
        %v4432 = vshrl.u32 %v3772, 16
        %v4434 = vrot.slane %v4432, 4
        %v4435 = vor.u32 %v4434, %v4430
        %v4436 = vrot.slane %v4435, 4
        %v4438 = vshll.u32 %v3773, 16
        %v4440 = vrot.slane %v4438, 5
        %v4441 = vsel %vm890, %v4436, %v4440
        %v4443 = vshrl.u32 %v3774, 16
        %v4445 = vrot.slane %v4443, 4
        %v4446 = vshll.u32 %v3774, 16
        %v4448 = vrot.slane %v4446, 5
        %v4449 = vor.u32 %v4445, %v4448
        %v4450 = vrot.slane %v4449, 4
        %v4452 = vshll.u32 %v3775, 16
        %v4454 = vrot.slane %v4452, 5
        %v4455 = vsel %vm890, %v4450, %v4454
        %v4456 = vshrl.u32 %v3775, 16
        %v4458 = vrot.slane %v4456, 4
        %v4459 = vor.u32 %v4458, %v4454
        %v4460 = vrot.slane %v4459, 4
        %v4462 = vshll.u32 %v3776, 16
        %v4464 = vrot.slane %v4462, 5
        %v4465 = vsel %vm890, %v4460, %v4464
        %v4467 = vshrl.u32 %v3777, 16
        %v4469 = vrot.slane %v4467, 4
        %v4470 = vshll.u32 %v3777, 16
        %v4472 = vrot.slane %v4470, 5
        %v4473 = vor.u32 %v4469, %v4472
        %v4474 = vrot.slane %v4473, 4
        %v4476 = vshll.u32 %v3778, 16
        %v4478 = vrot.slane %v4476, 5
        %v4479 = vsel %vm890, %v4474, %v4478
        %v4480 = vshrl.u32 %v3778, 16
        %v4482 = vrot.slane %v4480, 4
        %v4483 = vor.u32 %v4482, %v4478
        %v4484 = vrot.slane %v4483, 4
        %v4486 = vshll.u32 %v3779, 16
        %v4488 = vrot.slane %v4486, 5
        %v4489 = vsel %vm890, %v4484, %v4488
        %s4490 = scalar_lea.vmem %s1, 14
        %v4491 = vld [vmem:[%s4490] sm:$0x3]
        %v4492 = vunpack.c.l.b16 %v4119
        %v4493 = vunpack.c.l.b16 %v4129
        %v4494 = vunpack.c.l.b16 %v4143
        %v4495 = vunpack.c.l.b16 %v4153
        %v4496 = vunpack.c.l.b16 %v4167
        %v4497 = vunpack.c.l.b16 %v4177
        %v4498 = vunpack.c.l.b16 %v4191
        %v4499 = vunpack.c.l.b16 %v4201
        %v4500 = vunpack.c.l.b16 %v4215
        %v4501 = vunpack.c.l.b16 %v4225
        %v4502 = vunpack.c.l.b16 %v4239
        %v4503 = vunpack.c.l.b16 %v4249
        %v4504 = vunpack.c.l.b16 %v4263
        %v4505 = vunpack.c.l.b16 %v4273
        %v4506 = vunpack.c.l.b16 %v4287
        %v4507 = vunpack.c.l.b16 %v4297
        %v4508 = vunpack.c.l.b16 %v4311
        %v4509 = vunpack.c.l.b16 %v4321
        %v4510 = vunpack.c.l.b16 %v4335
        %v4511 = vunpack.c.l.b16 %v4345
        %v4512 = vunpack.c.l.b16 %v4359
        %v4513 = vunpack.c.l.b16 %v4369
        %v4514 = vunpack.c.l.b16 %v4383
        %v4515 = vunpack.c.l.b16 %v4393
        %v4516 = vunpack.c.l.b16 %v4407
        %v4517 = vunpack.c.l.b16 %v4417
        %v4518 = vunpack.c.l.b16 %v4431
        %v4519 = vunpack.c.l.b16 %v4441
        %v4520 = vunpack.c.l.b16 %v4455
        %v4521 = vunpack.c.l.b16 %v4465
        %v4522 = vunpack.c.l.b16 %v4479
        %v4523 = vunpack.c.l.b16 %v4489
        %v4524 = vpack.c.b16 %v4493, %v4492
        %v4525 = vpack.c.b16 %v4495, %v4494
        %v4526 = vpack.c.b16 %v4497, %v4496
        %v4527 = vpack.c.b16 %v4499, %v4498
        %v4528 = vpack.c.b16 %v4501, %v4500
        %v4529 = vpack.c.b16 %v4503, %v4502
        %v4530 = vpack.c.b16 %v4505, %v4504
        %v4531 = vpack.c.b16 %v4507, %v4506
        %v4532 = vpack.c.b16 %v4509, %v4508
        %v4533 = vpack.c.b16 %v4511, %v4510
        %v4534 = vpack.c.b16 %v4513, %v4512
        %v4535 = vpack.c.b16 %v4515, %v4514
        %v4536 = vpack.c.b16 %v4517, %v4516
        %v4537 = vpack.c.b16 %v4519, %v4518
        %v4538 = vpack.c.b16 %v4521, %v4520
        %v4539 = vpack.c.b16 %v4523, %v4522
        %v4541 = vsel %vm1325, %v4524, 0
        %v4544 = vsel %vm1325, %v4525, 0
        %v4547 = vsel %vm1325, %v4526, 0
        %v4550 = vsel %vm1325, %v4527, 0
        %v4553 = vsel %vm1325, %v4528, 0
        %v4556 = vsel %vm1325, %v4529, 0
        %v4559 = vsel %vm1325, %v4530, 0
        %v4562 = vsel %vm1325, %v4531, 0
        %v4565 = vsel %vm1325, %v4532, 0
        %v4568 = vsel %vm1325, %v4533, 0
        %v4571 = vsel %vm1325, %v4534, 0
        %v4574 = vsel %vm1325, %v4535, 0
        %v4577 = vsel %vm1325, %v4536, 0
        %v4580 = vsel %vm1325, %v4537, 0
        %v4583 = vsel %vm1325, %v4538, 0
        %v4586 = vsel %vm1325, %v4539, 0
        %v4589 = vsel %vm1374, %v4491, 0
        %4591 = vmatprep.subr.bf16.mxu0 0
        %4592 = vmatpush1.bf16.msra.mxu0 0
        %4593 = vmatprep.subr.bf16.mxu0 0
        %4594 = vmatpush1.bf16.msra.mxu0 0
        %4595 = vmatprep.subr.bf16.mxu0 0
        %4596 = vmatpush1.bf16.msra.mxu0 0
        %4597 = vmatprep.subr.bf16.mxu0 0
        %4598 = vmatpush1.bf16.msra.mxu0 0
        %4599 = vmatprep.subr.bf16.mxu0 0
        %4600 = vmatpush1.bf16.msra.mxu0 0
        %4601 = vmatprep.subr.bf16.mxu0 0
        %4602 = vmatpush1.bf16.msra.mxu0 0
        %4603 = vmatprep.subr.bf16.mxu0 0
        %4604 = vmatpush1.bf16.msra.mxu0 0
        %4605 = vmatprep.subr.bf16.mxu0 0
        %4606 = vmatpush1.bf16.msra.mxu0 %v4589
        %4607 = vmatprep.subr.bf16.mxu0 0
        %4608 = vmatpush2.bf16.msra.mxu0 0
        %4609 = vmatprep.subr.bf16.mxu0 0
        %4610 = vmatpush2.bf16.msra.mxu0 0
        %4611 = vmatprep.subr.bf16.mxu0 0
        %4612 = vmatpush2.bf16.msra.mxu0 0
        %4613 = vmatprep.subr.bf16.mxu0 0
        %4614 = vmatpush2.bf16.msra.mxu0 0
        %4615 = vmatprep.subr.bf16.mxu0 0
        %4616 = vmatpush2.bf16.msra.mxu0 0
        %4617 = vmatprep.subr.bf16.mxu0 0
        %4618 = vmatpush2.bf16.msra.mxu0 0
        %4619 = vmatprep.subr.bf16.mxu0 0
        %4620 = vmatpush2.bf16.msra.mxu0 0
        %4621 = vmatprep.subr.bf16.mxu0 0
        %4622 = vmatpush2.bf16.msra.mxu0 0
        %4623 = vmatprep.mubr.bf16.mxu0 0
        %4624 = vmatmul.mubr.bf16.gmra.mxu0 %v4541
        %v4625 = vpop.f32.mrf.mxu0
        %v4626 = vadd.f32 0.0, %v4625
        %v4627 = vpop.f32.mrf.mxu0
        %v4628 = vpop.f32.mrf.mxu0
        %v4629 = vadd.f32 0.0, %v4628
        %v4630 = vpop.f32.mrf.mxu0
        %4631 = vmatprep.mubr.bf16.mxu0 0
        %4632 = vmatmul.mubr.bf16.gmra.mxu0 %v4544
        %v4633 = vpop.f32.mrf.mxu0
        %v4634 = vadd.f32 0.0, %v4633
        %v4635 = vpop.f32.mrf.mxu0
        %v4636 = vpop.f32.mrf.mxu0
        %v4637 = vadd.f32 0.0, %v4636
        %v4638 = vpop.f32.mrf.mxu0
        %4639 = vmatprep.mubr.bf16.mxu0 0
        %4640 = vmatmul.mubr.bf16.gmra.mxu0 %v4547
        %v4641 = vpop.f32.mrf.mxu0
        %v4642 = vadd.f32 0.0, %v4641
        %v4643 = vpop.f32.mrf.mxu0
        %v4644 = vpop.f32.mrf.mxu0
        %v4645 = vadd.f32 0.0, %v4644
        %v4646 = vpop.f32.mrf.mxu0
        %4647 = vmatprep.mubr.bf16.mxu0 0
        %4648 = vmatmul.mubr.bf16.gmra.mxu0 %v4550
        %v4649 = vpop.f32.mrf.mxu0
        %v4650 = vadd.f32 0.0, %v4649
        %v4651 = vpop.f32.mrf.mxu0
        %v4652 = vpop.f32.mrf.mxu0
        %v4653 = vadd.f32 0.0, %v4652
        %v4654 = vpop.f32.mrf.mxu0
        %4655 = vmatprep.mubr.bf16.mxu0 0
        %4656 = vmatmul.mubr.bf16.gmra.mxu0 %v4553
        %v4657 = vpop.f32.mrf.mxu0
        %v4658 = vadd.f32 0.0, %v4657
        %v4659 = vpop.f32.mrf.mxu0
        %v4660 = vpop.f32.mrf.mxu0
        %v4661 = vadd.f32 0.0, %v4660
        %v4662 = vpop.f32.mrf.mxu0
        %4663 = vmatprep.mubr.bf16.mxu0 0
        %4664 = vmatmul.mubr.bf16.gmra.mxu0 %v4556
        %v4665 = vpop.f32.mrf.mxu0
        %v4666 = vadd.f32 0.0, %v4665
        %v4667 = vpop.f32.mrf.mxu0
        %v4668 = vpop.f32.mrf.mxu0
        %v4669 = vadd.f32 0.0, %v4668
        %v4670 = vpop.f32.mrf.mxu0
        %4671 = vmatprep.mubr.bf16.mxu0 0
        %4672 = vmatmul.mubr.bf16.gmra.mxu0 %v4559
        %v4673 = vpop.f32.mrf.mxu0
        %v4674 = vadd.f32 0.0, %v4673
        %v4675 = vpop.f32.mrf.mxu0
        %v4676 = vpop.f32.mrf.mxu0
        %v4677 = vadd.f32 0.0, %v4676
        %v4678 = vpop.f32.mrf.mxu0
        %4679 = vmatprep.mubr.bf16.mxu0 0
        %4680 = vmatmul.mubr.bf16.gmra.mxu0 %v4562
        %v4681 = vpop.f32.mrf.mxu0
        %v4682 = vadd.f32 0.0, %v4681
        %v4683 = vpop.f32.mrf.mxu0
        %v4684 = vpop.f32.mrf.mxu0
        %v4685 = vadd.f32 0.0, %v4684
        %v4686 = vpop.f32.mrf.mxu0
        %4687 = vmatprep.mubr.bf16.mxu0 0
        %4688 = vmatmul.mubr.bf16.gmra.mxu0 %v4565
        %v4689 = vpop.f32.mrf.mxu0
        %v4690 = vadd.f32 0.0, %v4689
        %v4691 = vpop.f32.mrf.mxu0
        %v4692 = vpop.f32.mrf.mxu0
        %v4693 = vadd.f32 0.0, %v4692
        %v4694 = vpop.f32.mrf.mxu0
        %4695 = vmatprep.mubr.bf16.mxu0 0
        %4696 = vmatmul.mubr.bf16.gmra.mxu0 %v4568
        %v4697 = vpop.f32.mrf.mxu0
        %v4698 = vadd.f32 0.0, %v4697
        %v4699 = vpop.f32.mrf.mxu0
        %v4700 = vpop.f32.mrf.mxu0
        %v4701 = vadd.f32 0.0, %v4700
        %v4702 = vpop.f32.mrf.mxu0
        %4703 = vmatprep.mubr.bf16.mxu0 0
        %4704 = vmatmul.mubr.bf16.gmra.mxu0 %v4571
        %v4705 = vpop.f32.mrf.mxu0
        %v4706 = vadd.f32 0.0, %v4705
        %v4707 = vpop.f32.mrf.mxu0
        %v4708 = vpop.f32.mrf.mxu0
        %v4709 = vadd.f32 0.0, %v4708
        %v4710 = vpop.f32.mrf.mxu0
        %4711 = vmatprep.mubr.bf16.mxu0 0
        %4712 = vmatmul.mubr.bf16.gmra.mxu0 %v4574
        %v4713 = vpop.f32.mrf.mxu0
        %v4714 = vadd.f32 0.0, %v4713
        %v4715 = vpop.f32.mrf.mxu0
        %v4716 = vpop.f32.mrf.mxu0
        %v4717 = vadd.f32 0.0, %v4716
        %v4718 = vpop.f32.mrf.mxu0
        %4719 = vmatprep.mubr.bf16.mxu0 0
        %4720 = vmatmul.mubr.bf16.gmra.mxu0 %v4577
        %v4721 = vpop.f32.mrf.mxu0
        %v4722 = vadd.f32 0.0, %v4721
        %v4723 = vpop.f32.mrf.mxu0
        %v4724 = vpop.f32.mrf.mxu0
        %v4725 = vadd.f32 0.0, %v4724
        %v4726 = vpop.f32.mrf.mxu0
        %4727 = vmatprep.mubr.bf16.mxu0 0
        %4728 = vmatmul.mubr.bf16.gmra.mxu0 %v4580
        %v4729 = vpop.f32.mrf.mxu0
        %v4730 = vadd.f32 0.0, %v4729
        %v4731 = vpop.f32.mrf.mxu0
        %v4732 = vpop.f32.mrf.mxu0
        %v4733 = vadd.f32 0.0, %v4732
        %v4734 = vpop.f32.mrf.mxu0
        %4735 = vmatprep.mubr.bf16.mxu0 0
        %4736 = vmatmul.mubr.bf16.gmra.mxu0 %v4583
        %v4737 = vpop.f32.mrf.mxu0
        %v4738 = vadd.f32 0.0, %v4737
        %v4739 = vpop.f32.mrf.mxu0
        %v4740 = vpop.f32.mrf.mxu0
        %v4741 = vadd.f32 0.0, %v4740
        %v4742 = vpop.f32.mrf.mxu0
        %4743 = vmatprep.mubr.bf16.mxu0 0
        %4744 = vmatmul.mubr.bf16.gmra.mxu0 %v4586
        %v4745 = vpop.f32.mrf.mxu0
        %v4746 = vadd.f32 0.0, %v4745
        %v4747 = vpop.f32.mrf.mxu0
        %v4748 = vpop.f32.mrf.mxu0
        %v4749 = vadd.f32 0.0, %v4748
        %v4750 = vpop.f32.mrf.mxu0
        %4751 = vdwg.mxu0
        %v4752 = vadd.f32 %v4074, %v4626
        %v4753 = vadd.f32 %v4075, %v4629
        %v4754 = vadd.f32 %v4076, %v4634
        %v4755 = vadd.f32 %v4077, %v4637
        %v4756 = vadd.f32 %v4078, %v4642
        %v4757 = vadd.f32 %v4079, %v4645
        %v4758 = vadd.f32 %v4080, %v4650
        %v4759 = vadd.f32 %v4081, %v4653
        %v4760 = vadd.f32 %v4082, %v4658
        %v4761 = vadd.f32 %v4083, %v4661
        %v4762 = vadd.f32 %v4084, %v4666
        %v4763 = vadd.f32 %v4085, %v4669
        %v4764 = vadd.f32 %v4086, %v4674
        %v4765 = vadd.f32 %v4087, %v4677
        %v4766 = vadd.f32 %v4088, %v4682
        %v4767 = vadd.f32 %v4089, %v4685
        %v4768 = vadd.f32 %v4090, %v4690
        %v4769 = vadd.f32 %v4091, %v4693
        %v4770 = vadd.f32 %v4092, %v4698
        %v4771 = vadd.f32 %v4093, %v4701
        %v4772 = vadd.f32 %v4094, %v4706
        %v4773 = vadd.f32 %v4095, %v4709
        %v4774 = vadd.f32 %v4096, %v4714
        %v4775 = vadd.f32 %v4097, %v4717
        %v4776 = vadd.f32 %v4098, %v4722
        %v4777 = vadd.f32 %v4099, %v4725
        %v4778 = vadd.f32 %v4100, %v4730
        %v4779 = vadd.f32 %v4101, %v4733
        %v4780 = vadd.f32 %v4102, %v4738
        %v4781 = vadd.f32 %v4103, %v4741
        %v4782 = vadd.f32 %v4104, %v4746
        %v4783 = vadd.f32 %v4105, %v4749
        %v4800 = vrot.slane %v3732, 5
        %v4801 = vrot.slane %v4800, 4
        %v4802 = vrot.slane %v3733, 5
        %v4803 = vsel %vm1849, %v4801, %v4802
        %v4804 = vrot.slane %v4802, 4
        %v4805 = vrot.slane %v3734, 5
        %v4806 = vsel %vm1849, %v4804, %v4805
        %v4807 = vrot.slane %v3735, 5
        %v4808 = vrot.slane %v4807, 4
        %v4809 = vrot.slane %v3736, 5
        %v4810 = vsel %vm1849, %v4808, %v4809
        %v4811 = vrot.slane %v4809, 4
        %v4812 = vrot.slane %v3737, 5
        %v4813 = vsel %vm1849, %v4811, %v4812
        %v4814 = vrot.slane %v3738, 5
        %v4815 = vrot.slane %v4814, 4
        %v4816 = vrot.slane %v3739, 5
        %v4817 = vsel %vm1849, %v4815, %v4816
        %v4818 = vrot.slane %v4816, 4
        %v4819 = vrot.slane %v3740, 5
        %v4820 = vsel %vm1849, %v4818, %v4819
        %v4821 = vrot.slane %v3741, 5
        %v4822 = vrot.slane %v4821, 4
        %v4823 = vrot.slane %v3742, 5
        %v4824 = vsel %vm1849, %v4822, %v4823
        %v4825 = vrot.slane %v4823, 4
        %v4826 = vrot.slane %v3743, 5
        %v4827 = vsel %vm1849, %v4825, %v4826
        %v4828 = vrot.slane %v3744, 5
        %v4829 = vrot.slane %v4828, 4
        %v4830 = vrot.slane %v3745, 5
        %v4831 = vsel %vm1849, %v4829, %v4830
        %v4832 = vrot.slane %v4830, 4
        %v4833 = vrot.slane %v3746, 5
        %v4834 = vsel %vm1849, %v4832, %v4833
        %v4835 = vrot.slane %v3747, 5
        %v4836 = vrot.slane %v4835, 4
        %v4837 = vrot.slane %v3748, 5
        %v4838 = vsel %vm1849, %v4836, %v4837
        %v4839 = vrot.slane %v4837, 4
        %v4840 = vrot.slane %v3749, 5
        %v4841 = vsel %vm1849, %v4839, %v4840
        %v4842 = vrot.slane %v3750, 5
        %v4843 = vrot.slane %v4842, 4
        %v4844 = vrot.slane %v3751, 5
        %v4845 = vsel %vm1849, %v4843, %v4844
        %v4846 = vrot.slane %v4844, 4
        %v4847 = vrot.slane %v3752, 5
        %v4848 = vsel %vm1849, %v4846, %v4847
        %v4849 = vrot.slane %v3753, 5
        %v4850 = vrot.slane %v4849, 4
        %v4851 = vrot.slane %v3754, 5
        %v4852 = vsel %vm1849, %v4850, %v4851
        %v4853 = vrot.slane %v4851, 4
        %v4854 = vrot.slane %v3755, 5
        %v4855 = vsel %vm1849, %v4853, %v4854
        %v4856 = vrot.slane %v3756, 5
        %v4857 = vrot.slane %v4856, 4
        %v4858 = vrot.slane %v3757, 5
        %v4859 = vsel %vm1849, %v4857, %v4858
        %v4860 = vrot.slane %v4858, 4
        %v4861 = vrot.slane %v3758, 5
        %v4862 = vsel %vm1849, %v4860, %v4861
        %v4863 = vrot.slane %v3759, 5
        %v4864 = vrot.slane %v4863, 4
        %v4865 = vrot.slane %v3760, 5
        %v4866 = vsel %vm1849, %v4864, %v4865
        %v4867 = vrot.slane %v4865, 4
        %v4868 = vrot.slane %v3761, 5
        %v4869 = vsel %vm1849, %v4867, %v4868
        %v4870 = vrot.slane %v3762, 5
        %v4871 = vrot.slane %v4870, 4
        %v4872 = vrot.slane %v3763, 5
        %v4873 = vsel %vm1849, %v4871, %v4872
        %v4874 = vrot.slane %v4872, 4
        %v4875 = vrot.slane %v3764, 5
        %v4876 = vsel %vm1849, %v4874, %v4875
        %v4877 = vrot.slane %v3765, 5
        %v4878 = vrot.slane %v4877, 4
        %v4879 = vrot.slane %v3766, 5
        %v4880 = vsel %vm1849, %v4878, %v4879
        %v4881 = vrot.slane %v4879, 4
        %v4882 = vrot.slane %v3767, 5
        %v4883 = vsel %vm1849, %v4881, %v4882
        %v4884 = vrot.slane %v3768, 5
        %v4885 = vrot.slane %v4884, 4
        %v4886 = vrot.slane %v3769, 5
        %v4887 = vsel %vm1849, %v4885, %v4886
        %v4888 = vrot.slane %v4886, 4
        %v4889 = vrot.slane %v3770, 5
        %v4890 = vsel %vm1849, %v4888, %v4889
        %v4891 = vrot.slane %v3771, 5
        %v4892 = vrot.slane %v4891, 4
        %v4893 = vrot.slane %v3772, 5
        %v4894 = vsel %vm1849, %v4892, %v4893
        %v4895 = vrot.slane %v4893, 4
        %v4896 = vrot.slane %v3773, 5
        %v4897 = vsel %vm1849, %v4895, %v4896
        %v4898 = vrot.slane %v3774, 5
        %v4899 = vrot.slane %v4898, 4
        %v4900 = vrot.slane %v3775, 5
        %v4901 = vsel %vm1849, %v4899, %v4900
        %v4902 = vrot.slane %v4900, 4
        %v4903 = vrot.slane %v3776, 5
        %v4904 = vsel %vm1849, %v4902, %v4903
        %v4905 = vrot.slane %v3777, 5
        %v4906 = vrot.slane %v4905, 4
        %v4907 = vrot.slane %v3778, 5
        %v4908 = vsel %vm1849, %v4906, %v4907
        %v4909 = vrot.slane %v4907, 4
        %v4910 = vrot.slane %v3779, 5
        %v4911 = vsel %vm1849, %v4909, %v4910
        %s4912 = scalar_lea.vmem %s1, 16
        %v4913 = vld [vmem:[%s4912] sm:$0x3]
        %v4914 = vunpack.c.l.b16 %v4803
        %v4915 = vunpack.c.l.b16 %v4806
        %v4916 = vunpack.c.l.b16 %v4810
        %v4917 = vunpack.c.l.b16 %v4813
        %v4918 = vunpack.c.l.b16 %v4817
        %v4919 = vunpack.c.l.b16 %v4820
        %v4920 = vunpack.c.l.b16 %v4824
        %v4921 = vunpack.c.l.b16 %v4827
        %v4922 = vunpack.c.l.b16 %v4831
        %v4923 = vunpack.c.l.b16 %v4834
        %v4924 = vunpack.c.l.b16 %v4838
        %v4925 = vunpack.c.l.b16 %v4841
        %v4926 = vunpack.c.l.b16 %v4845
        %v4927 = vunpack.c.l.b16 %v4848
        %v4928 = vunpack.c.l.b16 %v4852
        %v4929 = vunpack.c.l.b16 %v4855
        %v4930 = vunpack.c.l.b16 %v4859
        %v4931 = vunpack.c.l.b16 %v4862
        %v4932 = vunpack.c.l.b16 %v4866
        %v4933 = vunpack.c.l.b16 %v4869
        %v4934 = vunpack.c.l.b16 %v4873
        %v4935 = vunpack.c.l.b16 %v4876
        %v4936 = vunpack.c.l.b16 %v4880
        %v4937 = vunpack.c.l.b16 %v4883
        %v4938 = vunpack.c.l.b16 %v4887
        %v4939 = vunpack.c.l.b16 %v4890
        %v4940 = vunpack.c.l.b16 %v4894
        %v4941 = vunpack.c.l.b16 %v4897
        %v4942 = vunpack.c.l.b16 %v4901
        %v4943 = vunpack.c.l.b16 %v4904
        %v4944 = vunpack.c.l.b16 %v4908
        %v4945 = vunpack.c.l.b16 %v4911
        %v4946 = vpack.c.b16 %v4915, %v4914
        %v4947 = vpack.c.b16 %v4917, %v4916
        %v4948 = vpack.c.b16 %v4919, %v4918
        %v4949 = vpack.c.b16 %v4921, %v4920
        %v4950 = vpack.c.b16 %v4923, %v4922
        %v4951 = vpack.c.b16 %v4925, %v4924
        %v4952 = vpack.c.b16 %v4927, %v4926
        %v4953 = vpack.c.b16 %v4929, %v4928
        %v4954 = vpack.c.b16 %v4931, %v4930
        %v4955 = vpack.c.b16 %v4933, %v4932
        %v4956 = vpack.c.b16 %v4935, %v4934
        %v4957 = vpack.c.b16 %v4937, %v4936
        %v4958 = vpack.c.b16 %v4939, %v4938
        %v4959 = vpack.c.b16 %v4941, %v4940
        %v4960 = vpack.c.b16 %v4943, %v4942
        %v4961 = vpack.c.b16 %v4945, %v4944
        %v4963 = vsel %vm1325, %v4946, 0
        %v4966 = vsel %vm1325, %v4947, 0
        %v4969 = vsel %vm1325, %v4948, 0
        %v4972 = vsel %vm1325, %v4949, 0
        %v4975 = vsel %vm1325, %v4950, 0
        %v4978 = vsel %vm1325, %v4951, 0
        %v4981 = vsel %vm1325, %v4952, 0
        %v4984 = vsel %vm1325, %v4953, 0
        %v4987 = vsel %vm1325, %v4954, 0
        %v4990 = vsel %vm1325, %v4955, 0
        %v4993 = vsel %vm1325, %v4956, 0
        %v4996 = vsel %vm1325, %v4957, 0
        %v4999 = vsel %vm1325, %v4958, 0
        %v5002 = vsel %vm1325, %v4959, 0
        %v5005 = vsel %vm1325, %v4960, 0
        %v5008 = vsel %vm1325, %v4961, 0
        %v5011 = vsel %vm1374, %v4913, 0
        %5013 = vmatprep.subr.bf16.mxu0 0
        %5014 = vmatpush1.bf16.msra.mxu0 0
        %5015 = vmatprep.subr.bf16.mxu0 0
        %5016 = vmatpush1.bf16.msra.mxu0 0
        %5017 = vmatprep.subr.bf16.mxu0 0
        %5018 = vmatpush1.bf16.msra.mxu0 0
        %5019 = vmatprep.subr.bf16.mxu0 0
        %5020 = vmatpush1.bf16.msra.mxu0 0
        %5021 = vmatprep.subr.bf16.mxu0 0
        %5022 = vmatpush1.bf16.msra.mxu0 0
        %5023 = vmatprep.subr.bf16.mxu0 0
        %5024 = vmatpush1.bf16.msra.mxu0 0
        %5025 = vmatprep.subr.bf16.mxu0 0
        %5026 = vmatpush1.bf16.msra.mxu0 0
        %5027 = vmatprep.subr.bf16.mxu0 0
        %5028 = vmatpush1.bf16.msra.mxu0 %v5011
        %5029 = vmatprep.subr.bf16.mxu0 0
        %5030 = vmatpush2.bf16.msra.mxu0 0
        %5031 = vmatprep.subr.bf16.mxu0 0
        %5032 = vmatpush2.bf16.msra.mxu0 0
        %5033 = vmatprep.subr.bf16.mxu0 0
        %5034 = vmatpush2.bf16.msra.mxu0 0
        %5035 = vmatprep.subr.bf16.mxu0 0
        %5036 = vmatpush2.bf16.msra.mxu0 0
        %5037 = vmatprep.subr.bf16.mxu0 0
        %5038 = vmatpush2.bf16.msra.mxu0 0
        %5039 = vmatprep.subr.bf16.mxu0 0
        %5040 = vmatpush2.bf16.msra.mxu0 0
        %5041 = vmatprep.subr.bf16.mxu0 0
        %5042 = vmatpush2.bf16.msra.mxu0 0
        %5043 = vmatprep.subr.bf16.mxu0 0
        %5044 = vmatpush2.bf16.msra.mxu0 0
        %5045 = vmatprep.mubr.bf16.mxu0 0
        %5046 = vmatmul.mubr.bf16.gmra.mxu0 %v4963
        %v5047 = vpop.f32.mrf.mxu0
        %v5048 = vadd.f32 0.0, %v5047
        %v5049 = vpop.f32.mrf.mxu0
        %v5050 = vpop.f32.mrf.mxu0
        %v5051 = vadd.f32 0.0, %v5050
        %v5052 = vpop.f32.mrf.mxu0
        %5053 = vmatprep.mubr.bf16.mxu0 0
        %5054 = vmatmul.mubr.bf16.gmra.mxu0 %v4966
        %v5055 = vpop.f32.mrf.mxu0
        %v5056 = vadd.f32 0.0, %v5055
        %v5057 = vpop.f32.mrf.mxu0
        %v5058 = vpop.f32.mrf.mxu0
        %v5059 = vadd.f32 0.0, %v5058
        %v5060 = vpop.f32.mrf.mxu0
        %5061 = vmatprep.mubr.bf16.mxu0 0
        %5062 = vmatmul.mubr.bf16.gmra.mxu0 %v4969
        %v5063 = vpop.f32.mrf.mxu0
        %v5064 = vadd.f32 0.0, %v5063
        %v5065 = vpop.f32.mrf.mxu0
        %v5066 = vpop.f32.mrf.mxu0
        %v5067 = vadd.f32 0.0, %v5066
        %v5068 = vpop.f32.mrf.mxu0
        %5069 = vmatprep.mubr.bf16.mxu0 0
        %5070 = vmatmul.mubr.bf16.gmra.mxu0 %v4972
        %v5071 = vpop.f32.mrf.mxu0
        %v5072 = vadd.f32 0.0, %v5071
        %v5073 = vpop.f32.mrf.mxu0
        %v5074 = vpop.f32.mrf.mxu0
        %v5075 = vadd.f32 0.0, %v5074
        %v5076 = vpop.f32.mrf.mxu0
        %5077 = vmatprep.mubr.bf16.mxu0 0
        %5078 = vmatmul.mubr.bf16.gmra.mxu0 %v4975
        %v5079 = vpop.f32.mrf.mxu0
        %v5080 = vadd.f32 0.0, %v5079
        %v5081 = vpop.f32.mrf.mxu0
        %v5082 = vpop.f32.mrf.mxu0
        %v5083 = vadd.f32 0.0, %v5082
        %v5084 = vpop.f32.mrf.mxu0
        %5085 = vmatprep.mubr.bf16.mxu0 0
        %5086 = vmatmul.mubr.bf16.gmra.mxu0 %v4978
        %v5087 = vpop.f32.mrf.mxu0
        %v5088 = vadd.f32 0.0, %v5087
        %v5089 = vpop.f32.mrf.mxu0
        %v5090 = vpop.f32.mrf.mxu0
        %v5091 = vadd.f32 0.0, %v5090
        %v5092 = vpop.f32.mrf.mxu0
        %5093 = vmatprep.mubr.bf16.mxu0 0
        %5094 = vmatmul.mubr.bf16.gmra.mxu0 %v4981
        %v5095 = vpop.f32.mrf.mxu0
        %v5096 = vadd.f32 0.0, %v5095
        %v5097 = vpop.f32.mrf.mxu0
        %v5098 = vpop.f32.mrf.mxu0
        %v5099 = vadd.f32 0.0, %v5098
        %v5100 = vpop.f32.mrf.mxu0
        %5101 = vmatprep.mubr.bf16.mxu0 0
        %5102 = vmatmul.mubr.bf16.gmra.mxu0 %v4984
        %v5103 = vpop.f32.mrf.mxu0
        %v5104 = vadd.f32 0.0, %v5103
        %v5105 = vpop.f32.mrf.mxu0
        %v5106 = vpop.f32.mrf.mxu0
        %v5107 = vadd.f32 0.0, %v5106
        %v5108 = vpop.f32.mrf.mxu0
        %5109 = vmatprep.mubr.bf16.mxu0 0
        %5110 = vmatmul.mubr.bf16.gmra.mxu0 %v4987
        %v5111 = vpop.f32.mrf.mxu0
        %v5112 = vadd.f32 0.0, %v5111
        %v5113 = vpop.f32.mrf.mxu0
        %v5114 = vpop.f32.mrf.mxu0
        %v5115 = vadd.f32 0.0, %v5114
        %v5116 = vpop.f32.mrf.mxu0
        %5117 = vmatprep.mubr.bf16.mxu0 0
        %5118 = vmatmul.mubr.bf16.gmra.mxu0 %v4990
        %v5119 = vpop.f32.mrf.mxu0
        %v5120 = vadd.f32 0.0, %v5119
        %v5121 = vpop.f32.mrf.mxu0
        %v5122 = vpop.f32.mrf.mxu0
        %v5123 = vadd.f32 0.0, %v5122
        %v5124 = vpop.f32.mrf.mxu0
        %5125 = vmatprep.mubr.bf16.mxu0 0
        %5126 = vmatmul.mubr.bf16.gmra.mxu0 %v4993
        %v5127 = vpop.f32.mrf.mxu0
        %v5128 = vadd.f32 0.0, %v5127
        %v5129 = vpop.f32.mrf.mxu0
        %v5130 = vpop.f32.mrf.mxu0
        %v5131 = vadd.f32 0.0, %v5130
        %v5132 = vpop.f32.mrf.mxu0
        %5133 = vmatprep.mubr.bf16.mxu0 0
        %5134 = vmatmul.mubr.bf16.gmra.mxu0 %v4996
        %v5135 = vpop.f32.mrf.mxu0
        %v5136 = vadd.f32 0.0, %v5135
        %v5137 = vpop.f32.mrf.mxu0
        %v5138 = vpop.f32.mrf.mxu0
        %v5139 = vadd.f32 0.0, %v5138
        %v5140 = vpop.f32.mrf.mxu0
        %5141 = vmatprep.mubr.bf16.mxu0 0
        %5142 = vmatmul.mubr.bf16.gmra.mxu0 %v4999
        %v5143 = vpop.f32.mrf.mxu0
        %v5144 = vadd.f32 0.0, %v5143
        %v5145 = vpop.f32.mrf.mxu0
        %v5146 = vpop.f32.mrf.mxu0
        %v5147 = vadd.f32 0.0, %v5146
        %v5148 = vpop.f32.mrf.mxu0
        %5149 = vmatprep.mubr.bf16.mxu0 0
        %5150 = vmatmul.mubr.bf16.gmra.mxu0 %v5002
        %v5151 = vpop.f32.mrf.mxu0
        %v5152 = vadd.f32 0.0, %v5151
        %v5153 = vpop.f32.mrf.mxu0
        %v5154 = vpop.f32.mrf.mxu0
        %v5155 = vadd.f32 0.0, %v5154
        %v5156 = vpop.f32.mrf.mxu0
        %5157 = vmatprep.mubr.bf16.mxu0 0
        %5158 = vmatmul.mubr.bf16.gmra.mxu0 %v5005
        %v5159 = vpop.f32.mrf.mxu0
        %v5160 = vadd.f32 0.0, %v5159
        %v5161 = vpop.f32.mrf.mxu0
        %v5162 = vpop.f32.mrf.mxu0
        %v5163 = vadd.f32 0.0, %v5162
        %v5164 = vpop.f32.mrf.mxu0
        %5165 = vmatprep.mubr.bf16.mxu0 0
        %5166 = vmatmul.mubr.bf16.gmra.mxu0 %v5008
        %v5167 = vpop.f32.mrf.mxu0
        %v5168 = vadd.f32 0.0, %v5167
        %v5169 = vpop.f32.mrf.mxu0
        %v5170 = vpop.f32.mrf.mxu0
        %v5171 = vadd.f32 0.0, %v5170
        %v5172 = vpop.f32.mrf.mxu0
        %5173 = vdwg.mxu0
        %v5174 = vadd.f32 %v4752, %v5048
        %v5175 = vadd.f32 %v4753, %v5051
        %v5176 = vadd.f32 %v4754, %v5056
        %v5177 = vadd.f32 %v4755, %v5059
        %v5178 = vadd.f32 %v4756, %v5064
        %v5179 = vadd.f32 %v4757, %v5067
        %v5180 = vadd.f32 %v4758, %v5072
        %v5181 = vadd.f32 %v4759, %v5075
        %v5182 = vadd.f32 %v4760, %v5080
        %v5183 = vadd.f32 %v4761, %v5083
        %v5184 = vadd.f32 %v4762, %v5088
        %v5185 = vadd.f32 %v4763, %v5091
        %v5186 = vadd.f32 %v4764, %v5096
        %v5187 = vadd.f32 %v4765, %v5099
        %v5188 = vadd.f32 %v4766, %v5104
        %v5189 = vadd.f32 %v4767, %v5107
        %v5190 = vadd.f32 %v4768, %v5112
        %v5191 = vadd.f32 %v4769, %v5115
        %v5192 = vadd.f32 %v4770, %v5120
        %v5193 = vadd.f32 %v4771, %v5123
        %v5194 = vadd.f32 %v4772, %v5128
        %v5195 = vadd.f32 %v4773, %v5131
        %v5196 = vadd.f32 %v4774, %v5136
        %v5197 = vadd.f32 %v4775, %v5139
        %v5198 = vadd.f32 %v4776, %v5144
        %v5199 = vadd.f32 %v4777, %v5147
        %v5200 = vadd.f32 %v4778, %v5152
        %v5201 = vadd.f32 %v4779, %v5155
        %v5202 = vadd.f32 %v4780, %v5160
        %v5203 = vadd.f32 %v4781, %v5163
        %v5204 = vadd.f32 %v4782, %v5168
        %v5205 = vadd.f32 %v4783, %v5171
        %5206 = vst [vmem:[%s828] sm:$0xff] %v5174
        %5207 = vst [vmem:[%s828 + $0x8] sm:$0xff] %v5175
        %5208 = vst [vmem:[%s828 + $0x10] sm:$0xff] %v5176
        %5209 = vst [vmem:[%s828 + $0x18] sm:$0xff] %v5177
        %5210 = vst [vmem:[%s828 + $0x20] sm:$0xff] %v5178
        %5211 = vst [vmem:[%s828 + $0x28] sm:$0xff] %v5179
        %5212 = vst [vmem:[%s828 + $0x30] sm:$0xff] %v5180
        %5213 = vst [vmem:[%s828 + $0x38] sm:$0xff] %v5181
        %5214 = vst [vmem:[%s828 + $0x40] sm:$0xff] %v5182
        %5215 = vst [vmem:[%s828 + $0x48] sm:$0xff] %v5183
        %5216 = vst [vmem:[%s828 + $0x50] sm:$0xff] %v5184
        %5217 = vst [vmem:[%s828 + $0x58] sm:$0xff] %v5185
        %5218 = vst [vmem:[%s828 + $0x60] sm:$0xff] %v5186
        %5219 = vst [vmem:[%s828 + $0x68] sm:$0xff] %v5187
        %5220 = vst [vmem:[%s828 + $0x70] sm:$0xff] %v5188
        %5221 = vst [vmem:[%s828 + $0x78] sm:$0xff] %v5189
        %5222 = vst [vmem:[%s828 + $0x80] sm:$0xff] %v5190
        %5223 = vst [vmem:[%s828 + $0x88] sm:$0xff] %v5191
        %5224 = vst [vmem:[%s828 + $0x90] sm:$0xff] %v5192
        %5225 = vst [vmem:[%s828 + $0x98] sm:$0xff] %v5193
        %5226 = vst [vmem:[%s828 + $0xa0] sm:$0xff] %v5194
        %5227 = vst [vmem:[%s828 + $0xa8] sm:$0xff] %v5195
        %5228 = vst [vmem:[%s828 + $0xb0] sm:$0xff] %v5196
        %5229 = vst [vmem:[%s828 + $0xb8] sm:$0xff] %v5197
        %5230 = vst [vmem:[%s828 + $0xc0] sm:$0xff] %v5198
        %5231 = vst [vmem:[%s828 + $0xc8] sm:$0xff] %v5199
        %5232 = vst [vmem:[%s828 + $0xd0] sm:$0xff] %v5200
        %5233 = vst [vmem:[%s828 + $0xd8] sm:$0xff] %v5201
        %5234 = vst [vmem:[%s828 + $0xe0] sm:$0xff] %v5202
        %5235 = vst [vmem:[%s828 + $0xe8] sm:$0xff] %v5203
        %5236 = vst [vmem:[%s828 + $0xf0] sm:$0xff] %v5204
        %5237 = vst [vmem:[%s828 + $0xf8] sm:$0xff] %v5205
        %v5238 = vadd.f32 %v5174, %v5175
        %v5239 = vadd.f32 %v5238, %v5176
        %v5240 = vadd.f32 %v5239, %v5177
        %v5241 = vadd.f32 %v5240, %v5178
        %v5242 = vadd.f32 %v5241, %v5179
        %v5243 = vadd.f32 %v5242, %v5180
        %v5244 = vadd.f32 %v5243, %v5181
        %v5245 = vadd.f32 %v5244, %v5182
        %v5246 = vadd.f32 %v5245, %v5183
        %v5247 = vadd.f32 %v5246, %v5184
        %v5248 = vadd.f32 %v5247, %v5185
        %v5249 = vadd.f32 %v5248, %v5186
        %v5250 = vadd.f32 %v5249, %v5187
        %v5251 = vadd.f32 %v5250, %v5188
        %v5252 = vadd.f32 %v5251, %v5189
        %v5253 = vadd.f32 %v5252, %v5190
        %v5254 = vadd.f32 %v5253, %v5191
        %v5255 = vadd.f32 %v5254, %v5192
        %v5256 = vadd.f32 %v5255, %v5193
        %v5257 = vadd.f32 %v5256, %v5194
        %v5258 = vadd.f32 %v5257, %v5195
        %v5259 = vadd.f32 %v5258, %v5196
        %v5260 = vadd.f32 %v5259, %v5197
        %v5261 = vadd.f32 %v5260, %v5198
        %v5262 = vadd.f32 %v5261, %v5199
        %v5263 = vadd.f32 %v5262, %v5200
        %v5264 = vadd.f32 %v5263, %v5201
        %v5265 = vadd.f32 %v5264, %v5202
        %v5266 = vadd.f32 %v5265, %v5203
        %v5267 = vadd.f32 %v5266, %v5204
        %v5268 = vadd.f32 %v5267, %v5205
        %v5269 = vrot.slane %v5268, 4
        %v5270 = vadd.f32 %v5268, %v5269
        %v5271 = vrot.slane %v5270, 2
        %v5272 = vadd.f32 %v5270, %v5271
        %v5273 = vrot.slane %v5272, 1
        %v5274 = vadd.f32 %v5272, %v5273
        %v5275 = vmul.f32 %v5174, %v5174
        %v5276 = vmul.f32 %v5175, %v5175
        %v5277 = vmul.f32 %v5176, %v5176
        %v5278 = vmul.f32 %v5177, %v5177
        %v5279 = vmul.f32 %v5178, %v5178
        %v5280 = vmul.f32 %v5179, %v5179
        %v5281 = vmul.f32 %v5180, %v5180
        %v5282 = vmul.f32 %v5181, %v5181
        %v5283 = vmul.f32 %v5182, %v5182
        %v5284 = vmul.f32 %v5183, %v5183
        %v5285 = vmul.f32 %v5184, %v5184
        %v5286 = vmul.f32 %v5185, %v5185
        %v5287 = vmul.f32 %v5186, %v5186
        %v5288 = vmul.f32 %v5187, %v5187
        %v5289 = vmul.f32 %v5188, %v5188
        %v5290 = vmul.f32 %v5189, %v5189
        %v5291 = vmul.f32 %v5190, %v5190
        %v5292 = vmul.f32 %v5191, %v5191
        %v5293 = vmul.f32 %v5192, %v5192
        %v5294 = vmul.f32 %v5193, %v5193
        %v5295 = vmul.f32 %v5194, %v5194
        %v5296 = vmul.f32 %v5195, %v5195
        %v5297 = vmul.f32 %v5196, %v5196
        %v5298 = vmul.f32 %v5197, %v5197
        %v5299 = vmul.f32 %v5198, %v5198
        %v5300 = vmul.f32 %v5199, %v5199
        %v5301 = vmul.f32 %v5200, %v5200
        %v5302 = vmul.f32 %v5201, %v5201
        %v5303 = vmul.f32 %v5202, %v5202
        %v5304 = vmul.f32 %v5203, %v5203
        %v5305 = vmul.f32 %v5204, %v5204
        %v5306 = vmul.f32 %v5205, %v5205
        %v5307 = vadd.f32 %v5275, %v5276
        %v5308 = vadd.f32 %v5307, %v5277
        %v5309 = vadd.f32 %v5308, %v5278
        %v5310 = vadd.f32 %v5309, %v5279
        %v5311 = vadd.f32 %v5310, %v5280
        %v5312 = vadd.f32 %v5311, %v5281
        %v5313 = vadd.f32 %v5312, %v5282
        %v5314 = vadd.f32 %v5313, %v5283
        %v5315 = vadd.f32 %v5314, %v5284
        %v5316 = vadd.f32 %v5315, %v5285
        %v5317 = vadd.f32 %v5316, %v5286
        %v5318 = vadd.f32 %v5317, %v5287
        %v5319 = vadd.f32 %v5318, %v5288
        %v5320 = vadd.f32 %v5319, %v5289
        %v5321 = vadd.f32 %v5320, %v5290
        %v5322 = vadd.f32 %v5321, %v5291
        %v5323 = vadd.f32 %v5322, %v5292
        %v5324 = vadd.f32 %v5323, %v5293
        %v5325 = vadd.f32 %v5324, %v5294
        %v5326 = vadd.f32 %v5325, %v5295
        %v5327 = vadd.f32 %v5326, %v5296
        %v5328 = vadd.f32 %v5327, %v5297
        %v5329 = vadd.f32 %v5328, %v5298
        %v5330 = vadd.f32 %v5329, %v5299
        %v5331 = vadd.f32 %v5330, %v5300
        %v5332 = vadd.f32 %v5331, %v5301
        %v5333 = vadd.f32 %v5332, %v5302
        %v5334 = vadd.f32 %v5333, %v5303
        %v5335 = vadd.f32 %v5334, %v5304
        %v5336 = vadd.f32 %v5335, %v5305
        %v5337 = vadd.f32 %v5336, %v5306
        %v5338 = vrot.slane %v5337, 4
        %v5339 = vadd.f32 %v5337, %v5338
        %v5340 = vrot.slane %v5339, 2
        %v5341 = vadd.f32 %v5339, %v5340
        %v5342 = vrot.slane %v5341, 1
        %v5343 = vadd.f32 %v5341, %v5342
        %5344 = vst [vmem:[%s833] sm:$0xff] %v5274
        %5345 = vst [vmem:[%s837] sm:$0xff] %v5343
        %s5346 = smul.u32 32, %s16
        %p5347 = scmp.lt.s32.totalorder %s5346, 63
        %s5348 = scalar_select %p5347, %s5346, 63
        %s5349 = smul.addr %s5348, 8
        %s5350 = scalar_lea.vmem %s2, %s5349
        %p5351 = scmp.lt.s32.totalorder %s16, 1
        %s5352 = scalar_select %p5351, %s16, 1
        %s5353 = smul.addr %s5352, 8
        %s5354 = scalar_lea.vmem %s3, %s5353
        %p5355 = scmp.lt.s32.totalorder %s16, 1
        %s5356 = scalar_select %p5355, %s16, 1
        %s5357 = smul.addr %s5356, 8
        %s5358 = scalar_lea.vmem %s4, %s5357
        // Predicated region
        $region70: #{basic_block_forward.2} parent=64 // pred_check
          %p5359 = pneg %p81
        $region71: #{basic_block_forward.2} parent=64 // pred_check_branch
          %5361 = sbr.rel (%p5359) target = $region73
        $region72: #{basic_block_forward.2} parent=64 // pred_region
          %s5362 = smul.u32 32, %s16
        $region73: #{basic_block_forward.2} parent=64 // pred_fallthru
          _
        // Predicated region
        $region74: #{basic_block_forward.2} parent=64 // pred_check
          %p5363 = pneg %p107
        $region75: #{basic_block_forward.2} parent=64 // pred_check_branch
          %5365 = sbr.rel (%p5363) target = $region77
        $region76: #{basic_block_forward.2} parent=64 // pred_region
          _
        $region77: #{basic_block_forward.2} parent=64 // pred_fallthru
          _
        // Predicated region
        $region78: #{basic_block_forward.2} parent=64 // pred_check
          %p5366 = pneg %p133
        $region79: #{basic_block_forward.2} parent=64 // pred_check_branch
          %5368 = sbr.rel (%p5366) target = $region81
        $region80: #{basic_block_forward.2} parent=64 // pred_region
          _
        $region81: #{basic_block_forward.2} parent=64 // pred_fallthru
          _
      $region65: #{basic_block_forward.2} parent=5 // pred_fallthru
        _
      %p5369 = scmp.le.s32.totalorder 2, %s11
      // Predicated region
      $region82: #{basic_block_forward.2} parent=5 // pred_check
        %p5370 = pneg %p5369
      $region83: #{basic_block_forward.2} parent=5 // pred_check_branch
        %5372 = sbr.rel (%p5370) target = $region85
      $region84: #{basic_block_forward.2} parent=5 // pred_region
        %s5373 = ssub.s32 %s11, 2
        // Predicated region
        $region86: #{basic_block_forward.2} parent=84 // pred_check
          %p5374 = pneg %p87
        $region87: #{basic_block_forward.2} parent=84 // pred_check_branch
          %5376 = sbr.rel (%p5374) target = $region89
        $region88: #{basic_block_forward.2} parent=84 // pred_region
          %s5377 = smul.u32 32, %s17
          %p5378 = scmp.lt.s32.totalorder %s5377, 63
          %s5379 = scalar_select %p5378, %s5377, 63
          %s5380 = smul.addr %s5379, 8
          %s5381 = scalar_lea.vmem %s2, %s5380
        $region89: #{basic_block_forward.2} parent=84 // pred_fallthru
          _
        // Predicated region
        $region90: #{basic_block_forward.2} parent=84 // pred_check
          %p5382 = pneg %p113
        $region91: #{basic_block_forward.2} parent=84 // pred_check_branch
          %5384 = sbr.rel (%p5382) target = $region93
        $region92: #{basic_block_forward.2} parent=84 // pred_region
          %p5385 = scmp.lt.s32.totalorder %s17, 1
          %s5386 = scalar_select %p5385, %s17, 1
          %s5387 = smul.addr %s5386, 8
          %s5388 = scalar_lea.vmem %s3, %s5387
        $region93: #{basic_block_forward.2} parent=84 // pred_fallthru
          _
        // Predicated region
        $region94: #{basic_block_forward.2} parent=84 // pred_check
          %p5389 = pneg %p139
        $region95: #{basic_block_forward.2} parent=84 // pred_check_branch
          %5391 = sbr.rel (%p5389) target = $region97
        $region96: #{basic_block_forward.2} parent=84 // pred_region
          %p5392 = scmp.lt.s32.totalorder %s17, 1
          %s5393 = scalar_select %p5392, %s17, 1
          %s5394 = smul.addr %s5393, 8
          %s5395 = scalar_lea.vmem %s4, %s5394
        $region97: #{basic_block_forward.2} parent=84 // pred_fallthru
          _
      $region85: #{basic_block_forward.2} parent=5 // pred_fallthru
        _
    $region6: #{basic_block_forward.2} parent=1 // loop_footer
      %s15 = sadd.s32 1, %s11
    $region7: #{basic_block_forward.2} parent=1 // loop_footer_branch
      %10 = sbr.rel target = $region3
    $region8: #{basic_block_forward.2} parent=1 // loop_exit
      _

</llo_original>
